<compile_context>
chip_gen: v7x
topology: tpu7x:2x2x1
jax: 0.10.0
libtpu: 0.0.40
codegen_flags: <defaults>
</compile_context>

<pallas_src>
import jax
import jax.numpy as jnp
from jax.experimental import pallas as pl
from jax.experimental.pallas import tpu as pltpu

# ----------------------------- config (small) --------------------------------
VOCAB = 50            # config.vocab_size
VOCAB_PAD = 128       # lane-dense padded vocab for the logits store
V_EMB_PAD = 64        # padded one-hot / embedding contraction dim (>= VOCAB)
HIDDEN = 32           # config.hidden_size
N_HEADS = 4           # config.n_heads
HEAD_DIM = HIDDEN // N_HEADS
N_LAYERS = 2          # config.n_layers
MAX_SEQ = 16          # config.max_seq_len
FF = HIDDEN * 4       # dim_feedforward
EPS = 1e-5            # nn.LayerNorm default eps
NEG_INF = -1e30       # additive mask fill (exp() underflows to 0)
LANES = 128

MXU_DTYPE = jnp.bfloat16   # bf16 MXU is full-rate on v5e/v6e/v7x

assert 3 * HIDDEN <= LANES and FF <= LANES
assert N_LAYERS * 2 * HIDDEN <= LANES          # stacked cross-attn KV weights
assert VOCAB <= V_EMB_PAD and VOCAB <= VOCAB_PAD

# -------- weight slab layout (rows of a (W_SLAB_ROWS, 128) bf16 array) -------
# per-layer block (relative to l * LW_STRIDE):
SA_W_OFF, SA_WO_OFF, CA_QW_OFF, CA_WO_OFF, W1_OFF, W2_OFF = (
    0, HIDDEN, 2 * HIDDEN, 3 * HIDDEN, 4 * HIDDEN, 5 * HIDDEN)
LW_STRIDE = 5 * HIDDEN + FF                    # 288 rows / layer
CA_KVW_OFF = N_LAYERS * LW_STRIDE              # stacked (H, N_LAYERS*2H)
TOK_EMB_OFF = CA_KVW_OFF + HIDDEN              # padded embedding table
OUT_W_OFF = TOK_EMB_OFF + V_EMB_PAD            # vocab projection (H, VOCAB_PAD)
W_SLAB_ROWS = OUT_W_OFF + HIDDEN

# -------- f32 slab layout (biases / LayerNorm params / positional table) -----
OUT_B_ROW = 0
CA_KVB_ROW = 1
POS_ROW = 2
F_LAYER_BASE = POS_ROW + MAX_SEQ
(SA_B_R, SA_BO_R, CA_QB_R, CA_BO_R, B1_R, B2_R,
 G1_R, BE1_R, G2_R, BE2_R, G3_R, BE3_R) = range(12)
LF_STRIDE = 12
F_SLAB_ROWS = F_LAYER_BASE + N_LAYERS * LF_STRIDE


# ----------------------------- fused forward kernel --------------------------
def _fused_forward_kernel(tokens_ref, mem_ref, sa_mask_ref, ca_mask_ref,
                          wslab_ref, fslab_ref, logits_ref):
    B, M, H = mem_ref.shape
    BS = tokens_ref.shape[0]
    S = BS // B
    nh, hd = N_HEADS, HEAD_DIM
    mxu = wslab_ref.dtype

    def w_at(off, rows):                       # (rows, 128) bf16 weight block
        return wslab_ref[off:off + rows, :]

    def f_at(row):                             # (1, 128) f32 bias row
        return fslab_ref[row:row + 1, :]

    def mm(a, w):                              # (N,K) @ (K,Nout) -> f32
        return jax.lax.dot_general(a.astype(w.dtype), w,
                                   (((1,), (0,)), ((), ())),
                                   preferred_element_type=jnp.float32)

    def qk(a, b):                              # (R,D) x (C,D) -> (R,C) scores
        return jax.lax.dot_general(a, b, (((1,), (1,)), ((), ())),
                                   preferred_element_type=jnp.float32)

    def layer_norm(v, g_row, b_row):           # f32 elementwise math
        g = fslab_ref[g_row:g_row + 1, :H]
        beta = fslab_ref[b_row:b_row + 1, :H]
        mu = jnp.mean(v, axis=-1, keepdims=True)
        var = jnp.mean(jnp.square(v - mu), axis=-1, keepdims=True)
        return (v - mu) * jax.lax.rsqrt(var + EPS) * g + beta

    def pack_heads(mat, base):
        # (N, >=base+H) -> (nh*N, hd), row order (head, n); bf16 cast hoisted
        return jnp.concatenate(
            [mat[:, base + h * hd: base + (h + 1) * hd] for h in range(nh)],
            axis=0).astype(mxu)

    def attention(q_p, k_p, v_p, mask, wo, bo):
        # Block-diagonal attention over (head, batch) packed rows: one score
        # matmul, one softmax, one value matmul; cross-(batch,head) blocks are
        # killed by the additive mask (exp underflows to 0).
        s = qk(q_p, k_p) + mask                             # (nh*BS, C) f32
        s = s - jnp.max(s, axis=-1, keepdims=True)
        p = jnp.exp(s)
        p = p * pl.reciprocal(jnp.sum(p, axis=-1, keepdims=True), approx=True)
        o_p = mm(p, v_p)                                    # (nh*BS, hd) f32
        # un-pack heads back to lanes once, then a single K=H output proj
        o_all = jnp.concatenate(
            [o_p[h * BS:(h + 1) * BS, :] for h in range(nh)], axis=1)
        return (mm(o_all, wo) + bo)[:, :H]                  # (BS, H)

    # --- embedding: one-hot matmul gather, tile-aligned K = V_EMB_PAD --------
    tok = tokens_ref[...]                                   # (BS, 1) int32
    iota_v = jax.lax.broadcasted_iota(jnp.int32, (BS, V_EMB_PAD), 1)
    onehot = jnp.where(tok == iota_v, 1.0, 0.0).astype(mxu)
    x = mm(onehot, w_at(TOK_EMB_OFF, V_EMB_PAD))[:, :H]     # (BS, H) f32
    pos = fslab_ref[POS_ROW:POS_ROW + S, :H]                # (S, H)
    x = (x.reshape(B, S, H) + pos).reshape(BS, H)

    # --- cross-attention K/V for ALL layers, hoisted off the layer chain -----
    mem2d = mem_ref[...].astype(jnp.float32).reshape(B * M, H)
    kv_all = mm(mem2d, w_at(CA_KVW_OFF, H)) + f_at(CA_KVB_ROW)   # (B*M, 128)
    k_ca = [pack_heads(kv_all, l * 2 * H) for l in range(N_LAYERS)]
    v_ca = [pack_heads(kv_all, l * 2 * H + H) for l in range(N_LAYERS)]

    sa_mask = sa_mask_ref[...]                              # (nh*BS, nh*BS)
    ca_mask = ca_mask_ref[...]                              # (nh*BS, nh*B*M)

    # --- N_LAYERS post-LN decoder layers (statically unrolled) ---------------
    for l in range(N_LAYERS):
        lw = l * LW_STRIDE
        lf = F_LAYER_BASE + l * LF_STRIDE

        # 1) causal self-attention: one packed QKV projection (96 lanes used)
        qkv = mm(x, w_at(lw + SA_W_OFF, H)) + f_at(lf + SA_B_R)   # (BS, 128)
        sa = attention(pack_heads(qkv, 0), pack_heads(qkv, H),
                       pack_heads(qkv, 2 * H), sa_mask,
                       w_at(lw + SA_WO_OFF, H), f_at(lf + SA_BO_R))
        x = layer_norm(x + sa, lf + G1_R, lf + BE1_R)

        # 2) cross-attention over memory (memory_mask=None), K/V precomputed
        q = mm(x, w_at(lw + CA_QW_OFF, H)) + f_at(lf + CA_QB_R)
        ca = attention(pack_heads(q, 0), k_ca[l], v_ca[l], ca_mask,
                       w_at(lw + CA_WO_OFF, H), f_at(lf + CA_BO_R))
        x = layer_norm(x + ca, lf + G2_R, lf + BE2_R)

        # 3) feed-forward (ReLU); hidden matmul output is 128-lane dense
        hdn = jnp.maximum(mm(x, w_at(lw + W1_OFF, H)) + f_at(lf + B1_R), 0.0)
        ff = (mm(hdn, w_at(lw + W2_OFF, FF)) + f_at(lf + B2_R))[:, :H]
        x = layer_norm(x + ff, lf + G3_R, lf + BE3_R)

    # --- vocab projection: lane-dense (BS, VOCAB_PAD) slab --------------------
    logits_ref[...] = mm(x, w_at(OUT_W_OFF, H)) + f_at(OUT_B_ROW)


# ------------------------------ parameters -----------------------------------
def init_params(key):
    keys = iter(jax.random.split(key, 64))
    q_scale = 1.0 / (HEAD_DIM ** 0.5)

    def normal(shape, scale=0.02):
        return scale * jax.random.normal(next(keys), shape, dtype=jnp.float32)

    def pad_lanes(w):                          # zero-pad columns to 128 lanes
        return jnp.pad(w, ((0, 0), (0, LANES - w.shape[1])))

    # f32 slab: out_b, stacked cross-KV bias, positional table, per-layer rows
    pos_emb = jax.random.normal(next(keys), (MAX_SEQ, HIDDEN), dtype=jnp.float32)
    f_rows = [jnp.zeros((1, LANES), jnp.float32),          # OUT_B_ROW
              jnp.zeros((1, LANES), jnp.float32),          # CA_KVB_ROW (all layers)
              pad_lanes(pos_emb)]                          # POS_ROW .. +MAX_SEQ

    w_rows, kv_cols = [], []
    zeros = jnp.zeros((1, LANES), jnp.float32)
    gamma = pad_lanes(jnp.ones((1, HIDDEN), jnp.float32))
    for _ in range(N_LAYERS):
        # PyTorch stores (out,in); we store the transpose (in,out). The
        # 1/sqrt(head_dim) attention scale is folded into the Q weights (the Q
        # biases are zero here, so no bias scaling is needed).
        sa_w = normal((HIDDEN, 3 * HIDDEN))                # in_proj_weight.T
        sa_w = sa_w.at[:, :HIDDEN].multiply(q_scale)
        sa_wo = normal((HIDDEN, HIDDEN))                   # out_proj.weight.T
        ca_qw = normal((HIDDEN, HIDDEN)) * q_scale         # cross in_proj[:H].T
        ca_kw = normal((HIDDEN, HIDDEN))
        ca_vw = normal((HIDDEN, HIDDEN))
        ca_wo = normal((HIDDEN, HIDDEN))
        w1 = normal((HIDDEN, FF))                          # linear1.weight.T
        w2 = normal((FF, HIDDEN))                          # linear2.weight.T
        w_rows += [pad_lanes(sa_w), pad_lanes(sa_wo), pad_lanes(ca_qw),
                   pad_lanes(ca_wo), pad_lanes(w1), pad_lanes(w2)]
        kv_cols.append(jnp.concatenate([ca_kw, ca_vw], axis=1))   # (H, 2H)
        # biases (zeros) + LayerNorm gamma/beta, one 128-lane row each
        f_rows += [zeros, zeros, zeros, zeros, zeros, zeros,
                   gamma, zeros, gamma, zeros, gamma, zeros]

    ca_kvw_all = jnp.concatenate(kv_cols, axis=1)          # (H, N_LAYERS*2H)
    tok_emb = jax.random.normal(next(keys), (VOCAB, HIDDEN), dtype=jnp.float32)
    tok_emb_pad = jnp.zeros((V_EMB_PAD, HIDDEN), jnp.float32).at[:VOCAB].set(tok_emb)
    out_w = normal((VOCAB, HIDDEN))                        # PyTorch (out,in)
    out_w_t = jnp.zeros((HIDDEN, VOCAB_PAD), jnp.float32).at[:, :VOCAB].set(out_w.T)

    w_rows += [pad_lanes(ca_kvw_all), pad_lanes(tok_emb_pad), pad_lanes(out_w_t)]
    w_slab = jnp.concatenate(w_rows, axis=0).astype(MXU_DTYPE)
    f_slab = jnp.concatenate(f_rows, axis=0)
    assert w_slab.shape == (W_SLAB_ROWS, LANES)
    assert f_slab.shape == (F_SLAB_ROWS, LANES)
    return {'w_slab': w_slab, 'f_slab': f_slab}


# ----------------------- masks (compile-time constants) ----------------------
def _build_masks(B, S, M):
    # Row/col order of packed attention operands is (head, batch, position),
    # so the block id is simply index // positions_per_block.
    R = N_HEADS * B * S
    r = jnp.arange(R)[:, None]
    c = jnp.arange(R)[None, :]
    same = (r // S) == (c // S)
    causal = (r % S) >= (c % S)
    sa_mask = jnp.where(same & causal, 0.0, NEG_INF).astype(jnp.float32)
    Cm = N_HEADS * B * M
    cm = jnp.arange(Cm)[None, :]
    ca_mask = jnp.where((r // S) == (cm // M), 0.0, NEG_INF).astype(jnp.float32)
    return sa_mask, ca_mask


# ------------------------------ full forward ----------------------------------
def transformer_decoder_forward(params, tokens, memory):
    B, S = tokens.shape
    _, M, _ = memory.shape
    tokens2d = tokens.reshape(B * S, 1).astype(jnp.int32)
    sa_mask, ca_mask = _build_masks(B, S, M)
    args = (tokens2d, memory.astype(jnp.float32), sa_mask, ca_mask,
            params['w_slab'], params['f_slab'])
    logits_p = pl.pallas_call(
        _fused_forward_kernel,
        out_shape=jax.ShapeDtypeStruct((B * S, VOCAB_PAD), jnp.float32),
        in_specs=[pl.BlockSpec(memory_space=pltpu.MemorySpace.VMEM)] * len(args),
        out_specs=pl.BlockSpec(memory_space=pltpu.MemorySpace.VMEM),
        compiler_params=pltpu.CompilerParams(
            vmem_limit_bytes=32 * 1024 * 1024),
    )(*args)
    return logits_p.reshape(B, S, VOCAB_PAD)[:, :, :VOCAB]


# --------------------------------- main ---------------------------------------
if __name__ == "__main__":
    key = jax.random.PRNGKey(0)
    pkey, tkey, mkey = jax.random.split(key, 3)
    params = init_params(pkey)

    B, S, M = 2, 8, 8
    tokens = jax.random.randint(tkey, (B, S), 0, VOCAB, dtype=jnp.int32)
    memory = jax.random.normal(mkey, (B, M, HIDDEN), dtype=jnp.float32)

    fwd = jax.jit(transformer_decoder_forward)
    logits = fwd(params, tokens, memory)
    jax.block_until_ready(logits)

    assert logits.shape == (B, S, VOCAB), logits.shape
    assert bool(jnp.all(jnp.isfinite(logits)))
    print("KERNEL_OK")
</pallas_src>

<mosaic_0001>
module attributes {stable_mosaic.version = 11 : i64} {
  func.func @_fused_forward_kernel(%arg0: memref<16x1xi32, #tpu.memory_space<vmem>>, %arg1: memref<2x8x32xf32, #tpu.memory_space<vmem>>, %arg2: memref<64x64xf32, #tpu.memory_space<vmem>>, %arg3: memref<64x64xf32, #tpu.memory_space<vmem>>, %arg4: memref<704x128xbf16, #tpu.memory_space<vmem>>, %arg5: memref<42x128xf32, #tpu.memory_space<vmem>>, %arg6: memref<16x128xf32, #tpu.memory_space<vmem>>) attributes {dimension_semantics = [], scalar_prefetch = 0 : i64, scratch_operands = 0 : i64, tpu.core_type = #tpu.core_type<tc>} {
    %c0 = arith.constant 0 : index
    %c0_0 = arith.constant 0 : index
    %0 = vector.load %arg0[%c0, %c0_0] : memref<16x1xi32, #tpu.memory_space<vmem>>, vector<16x1xi32>
    %1 = tpu.iota {dimensions = array<i32: 1>} : vector<16x64xi32>
    %2 = vector.broadcast %0 : vector<16x1xi32> to vector<16x64xi32>
    %3 = arith.cmpi eq, %2, %1 : vector<16x64xi32>
    %cst = arith.constant 1.000000e+00 : f32
    %cst_1 = arith.constant 0.000000e+00 : f32
    %4 = vector.broadcast %cst : f32 to vector<16x64xf32>
    %5 = vector.broadcast %cst_1 : f32 to vector<16x64xf32>
    %6 = arith.select %3, %4, %5 : vector<16x64xi1>, vector<16x64xf32>
    %7 = arith.truncf %6 : vector<16x64xf32> to vector<16x64xbf16>
    %c608 = arith.constant 608 : index
    %c0_2 = arith.constant 0 : index
    %8 = vector.load %arg4[%c608, %c0_2] : memref<704x128xbf16, #tpu.memory_space<vmem>>, vector<64x128xbf16>
    %cst_3 = arith.constant dense<0.000000e+00> : vector<16x128xf32>
    %9 = tpu.matmul %7, %8, %cst_3 {dimension_numbers = #tpu.dot_dimension_numbers<[1], [0], [0], [1], [0, 0, 1, 1], [], []>} : vector<16x64xbf16>, vector<64x128xbf16>, vector<16x128xf32> -> vector<16x128xf32>
    %10 = vector.extract_strided_slice %9 {offsets = [0, 0], sizes = [16, 32], strides = [1, 1]} : vector<16x128xf32> to vector<16x32xf32>
    %c2 = arith.constant 2 : index
    %c0_4 = arith.constant 0 : index
    %11 = vector.load %arg5[%c2, %c0_4] : memref<42x128xf32, #tpu.memory_space<vmem>>, vector<8x32xf32>
    %12 = vector.shape_cast %10 : vector<16x32xf32> to vector<2x8x32xf32>
    %13 = vector.shape_cast %11 : vector<8x32xf32> to vector<1x8x32xf32>
    %14 = vector.broadcast %13 : vector<1x8x32xf32> to vector<2x8x32xf32>
    %15 = arith.addf %12, %14 : vector<2x8x32xf32>
    %16 = vector.shape_cast %15 : vector<2x8x32xf32> to vector<16x32xf32>
    %c0_5 = arith.constant 0 : index
    %c0_6 = arith.constant 0 : index
    %c0_7 = arith.constant 0 : index
    %17 = vector.load %arg1[%c0_5, %c0_6, %c0_7] : memref<2x8x32xf32, #tpu.memory_space<vmem>>, vector<2x8x32xf32>
    %18 = vector.shape_cast %17 : vector<2x8x32xf32> to vector<16x32xf32>
    %c576 = arith.constant 576 : index
    %c0_8 = arith.constant 0 : index
    %19 = vector.load %arg4[%c576, %c0_8] : memref<704x128xbf16, #tpu.memory_space<vmem>>, vector<32x128xbf16>
    %20 = arith.truncf %18 : vector<16x32xf32> to vector<16x32xbf16>
    %cst_9 = arith.constant dense<0.000000e+00> : vector<16x128xf32>
    %21 = tpu.matmul %20, %19, %cst_9 {dimension_numbers = #tpu.dot_dimension_numbers<[1], [0], [0], [1], [0, 0, 1, 1], [], []>} : vector<16x32xbf16>, vector<32x128xbf16>, vector<16x128xf32> -> vector<16x128xf32>
    %c1 = arith.constant 1 : index
    %c0_10 = arith.constant 0 : index
    %22 = vector.load %arg5[%c1, %c0_10] : memref<42x128xf32, #tpu.memory_space<vmem>>, vector<1x128xf32>
    %23 = vector.broadcast %22 : vector<1x128xf32> to vector<16x128xf32>
    %24 = arith.addf %21, %23 : vector<16x128xf32>
    %25 = vector.extract_strided_slice %24 {offsets = [0, 0], sizes = [16, 8], strides = [1, 1]} : vector<16x128xf32> to vector<16x8xf32>
    %26 = vector.extract_strided_slice %24 {offsets = [0, 8], sizes = [16, 8], strides = [1, 1]} : vector<16x128xf32> to vector<16x8xf32>
    %27 = vector.extract_strided_slice %24 {offsets = [0, 16], sizes = [16, 8], strides = [1, 1]} : vector<16x128xf32> to vector<16x8xf32>
    %28 = vector.extract_strided_slice %24 {offsets = [0, 24], sizes = [16, 8], strides = [1, 1]} : vector<16x128xf32> to vector<16x8xf32>
    %29 = tpu.concatenate %25, %26, %27, %28 in 0 : vector<16x8xf32>, vector<16x8xf32>, vector<16x8xf32>, vector<16x8xf32> -> vector<64x8xf32>
    %30 = arith.truncf %29 : vector<64x8xf32> to vector<64x8xbf16>
    %31 = vector.extract_strided_slice %24 {offsets = [0, 64], sizes = [16, 8], strides = [1, 1]} : vector<16x128xf32> to vector<16x8xf32>
    %32 = vector.extract_strided_slice %24 {offsets = [0, 72], sizes = [16, 8], strides = [1, 1]} : vector<16x128xf32> to vector<16x8xf32>
    %33 = vector.extract_strided_slice %24 {offsets = [0, 80], sizes = [16, 8], strides = [1, 1]} : vector<16x128xf32> to vector<16x8xf32>
    %34 = vector.extract_strided_slice %24 {offsets = [0, 88], sizes = [16, 8], strides = [1, 1]} : vector<16x128xf32> to vector<16x8xf32>
    %35 = tpu.concatenate %31, %32, %33, %34 in 0 : vector<16x8xf32>, vector<16x8xf32>, vector<16x8xf32>, vector<16x8xf32> -> vector<64x8xf32>
    %36 = arith.truncf %35 : vector<64x8xf32> to vector<64x8xbf16>
    %37 = vector.extract_strided_slice %24 {offsets = [0, 32], sizes = [16, 8], strides = [1, 1]} : vector<16x128xf32> to vector<16x8xf32>
    %38 = vector.extract_strided_slice %24 {offsets = [0, 40], sizes = [16, 8], strides = [1, 1]} : vector<16x128xf32> to vector<16x8xf32>
    %39 = vector.extract_strided_slice %24 {offsets = [0, 48], sizes = [16, 8], strides = [1, 1]} : vector<16x128xf32> to vector<16x8xf32>
    %40 = vector.extract_strided_slice %24 {offsets = [0, 56], sizes = [16, 8], strides = [1, 1]} : vector<16x128xf32> to vector<16x8xf32>
    %41 = tpu.concatenate %37, %38, %39, %40 in 0 : vector<16x8xf32>, vector<16x8xf32>, vector<16x8xf32>, vector<16x8xf32> -> vector<64x8xf32>
    %42 = arith.truncf %41 : vector<64x8xf32> to vector<64x8xbf16>
    %43 = vector.extract_strided_slice %24 {offsets = [0, 96], sizes = [16, 8], strides = [1, 1]} : vector<16x128xf32> to vector<16x8xf32>
    %44 = vector.extract_strided_slice %24 {offsets = [0, 104], sizes = [16, 8], strides = [1, 1]} : vector<16x128xf32> to vector<16x8xf32>
    %45 = vector.extract_strided_slice %24 {offsets = [0, 112], sizes = [16, 8], strides = [1, 1]} : vector<16x128xf32> to vector<16x8xf32>
    %46 = vector.extract_strided_slice %24 {offsets = [0, 120], sizes = [16, 8], strides = [1, 1]} : vector<16x128xf32> to vector<16x8xf32>
    %47 = tpu.concatenate %43, %44, %45, %46 in 0 : vector<16x8xf32>, vector<16x8xf32>, vector<16x8xf32>, vector<16x8xf32> -> vector<64x8xf32>
    %48 = arith.truncf %47 : vector<64x8xf32> to vector<64x8xbf16>
    %c0_11 = arith.constant 0 : index
    %c0_12 = arith.constant 0 : index
    %49 = vector.load %arg2[%c0_11, %c0_12] : memref<64x64xf32, #tpu.memory_space<vmem>>, vector<64x64xf32>
    %c0_13 = arith.constant 0 : index
    %c0_14 = arith.constant 0 : index
    %50 = vector.load %arg3[%c0_13, %c0_14] : memref<64x64xf32, #tpu.memory_space<vmem>>, vector<64x64xf32>
    %c0_15 = arith.constant 0 : index
    %c0_16 = arith.constant 0 : index
    %51 = vector.load %arg4[%c0_15, %c0_16] : memref<704x128xbf16, #tpu.memory_space<vmem>>, vector<32x128xbf16>
    %52 = arith.truncf %16 : vector<16x32xf32> to vector<16x32xbf16>
    %cst_17 = arith.constant dense<0.000000e+00> : vector<16x128xf32>
    %53 = tpu.matmul %52, %51, %cst_17 {dimension_numbers = #tpu.dot_dimension_numbers<[1], [0], [0], [1], [0, 0, 1, 1], [], []>} : vector<16x32xbf16>, vector<32x128xbf16>, vector<16x128xf32> -> vector<16x128xf32>
    %c18 = arith.constant 18 : index
    %c0_18 = arith.constant 0 : index
    %54 = vector.load %arg5[%c18, %c0_18] : memref<42x128xf32, #tpu.memory_space<vmem>>, vector<1x128xf32>
    %55 = vector.broadcast %54 : vector<1x128xf32> to vector<16x128xf32>
    %56 = arith.addf %53, %55 : vector<16x128xf32>
    %57 = vector.extract_strided_slice %56 {offsets = [0, 0], sizes = [16, 8], strides = [1, 1]} : vector<16x128xf32> to vector<16x8xf32>
    %58 = vector.extract_strided_slice %56 {offsets = [0, 8], sizes = [16, 8], strides = [1, 1]} : vector<16x128xf32> to vector<16x8xf32>
    %59 = vector.extract_strided_slice %56 {offsets = [0, 16], sizes = [16, 8], strides = [1, 1]} : vector<16x128xf32> to vector<16x8xf32>
    %60 = vector.extract_strided_slice %56 {offsets = [0, 24], sizes = [16, 8], strides = [1, 1]} : vector<16x128xf32> to vector<16x8xf32>
    %61 = tpu.concatenate %57, %58, %59, %60 in 0 : vector<16x8xf32>, vector<16x8xf32>, vector<16x8xf32>, vector<16x8xf32> -> vector<64x8xf32>
    %62 = arith.truncf %61 : vector<64x8xf32> to vector<64x8xbf16>
    %63 = vector.extract_strided_slice %56 {offsets = [0, 32], sizes = [16, 8], strides = [1, 1]} : vector<16x128xf32> to vector<16x8xf32>
    %64 = vector.extract_strided_slice %56 {offsets = [0, 40], sizes = [16, 8], strides = [1, 1]} : vector<16x128xf32> to vector<16x8xf32>
    %65 = vector.extract_strided_slice %56 {offsets = [0, 48], sizes = [16, 8], strides = [1, 1]} : vector<16x128xf32> to vector<16x8xf32>
    %66 = vector.extract_strided_slice %56 {offsets = [0, 56], sizes = [16, 8], strides = [1, 1]} : vector<16x128xf32> to vector<16x8xf32>
    %67 = tpu.concatenate %63, %64, %65, %66 in 0 : vector<16x8xf32>, vector<16x8xf32>, vector<16x8xf32>, vector<16x8xf32> -> vector<64x8xf32>
    %68 = arith.truncf %67 : vector<64x8xf32> to vector<64x8xbf16>
    %69 = vector.extract_strided_slice %56 {offsets = [0, 64], sizes = [16, 8], strides = [1, 1]} : vector<16x128xf32> to vector<16x8xf32>
    %70 = vector.extract_strided_slice %56 {offsets = [0, 72], sizes = [16, 8], strides = [1, 1]} : vector<16x128xf32> to vector<16x8xf32>
    %71 = vector.extract_strided_slice %56 {offsets = [0, 80], sizes = [16, 8], strides = [1, 1]} : vector<16x128xf32> to vector<16x8xf32>
    %72 = vector.extract_strided_slice %56 {offsets = [0, 88], sizes = [16, 8], strides = [1, 1]} : vector<16x128xf32> to vector<16x8xf32>
    %73 = tpu.concatenate %69, %70, %71, %72 in 0 : vector<16x8xf32>, vector<16x8xf32>, vector<16x8xf32>, vector<16x8xf32> -> vector<64x8xf32>
    %74 = arith.truncf %73 : vector<64x8xf32> to vector<64x8xbf16>
    %c32 = arith.constant 32 : index
    %c0_19 = arith.constant 0 : index
    %75 = vector.load %arg4[%c32, %c0_19] : memref<704x128xbf16, #tpu.memory_space<vmem>>, vector<32x128xbf16>
    %c19 = arith.constant 19 : index
    %c0_20 = arith.constant 0 : index
    %76 = vector.load %arg5[%c19, %c0_20] : memref<42x128xf32, #tpu.memory_space<vmem>>, vector<1x128xf32>
    %cst_21 = arith.constant dense<0.000000e+00> : vector<64x64xf32>
    %77 = tpu.matmul %62, %68, %cst_21 {dimension_numbers = #tpu.dot_dimension_numbers<[1], [1], [0], [0], [0, 0, 1, 0], [], []>} : vector<64x8xbf16>, vector<64x8xbf16>, vector<64x64xf32> -> vector<64x64xf32>
    %78 = arith.addf %77, %49 : vector<64x64xf32>
    %cst_22 = arith.constant dense<0xFF800000> : vector<64xf32>
    %79 = vector.multi_reduction <maximumf>, %78, %cst_22 [1] : vector<64x64xf32> to vector<64xf32>
    %80 = vector.shape_cast %79 : vector<64xf32> to vector<64x1xf32>
    %81 = vector.broadcast %80 : vector<64x1xf32> to vector<64x64xf32>
    %82 = arith.subf %78, %81 : vector<64x64xf32>
    %83 = math.exp %82 : vector<64x64xf32>
    %cst_23 = arith.constant dense<0.000000e+00> : vector<64xf32>
    %84 = vector.multi_reduction <add>, %83, %cst_23 [1] : vector<64x64xf32> to vector<64xf32>
    %85 = vector.shape_cast %84 : vector<64xf32> to vector<64x1xf32>
    %86 = tpu.reciprocal %85 {approx = true} : vector<64x1xf32> -> vector<64x1xf32>
    %87 = vector.broadcast %86 : vector<64x1xf32> to vector<64x64xf32>
    %88 = arith.mulf %83, %87 : vector<64x64xf32>
    %89 = arith.truncf %88 : vector<64x64xf32> to vector<64x64xbf16>
    %cst_24 = arith.constant dense<0.000000e+00> : vector<64x8xf32>
    %90 = tpu.matmul %89, %74, %cst_24 {dimension_numbers = #tpu.dot_dimension_numbers<[1], [0], [0], [1], [0, 0, 1, 1], [], []>} : vector<64x64xbf16>, vector<64x8xbf16>, vector<64x8xf32> -> vector<64x8xf32>
    %91 = vector.extract_strided_slice %90 {offsets = [0, 0], sizes = [16, 8], strides = [1, 1]} : vector<64x8xf32> to vector<16x8xf32>
    %92 = vector.extract_strided_slice %90 {offsets = [16, 0], sizes = [16, 8], strides = [1, 1]} : vector<64x8xf32> to vector<16x8xf32>
    %93 = vector.extract_strided_slice %90 {offsets = [32, 0], sizes = [16, 8], strides = [1, 1]} : vector<64x8xf32> to vector<16x8xf32>
    %94 = vector.extract_strided_slice %90 {offsets = [48, 0], sizes = [16, 8], strides = [1, 1]} : vector<64x8xf32> to vector<16x8xf32>
    %95 = tpu.concatenate %91, %92, %93, %94 in 1 : vector<16x8xf32>, vector<16x8xf32>, vector<16x8xf32>, vector<16x8xf32> -> vector<16x32xf32>
    %96 = arith.truncf %95 : vector<16x32xf32> to vector<16x32xbf16>
    %cst_25 = arith.constant dense<0.000000e+00> : vector<16x128xf32>
    %97 = tpu.matmul %96, %75, %cst_25 {dimension_numbers = #tpu.dot_dimension_numbers<[1], [0], [0], [1], [0, 0, 1, 1], [], []>} : vector<16x32xbf16>, vector<32x128xbf16>, vector<16x128xf32> -> vector<16x128xf32>
    %98 = vector.broadcast %76 : vector<1x128xf32> to vector<16x128xf32>
    %99 = arith.addf %97, %98 : vector<16x128xf32>
    %100 = vector.extract_strided_slice %99 {offsets = [0, 0], sizes = [16, 32], strides = [1, 1]} : vector<16x128xf32> to vector<16x32xf32>
    %101 = arith.addf %16, %100 : vector<16x32xf32>
    %c24 = arith.constant 24 : index
    %c0_26 = arith.constant 0 : index
    %102 = vector.load %arg5[%c24, %c0_26] : memref<42x128xf32, #tpu.memory_space<vmem>>, vector<1x32xf32>
    %c25 = arith.constant 25 : index
    %c0_27 = arith.constant 0 : index
    %103 = vector.load %arg5[%c25, %c0_27] : memref<42x128xf32, #tpu.memory_space<vmem>>, vector<1x32xf32>
    %cst_28 = arith.constant dense<0.000000e+00> : vector<16xf32>
    %104 = vector.multi_reduction <add>, %101, %cst_28 [1] : vector<16x32xf32> to vector<16xf32>
    %105 = vector.shape_cast %104 : vector<16xf32> to vector<16x1xf32>
    %cst_29 = arith.constant 3.200000e+01 : f32
    %106 = vector.broadcast %cst_29 : f32 to vector<16x1xf32>
    %107 = arith.divf %105, %106 : vector<16x1xf32>
    %108 = vector.broadcast %107 : vector<16x1xf32> to vector<16x32xf32>
    %109 = arith.subf %101, %108 : vector<16x32xf32>
    %110 = arith.mulf %109, %109 : vector<16x32xf32>
    %cst_30 = arith.constant dense<0.000000e+00> : vector<16xf32>
    %111 = vector.multi_reduction <add>, %110, %cst_30 [1] : vector<16x32xf32> to vector<16xf32>
    %112 = vector.shape_cast %111 : vector<16xf32> to vector<16x1xf32>
    %cst_31 = arith.constant 3.200000e+01 : f32
    %113 = vector.broadcast %cst_31 : f32 to vector<16x1xf32>
    %114 = arith.divf %112, %113 : vector<16x1xf32>
    %115 = vector.broadcast %107 : vector<16x1xf32> to vector<16x32xf32>
    %116 = arith.subf %101, %115 : vector<16x32xf32>
    %cst_32 = arith.constant 9.99999974E-6 : f32
    %117 = vector.broadcast %cst_32 : f32 to vector<16x1xf32>
    %118 = arith.addf %114, %117 : vector<16x1xf32>
    %119 = math.rsqrt %118 : vector<16x1xf32>
    %120 = vector.broadcast %119 : vector<16x1xf32> to vector<16x32xf32>
    %121 = arith.mulf %116, %120 : vector<16x32xf32>
    %122 = vector.broadcast %102 : vector<1x32xf32> to vector<16x32xf32>
    %123 = arith.mulf %121, %122 : vector<16x32xf32>
    %124 = vector.broadcast %103 : vector<1x32xf32> to vector<16x32xf32>
    %125 = arith.addf %123, %124 : vector<16x32xf32>
    %c64 = arith.constant 64 : index
    %c0_33 = arith.constant 0 : index
    %126 = vector.load %arg4[%c64, %c0_33] : memref<704x128xbf16, #tpu.memory_space<vmem>>, vector<32x128xbf16>
    %127 = arith.truncf %125 : vector<16x32xf32> to vector<16x32xbf16>
    %cst_34 = arith.constant dense<0.000000e+00> : vector<16x128xf32>
    %128 = tpu.matmul %127, %126, %cst_34 {dimension_numbers = #tpu.dot_dimension_numbers<[1], [0], [0], [1], [0, 0, 1, 1], [], []>} : vector<16x32xbf16>, vector<32x128xbf16>, vector<16x128xf32> -> vector<16x128xf32>
    %c20 = arith.constant 20 : index
    %c0_35 = arith.constant 0 : index
    %129 = vector.load %arg5[%c20, %c0_35] : memref<42x128xf32, #tpu.memory_space<vmem>>, vector<1x128xf32>
    %130 = vector.broadcast %129 : vector<1x128xf32> to vector<16x128xf32>
    %131 = arith.addf %128, %130 : vector<16x128xf32>
    %132 = vector.extract_strided_slice %131 {offsets = [0, 0], sizes = [16, 8], strides = [1, 1]} : vector<16x128xf32> to vector<16x8xf32>
    %133 = vector.extract_strided_slice %131 {offsets = [0, 8], sizes = [16, 8], strides = [1, 1]} : vector<16x128xf32> to vector<16x8xf32>
    %134 = vector.extract_strided_slice %131 {offsets = [0, 16], sizes = [16, 8], strides = [1, 1]} : vector<16x128xf32> to vector<16x8xf32>
    %135 = vector.extract_strided_slice %131 {offsets = [0, 24], sizes = [16, 8], strides = [1, 1]} : vector<16x128xf32> to vector<16x8xf32>
    %136 = tpu.concatenate %132, %133, %134, %135 in 0 : vector<16x8xf32>, vector<16x8xf32>, vector<16x8xf32>, vector<16x8xf32> -> vector<64x8xf32>
    %137 = arith.truncf %136 : vector<64x8xf32> to vector<64x8xbf16>
    %c96 = arith.constant 96 : index
    %c0_36 = arith.constant 0 : index
    %138 = vector.load %arg4[%c96, %c0_36] : memref<704x128xbf16, #tpu.memory_space<vmem>>, vector<32x128xbf16>
    %c21 = arith.constant 21 : index
    %c0_37 = arith.constant 0 : index
    %139 = vector.load %arg5[%c21, %c0_37] : memref<42x128xf32, #tpu.memory_space<vmem>>, vector<1x128xf32>
    %cst_38 = arith.constant dense<0.000000e+00> : vector<64x64xf32>
    %140 = tpu.matmul %137, %30, %cst_38 {dimension_numbers = #tpu.dot_dimension_numbers<[1], [1], [0], [0], [0, 0, 1, 0], [], []>} : vector<64x8xbf16>, vector<64x8xbf16>, vector<64x64xf32> -> vector<64x64xf32>
    %141 = arith.addf %140, %50 : vector<64x64xf32>
    %cst_39 = arith.constant dense<0xFF800000> : vector<64xf32>
    %142 = vector.multi_reduction <maximumf>, %141, %cst_39 [1] : vector<64x64xf32> to vector<64xf32>
    %143 = vector.shape_cast %142 : vector<64xf32> to vector<64x1xf32>
    %144 = vector.broadcast %143 : vector<64x1xf32> to vector<64x64xf32>
    %145 = arith.subf %141, %144 : vector<64x64xf32>
    %146 = math.exp %145 : vector<64x64xf32>
    %cst_40 = arith.constant dense<0.000000e+00> : vector<64xf32>
    %147 = vector.multi_reduction <add>, %146, %cst_40 [1] : vector<64x64xf32> to vector<64xf32>
    %148 = vector.shape_cast %147 : vector<64xf32> to vector<64x1xf32>
    %149 = tpu.reciprocal %148 {approx = true} : vector<64x1xf32> -> vector<64x1xf32>
    %150 = vector.broadcast %149 : vector<64x1xf32> to vector<64x64xf32>
    %151 = arith.mulf %146, %150 : vector<64x64xf32>
    %152 = arith.truncf %151 : vector<64x64xf32> to vector<64x64xbf16>
    %cst_41 = arith.constant dense<0.000000e+00> : vector<64x8xf32>
    %153 = tpu.matmul %152, %42, %cst_41 {dimension_numbers = #tpu.dot_dimension_numbers<[1], [0], [0], [1], [0, 0, 1, 1], [], []>} : vector<64x64xbf16>, vector<64x8xbf16>, vector<64x8xf32> -> vector<64x8xf32>
    %154 = vector.extract_strided_slice %153 {offsets = [0, 0], sizes = [16, 8], strides = [1, 1]} : vector<64x8xf32> to vector<16x8xf32>
    %155 = vector.extract_strided_slice %153 {offsets = [16, 0], sizes = [16, 8], strides = [1, 1]} : vector<64x8xf32> to vector<16x8xf32>
    %156 = vector.extract_strided_slice %153 {offsets = [32, 0], sizes = [16, 8], strides = [1, 1]} : vector<64x8xf32> to vector<16x8xf32>
    %157 = vector.extract_strided_slice %153 {offsets = [48, 0], sizes = [16, 8], strides = [1, 1]} : vector<64x8xf32> to vector<16x8xf32>
    %158 = tpu.concatenate %154, %155, %156, %157 in 1 : vector<16x8xf32>, vector<16x8xf32>, vector<16x8xf32>, vector<16x8xf32> -> vector<16x32xf32>
    %159 = arith.truncf %158 : vector<16x32xf32> to vector<16x32xbf16>
    %cst_42 = arith.constant dense<0.000000e+00> : vector<16x128xf32>
    %160 = tpu.matmul %159, %138, %cst_42 {dimension_numbers = #tpu.dot_dimension_numbers<[1], [0], [0], [1], [0, 0, 1, 1], [], []>} : vector<16x32xbf16>, vector<32x128xbf16>, vector<16x128xf32> -> vector<16x128xf32>
    %161 = vector.broadcast %139 : vector<1x128xf32> to vector<16x128xf32>
    %162 = arith.addf %160, %161 : vector<16x128xf32>
    %163 = vector.extract_strided_slice %162 {offsets = [0, 0], sizes = [16, 32], strides = [1, 1]} : vector<16x128xf32> to vector<16x32xf32>
    %164 = arith.addf %125, %163 : vector<16x32xf32>
    %c26 = arith.constant 26 : index
    %c0_43 = arith.constant 0 : index
    %165 = vector.load %arg5[%c26, %c0_43] : memref<42x128xf32, #tpu.memory_space<vmem>>, vector<1x32xf32>
    %c27 = arith.constant 27 : index
    %c0_44 = arith.constant 0 : index
    %166 = vector.load %arg5[%c27, %c0_44] : memref<42x128xf32, #tpu.memory_space<vmem>>, vector<1x32xf32>
    %cst_45 = arith.constant dense<0.000000e+00> : vector<16xf32>
    %167 = vector.multi_reduction <add>, %164, %cst_45 [1] : vector<16x32xf32> to vector<16xf32>
    %168 = vector.shape_cast %167 : vector<16xf32> to vector<16x1xf32>
    %cst_46 = arith.constant 3.200000e+01 : f32
    %169 = vector.broadcast %cst_46 : f32 to vector<16x1xf32>
    %170 = arith.divf %168, %169 : vector<16x1xf32>
    %171 = vector.broadcast %170 : vector<16x1xf32> to vector<16x32xf32>
    %172 = arith.subf %164, %171 : vector<16x32xf32>
    %173 = arith.mulf %172, %172 : vector<16x32xf32>
    %cst_47 = arith.constant dense<0.000000e+00> : vector<16xf32>
    %174 = vector.multi_reduction <add>, %173, %cst_47 [1] : vector<16x32xf32> to vector<16xf32>
    %175 = vector.shape_cast %174 : vector<16xf32> to vector<16x1xf32>
    %cst_48 = arith.constant 3.200000e+01 : f32
    %176 = vector.broadcast %cst_48 : f32 to vector<16x1xf32>
    %177 = arith.divf %175, %176 : vector<16x1xf32>
    %178 = vector.broadcast %170 : vector<16x1xf32> to vector<16x32xf32>
    %179 = arith.subf %164, %178 : vector<16x32xf32>
    %cst_49 = arith.constant 9.99999974E-6 : f32
    %180 = vector.broadcast %cst_49 : f32 to vector<16x1xf32>
    %181 = arith.addf %177, %180 : vector<16x1xf32>
    %182 = math.rsqrt %181 : vector<16x1xf32>
    %183 = vector.broadcast %182 : vector<16x1xf32> to vector<16x32xf32>
    %184 = arith.mulf %179, %183 : vector<16x32xf32>
    %185 = vector.broadcast %165 : vector<1x32xf32> to vector<16x32xf32>
    %186 = arith.mulf %184, %185 : vector<16x32xf32>
    %187 = vector.broadcast %166 : vector<1x32xf32> to vector<16x32xf32>
    %188 = arith.addf %186, %187 : vector<16x32xf32>
    %c128 = arith.constant 128 : index
    %c0_50 = arith.constant 0 : index
    %189 = vector.load %arg4[%c128, %c0_50] : memref<704x128xbf16, #tpu.memory_space<vmem>>, vector<32x128xbf16>
    %190 = arith.truncf %188 : vector<16x32xf32> to vector<16x32xbf16>
    %cst_51 = arith.constant dense<0.000000e+00> : vector<16x128xf32>
    %191 = tpu.matmul %190, %189, %cst_51 {dimension_numbers = #tpu.dot_dimension_numbers<[1], [0], [0], [1], [0, 0, 1, 1], [], []>} : vector<16x32xbf16>, vector<32x128xbf16>, vector<16x128xf32> -> vector<16x128xf32>
    %c22 = arith.constant 22 : index
    %c0_52 = arith.constant 0 : index
    %192 = vector.load %arg5[%c22, %c0_52] : memref<42x128xf32, #tpu.memory_space<vmem>>, vector<1x128xf32>
    %193 = vector.broadcast %192 : vector<1x128xf32> to vector<16x128xf32>
    %194 = arith.addf %191, %193 : vector<16x128xf32>
    %cst_53 = arith.constant 0.000000e+00 : f32
    %195 = vector.broadcast %cst_53 : f32 to vector<16x128xf32>
    %196 = arith.maximumf %194, %195 : vector<16x128xf32>
    %c160 = arith.constant 160 : index
    %c0_54 = arith.constant 0 : index
    %197 = vector.load %arg4[%c160, %c0_54] : memref<704x128xbf16, #tpu.memory_space<vmem>>, vector<128x128xbf16>
    %198 = arith.truncf %196 : vector<16x128xf32> to vector<16x128xbf16>
    %cst_55 = arith.constant dense<0.000000e+00> : vector<16x128xf32>
    %199 = tpu.matmul %198, %197, %cst_55 {dimension_numbers = #tpu.dot_dimension_numbers<[1], [0], [0], [1], [0, 0, 1, 1], [], []>} : vector<16x128xbf16>, vector<128x128xbf16>, vector<16x128xf32> -> vector<16x128xf32>
    %c23 = arith.constant 23 : index
    %c0_56 = arith.constant 0 : index
    %200 = vector.load %arg5[%c23, %c0_56] : memref<42x128xf32, #tpu.memory_space<vmem>>, vector<1x128xf32>
    %201 = vector.broadcast %200 : vector<1x128xf32> to vector<16x128xf32>
    %202 = arith.addf %199, %201 : vector<16x128xf32>
    %203 = vector.extract_strided_slice %202 {offsets = [0, 0], sizes = [16, 32], strides = [1, 1]} : vector<16x128xf32> to vector<16x32xf32>
    %204 = arith.addf %188, %203 : vector<16x32xf32>
    %c28 = arith.constant 28 : index
    %c0_57 = arith.constant 0 : index
    %205 = vector.load %arg5[%c28, %c0_57] : memref<42x128xf32, #tpu.memory_space<vmem>>, vector<1x32xf32>
    %c29 = arith.constant 29 : index
    %c0_58 = arith.constant 0 : index
    %206 = vector.load %arg5[%c29, %c0_58] : memref<42x128xf32, #tpu.memory_space<vmem>>, vector<1x32xf32>
    %cst_59 = arith.constant dense<0.000000e+00> : vector<16xf32>
    %207 = vector.multi_reduction <add>, %204, %cst_59 [1] : vector<16x32xf32> to vector<16xf32>
    %208 = vector.shape_cast %207 : vector<16xf32> to vector<16x1xf32>
    %cst_60 = arith.constant 3.200000e+01 : f32
    %209 = vector.broadcast %cst_60 : f32 to vector<16x1xf32>
    %210 = arith.divf %208, %209 : vector<16x1xf32>
    %211 = vector.broadcast %210 : vector<16x1xf32> to vector<16x32xf32>
    %212 = arith.subf %204, %211 : vector<16x32xf32>
    %213 = arith.mulf %212, %212 : vector<16x32xf32>
    %cst_61 = arith.constant dense<0.000000e+00> : vector<16xf32>
    %214 = vector.multi_reduction <add>, %213, %cst_61 [1] : vector<16x32xf32> to vector<16xf32>
    %215 = vector.shape_cast %214 : vector<16xf32> to vector<16x1xf32>
    %cst_62 = arith.constant 3.200000e+01 : f32
    %216 = vector.broadcast %cst_62 : f32 to vector<16x1xf32>
    %217 = arith.divf %215, %216 : vector<16x1xf32>
    %218 = vector.broadcast %210 : vector<16x1xf32> to vector<16x32xf32>
    %219 = arith.subf %204, %218 : vector<16x32xf32>
    %cst_63 = arith.constant 9.99999974E-6 : f32
    %220 = vector.broadcast %cst_63 : f32 to vector<16x1xf32>
    %221 = arith.addf %217, %220 : vector<16x1xf32>
    %222 = math.rsqrt %221 : vector<16x1xf32>
    %223 = vector.broadcast %222 : vector<16x1xf32> to vector<16x32xf32>
    %224 = arith.mulf %219, %223 : vector<16x32xf32>
    %225 = vector.broadcast %205 : vector<1x32xf32> to vector<16x32xf32>
    %226 = arith.mulf %224, %225 : vector<16x32xf32>
    %227 = vector.broadcast %206 : vector<1x32xf32> to vector<16x32xf32>
    %228 = arith.addf %226, %227 : vector<16x32xf32>
    %c288 = arith.constant 288 : index
    %c0_64 = arith.constant 0 : index
    %229 = vector.load %arg4[%c288, %c0_64] : memref<704x128xbf16, #tpu.memory_space<vmem>>, vector<32x128xbf16>
    %230 = arith.truncf %228 : vector<16x32xf32> to vector<16x32xbf16>
    %cst_65 = arith.constant dense<0.000000e+00> : vector<16x128xf32>
    %231 = tpu.matmul %230, %229, %cst_65 {dimension_numbers = #tpu.dot_dimension_numbers<[1], [0], [0], [1], [0, 0, 1, 1], [], []>} : vector<16x32xbf16>, vector<32x128xbf16>, vector<16x128xf32> -> vector<16x128xf32>
    %c30 = arith.constant 30 : index
    %c0_66 = arith.constant 0 : index
    %232 = vector.load %arg5[%c30, %c0_66] : memref<42x128xf32, #tpu.memory_space<vmem>>, vector<1x128xf32>
    %233 = vector.broadcast %232 : vector<1x128xf32> to vector<16x128xf32>
    %234 = arith.addf %231, %233 : vector<16x128xf32>
    %235 = vector.extract_strided_slice %234 {offsets = [0, 0], sizes = [16, 8], strides = [1, 1]} : vector<16x128xf32> to vector<16x8xf32>
    %236 = vector.extract_strided_slice %234 {offsets = [0, 8], sizes = [16, 8], strides = [1, 1]} : vector<16x128xf32> to vector<16x8xf32>
    %237 = vector.extract_strided_slice %234 {offsets = [0, 16], sizes = [16, 8], strides = [1, 1]} : vector<16x128xf32> to vector<16x8xf32>
    %238 = vector.extract_strided_slice %234 {offsets = [0, 24], sizes = [16, 8], strides = [1, 1]} : vector<16x128xf32> to vector<16x8xf32>
    %239 = tpu.concatenate %235, %236, %237, %238 in 0 : vector<16x8xf32>, vector<16x8xf32>, vector<16x8xf32>, vector<16x8xf32> -> vector<64x8xf32>
    %240 = arith.truncf %239 : vector<64x8xf32> to vector<64x8xbf16>
    %241 = vector.extract_strided_slice %234 {offsets = [0, 32], sizes = [16, 8], strides = [1, 1]} : vector<16x128xf32> to vector<16x8xf32>
    %242 = vector.extract_strided_slice %234 {offsets = [0, 40], sizes = [16, 8], strides = [1, 1]} : vector<16x128xf32> to vector<16x8xf32>
    %243 = vector.extract_strided_slice %234 {offsets = [0, 48], sizes = [16, 8], strides = [1, 1]} : vector<16x128xf32> to vector<16x8xf32>
    %244 = vector.extract_strided_slice %234 {offsets = [0, 56], sizes = [16, 8], strides = [1, 1]} : vector<16x128xf32> to vector<16x8xf32>
    %245 = tpu.concatenate %241, %242, %243, %244 in 0 : vector<16x8xf32>, vector<16x8xf32>, vector<16x8xf32>, vector<16x8xf32> -> vector<64x8xf32>
    %246 = arith.truncf %245 : vector<64x8xf32> to vector<64x8xbf16>
    %247 = vector.extract_strided_slice %234 {offsets = [0, 64], sizes = [16, 8], strides = [1, 1]} : vector<16x128xf32> to vector<16x8xf32>
    %248 = vector.extract_strided_slice %234 {offsets = [0, 72], sizes = [16, 8], strides = [1, 1]} : vector<16x128xf32> to vector<16x8xf32>
    %249 = vector.extract_strided_slice %234 {offsets = [0, 80], sizes = [16, 8], strides = [1, 1]} : vector<16x128xf32> to vector<16x8xf32>
    %250 = vector.extract_strided_slice %234 {offsets = [0, 88], sizes = [16, 8], strides = [1, 1]} : vector<16x128xf32> to vector<16x8xf32>
    %251 = tpu.concatenate %247, %248, %249, %250 in 0 : vector<16x8xf32>, vector<16x8xf32>, vector<16x8xf32>, vector<16x8xf32> -> vector<64x8xf32>
    %252 = arith.truncf %251 : vector<64x8xf32> to vector<64x8xbf16>
    %c320 = arith.constant 320 : index
    %c0_67 = arith.constant 0 : index
    %253 = vector.load %arg4[%c320, %c0_67] : memref<704x128xbf16, #tpu.memory_space<vmem>>, vector<32x128xbf16>
    %c31 = arith.constant 31 : index
    %c0_68 = arith.constant 0 : index
    %254 = vector.load %arg5[%c31, %c0_68] : memref<42x128xf32, #tpu.memory_space<vmem>>, vector<1x128xf32>
    %cst_69 = arith.constant dense<0.000000e+00> : vector<64x64xf32>
    %255 = tpu.matmul %240, %246, %cst_69 {dimension_numbers = #tpu.dot_dimension_numbers<[1], [1], [0], [0], [0, 0, 1, 0], [], []>} : vector<64x8xbf16>, vector<64x8xbf16>, vector<64x64xf32> -> vector<64x64xf32>
    %256 = arith.addf %255, %49 : vector<64x64xf32>
    %cst_70 = arith.constant dense<0xFF800000> : vector<64xf32>
    %257 = vector.multi_reduction <maximumf>, %256, %cst_70 [1] : vector<64x64xf32> to vector<64xf32>
    %258 = vector.shape_cast %257 : vector<64xf32> to vector<64x1xf32>
    %259 = vector.broadcast %258 : vector<64x1xf32> to vector<64x64xf32>
    %260 = arith.subf %256, %259 : vector<64x64xf32>
    %261 = math.exp %260 : vector<64x64xf32>
    %cst_71 = arith.constant dense<0.000000e+00> : vector<64xf32>
    %262 = vector.multi_reduction <add>, %261, %cst_71 [1] : vector<64x64xf32> to vector<64xf32>
    %263 = vector.shape_cast %262 : vector<64xf32> to vector<64x1xf32>
    %264 = tpu.reciprocal %263 {approx = true} : vector<64x1xf32> -> vector<64x1xf32>
    %265 = vector.broadcast %264 : vector<64x1xf32> to vector<64x64xf32>
    %266 = arith.mulf %261, %265 : vector<64x64xf32>
    %267 = arith.truncf %266 : vector<64x64xf32> to vector<64x64xbf16>
    %cst_72 = arith.constant dense<0.000000e+00> : vector<64x8xf32>
    %268 = tpu.matmul %267, %252, %cst_72 {dimension_numbers = #tpu.dot_dimension_numbers<[1], [0], [0], [1], [0, 0, 1, 1], [], []>} : vector<64x64xbf16>, vector<64x8xbf16>, vector<64x8xf32> -> vector<64x8xf32>
    %269 = vector.extract_strided_slice %268 {offsets = [0, 0], sizes = [16, 8], strides = [1, 1]} : vector<64x8xf32> to vector<16x8xf32>
    %270 = vector.extract_strided_slice %268 {offsets = [16, 0], sizes = [16, 8], strides = [1, 1]} : vector<64x8xf32> to vector<16x8xf32>
    %271 = vector.extract_strided_slice %268 {offsets = [32, 0], sizes = [16, 8], strides = [1, 1]} : vector<64x8xf32> to vector<16x8xf32>
    %272 = vector.extract_strided_slice %268 {offsets = [48, 0], sizes = [16, 8], strides = [1, 1]} : vector<64x8xf32> to vector<16x8xf32>
    %273 = tpu.concatenate %269, %270, %271, %272 in 1 : vector<16x8xf32>, vector<16x8xf32>, vector<16x8xf32>, vector<16x8xf32> -> vector<16x32xf32>
    %274 = arith.truncf %273 : vector<16x32xf32> to vector<16x32xbf16>
    %cst_73 = arith.constant dense<0.000000e+00> : vector<16x128xf32>
    %275 = tpu.matmul %274, %253, %cst_73 {dimension_numbers = #tpu.dot_dimension_numbers<[1], [0], [0], [1], [0, 0, 1, 1], [], []>} : vector<16x32xbf16>, vector<32x128xbf16>, vector<16x128xf32> -> vector<16x128xf32>
    %276 = vector.broadcast %254 : vector<1x128xf32> to vector<16x128xf32>
    %277 = arith.addf %275, %276 : vector<16x128xf32>
    %278 = vector.extract_strided_slice %277 {offsets = [0, 0], sizes = [16, 32], strides = [1, 1]} : vector<16x128xf32> to vector<16x32xf32>
    %279 = arith.addf %228, %278 : vector<16x32xf32>
    %c36 = arith.constant 36 : index
    %c0_74 = arith.constant 0 : index
    %280 = vector.load %arg5[%c36, %c0_74] : memref<42x128xf32, #tpu.memory_space<vmem>>, vector<1x32xf32>
    %c37 = arith.constant 37 : index
    %c0_75 = arith.constant 0 : index
    %281 = vector.load %arg5[%c37, %c0_75] : memref<42x128xf32, #tpu.memory_space<vmem>>, vector<1x32xf32>
    %cst_76 = arith.constant dense<0.000000e+00> : vector<16xf32>
    %282 = vector.multi_reduction <add>, %279, %cst_76 [1] : vector<16x32xf32> to vector<16xf32>
    %283 = vector.shape_cast %282 : vector<16xf32> to vector<16x1xf32>
    %cst_77 = arith.constant 3.200000e+01 : f32
    %284 = vector.broadcast %cst_77 : f32 to vector<16x1xf32>
    %285 = arith.divf %283, %284 : vector<16x1xf32>
    %286 = vector.broadcast %285 : vector<16x1xf32> to vector<16x32xf32>
    %287 = arith.subf %279, %286 : vector<16x32xf32>
    %288 = arith.mulf %287, %287 : vector<16x32xf32>
    %cst_78 = arith.constant dense<0.000000e+00> : vector<16xf32>
    %289 = vector.multi_reduction <add>, %288, %cst_78 [1] : vector<16x32xf32> to vector<16xf32>
    %290 = vector.shape_cast %289 : vector<16xf32> to vector<16x1xf32>
    %cst_79 = arith.constant 3.200000e+01 : f32
    %291 = vector.broadcast %cst_79 : f32 to vector<16x1xf32>
    %292 = arith.divf %290, %291 : vector<16x1xf32>
    %293 = vector.broadcast %285 : vector<16x1xf32> to vector<16x32xf32>
    %294 = arith.subf %279, %293 : vector<16x32xf32>
    %cst_80 = arith.constant 9.99999974E-6 : f32
    %295 = vector.broadcast %cst_80 : f32 to vector<16x1xf32>
    %296 = arith.addf %292, %295 : vector<16x1xf32>
    %297 = math.rsqrt %296 : vector<16x1xf32>
    %298 = vector.broadcast %297 : vector<16x1xf32> to vector<16x32xf32>
    %299 = arith.mulf %294, %298 : vector<16x32xf32>
    %300 = vector.broadcast %280 : vector<1x32xf32> to vector<16x32xf32>
    %301 = arith.mulf %299, %300 : vector<16x32xf32>
    %302 = vector.broadcast %281 : vector<1x32xf32> to vector<16x32xf32>
    %303 = arith.addf %301, %302 : vector<16x32xf32>
    %c352 = arith.constant 352 : index
    %c0_81 = arith.constant 0 : index
    %304 = vector.load %arg4[%c352, %c0_81] : memref<704x128xbf16, #tpu.memory_space<vmem>>, vector<32x128xbf16>
    %305 = arith.truncf %303 : vector<16x32xf32> to vector<16x32xbf16>
    %cst_82 = arith.constant dense<0.000000e+00> : vector<16x128xf32>
    %306 = tpu.matmul %305, %304, %cst_82 {dimension_numbers = #tpu.dot_dimension_numbers<[1], [0], [0], [1], [0, 0, 1, 1], [], []>} : vector<16x32xbf16>, vector<32x128xbf16>, vector<16x128xf32> -> vector<16x128xf32>
    %c32_83 = arith.constant 32 : index
    %c0_84 = arith.constant 0 : index
    %307 = vector.load %arg5[%c32_83, %c0_84] : memref<42x128xf32, #tpu.memory_space<vmem>>, vector<1x128xf32>
    %308 = vector.broadcast %307 : vector<1x128xf32> to vector<16x128xf32>
    %309 = arith.addf %306, %308 : vector<16x128xf32>
    %310 = vector.extract_strided_slice %309 {offsets = [0, 0], sizes = [16, 8], strides = [1, 1]} : vector<16x128xf32> to vector<16x8xf32>
    %311 = vector.extract_strided_slice %309 {offsets = [0, 8], sizes = [16, 8], strides = [1, 1]} : vector<16x128xf32> to vector<16x8xf32>
    %312 = vector.extract_strided_slice %309 {offsets = [0, 16], sizes = [16, 8], strides = [1, 1]} : vector<16x128xf32> to vector<16x8xf32>
    %313 = vector.extract_strided_slice %309 {offsets = [0, 24], sizes = [16, 8], strides = [1, 1]} : vector<16x128xf32> to vector<16x8xf32>
    %314 = tpu.concatenate %310, %311, %312, %313 in 0 : vector<16x8xf32>, vector<16x8xf32>, vector<16x8xf32>, vector<16x8xf32> -> vector<64x8xf32>
    %315 = arith.truncf %314 : vector<64x8xf32> to vector<64x8xbf16>
    %c384 = arith.constant 384 : index
    %c0_85 = arith.constant 0 : index
    %316 = vector.load %arg4[%c384, %c0_85] : memref<704x128xbf16, #tpu.memory_space<vmem>>, vector<32x128xbf16>
    %c33 = arith.constant 33 : index
    %c0_86 = arith.constant 0 : index
    %317 = vector.load %arg5[%c33, %c0_86] : memref<42x128xf32, #tpu.memory_space<vmem>>, vector<1x128xf32>
    %cst_87 = arith.constant dense<0.000000e+00> : vector<64x64xf32>
    %318 = tpu.matmul %315, %36, %cst_87 {dimension_numbers = #tpu.dot_dimension_numbers<[1], [1], [0], [0], [0, 0, 1, 0], [], []>} : vector<64x8xbf16>, vector<64x8xbf16>, vector<64x64xf32> -> vector<64x64xf32>
    %319 = arith.addf %318, %50 : vector<64x64xf32>
    %cst_88 = arith.constant dense<0xFF800000> : vector<64xf32>
    %320 = vector.multi_reduction <maximumf>, %319, %cst_88 [1] : vector<64x64xf32> to vector<64xf32>
    %321 = vector.shape_cast %320 : vector<64xf32> to vector<64x1xf32>
    %322 = vector.broadcast %321 : vector<64x1xf32> to vector<64x64xf32>
    %323 = arith.subf %319, %322 : vector<64x64xf32>
    %324 = math.exp %323 : vector<64x64xf32>
    %cst_89 = arith.constant dense<0.000000e+00> : vector<64xf32>
    %325 = vector.multi_reduction <add>, %324, %cst_89 [1] : vector<64x64xf32> to vector<64xf32>
    %326 = vector.shape_cast %325 : vector<64xf32> to vector<64x1xf32>
    %327 = tpu.reciprocal %326 {approx = true} : vector<64x1xf32> -> vector<64x1xf32>
    %328 = vector.broadcast %327 : vector<64x1xf32> to vector<64x64xf32>
    %329 = arith.mulf %324, %328 : vector<64x64xf32>
    %330 = arith.truncf %329 : vector<64x64xf32> to vector<64x64xbf16>
    %cst_90 = arith.constant dense<0.000000e+00> : vector<64x8xf32>
    %331 = tpu.matmul %330, %48, %cst_90 {dimension_numbers = #tpu.dot_dimension_numbers<[1], [0], [0], [1], [0, 0, 1, 1], [], []>} : vector<64x64xbf16>, vector<64x8xbf16>, vector<64x8xf32> -> vector<64x8xf32>
    %332 = vector.extract_strided_slice %331 {offsets = [0, 0], sizes = [16, 8], strides = [1, 1]} : vector<64x8xf32> to vector<16x8xf32>
    %333 = vector.extract_strided_slice %331 {offsets = [16, 0], sizes = [16, 8], strides = [1, 1]} : vector<64x8xf32> to vector<16x8xf32>
    %334 = vector.extract_strided_slice %331 {offsets = [32, 0], sizes = [16, 8], strides = [1, 1]} : vector<64x8xf32> to vector<16x8xf32>
    %335 = vector.extract_strided_slice %331 {offsets = [48, 0], sizes = [16, 8], strides = [1, 1]} : vector<64x8xf32> to vector<16x8xf32>
    %336 = tpu.concatenate %332, %333, %334, %335 in 1 : vector<16x8xf32>, vector<16x8xf32>, vector<16x8xf32>, vector<16x8xf32> -> vector<16x32xf32>
    %337 = arith.truncf %336 : vector<16x32xf32> to vector<16x32xbf16>
    %cst_91 = arith.constant dense<0.000000e+00> : vector<16x128xf32>
    %338 = tpu.matmul %337, %316, %cst_91 {dimension_numbers = #tpu.dot_dimension_numbers<[1], [0], [0], [1], [0, 0, 1, 1], [], []>} : vector<16x32xbf16>, vector<32x128xbf16>, vector<16x128xf32> -> vector<16x128xf32>
    %339 = vector.broadcast %317 : vector<1x128xf32> to vector<16x128xf32>
    %340 = arith.addf %338, %339 : vector<16x128xf32>
    %341 = vector.extract_strided_slice %340 {offsets = [0, 0], sizes = [16, 32], strides = [1, 1]} : vector<16x128xf32> to vector<16x32xf32>
    %342 = arith.addf %303, %341 : vector<16x32xf32>
    %c38 = arith.constant 38 : index
    %c0_92 = arith.constant 0 : index
    %343 = vector.load %arg5[%c38, %c0_92] : memref<42x128xf32, #tpu.memory_space<vmem>>, vector<1x32xf32>
    %c39 = arith.constant 39 : index
    %c0_93 = arith.constant 0 : index
    %344 = vector.load %arg5[%c39, %c0_93] : memref<42x128xf32, #tpu.memory_space<vmem>>, vector<1x32xf32>
    %cst_94 = arith.constant dense<0.000000e+00> : vector<16xf32>
    %345 = vector.multi_reduction <add>, %342, %cst_94 [1] : vector<16x32xf32> to vector<16xf32>
    %346 = vector.shape_cast %345 : vector<16xf32> to vector<16x1xf32>
    %cst_95 = arith.constant 3.200000e+01 : f32
    %347 = vector.broadcast %cst_95 : f32 to vector<16x1xf32>
    %348 = arith.divf %346, %347 : vector<16x1xf32>
    %349 = vector.broadcast %348 : vector<16x1xf32> to vector<16x32xf32>
    %350 = arith.subf %342, %349 : vector<16x32xf32>
    %351 = arith.mulf %350, %350 : vector<16x32xf32>
    %cst_96 = arith.constant dense<0.000000e+00> : vector<16xf32>
    %352 = vector.multi_reduction <add>, %351, %cst_96 [1] : vector<16x32xf32> to vector<16xf32>
    %353 = vector.shape_cast %352 : vector<16xf32> to vector<16x1xf32>
    %cst_97 = arith.constant 3.200000e+01 : f32
    %354 = vector.broadcast %cst_97 : f32 to vector<16x1xf32>
    %355 = arith.divf %353, %354 : vector<16x1xf32>
    %356 = vector.broadcast %348 : vector<16x1xf32> to vector<16x32xf32>
    %357 = arith.subf %342, %356 : vector<16x32xf32>
    %cst_98 = arith.constant 9.99999974E-6 : f32
    %358 = vector.broadcast %cst_98 : f32 to vector<16x1xf32>
    %359 = arith.addf %355, %358 : vector<16x1xf32>
    %360 = math.rsqrt %359 : vector<16x1xf32>
    %361 = vector.broadcast %360 : vector<16x1xf32> to vector<16x32xf32>
    %362 = arith.mulf %357, %361 : vector<16x32xf32>
    %363 = vector.broadcast %343 : vector<1x32xf32> to vector<16x32xf32>
    %364 = arith.mulf %362, %363 : vector<16x32xf32>
    %365 = vector.broadcast %344 : vector<1x32xf32> to vector<16x32xf32>
    %366 = arith.addf %364, %365 : vector<16x32xf32>
    %c416 = arith.constant 416 : index
    %c0_99 = arith.constant 0 : index
    %367 = vector.load %arg4[%c416, %c0_99] : memref<704x128xbf16, #tpu.memory_space<vmem>>, vector<32x128xbf16>
    %368 = arith.truncf %366 : vector<16x32xf32> to vector<16x32xbf16>
    %cst_100 = arith.constant dense<0.000000e+00> : vector<16x128xf32>
    %369 = tpu.matmul %368, %367, %cst_100 {dimension_numbers = #tpu.dot_dimension_numbers<[1], [0], [0], [1], [0, 0, 1, 1], [], []>} : vector<16x32xbf16>, vector<32x128xbf16>, vector<16x128xf32> -> vector<16x128xf32>
    %c34 = arith.constant 34 : index
    %c0_101 = arith.constant 0 : index
    %370 = vector.load %arg5[%c34, %c0_101] : memref<42x128xf32, #tpu.memory_space<vmem>>, vector<1x128xf32>
    %371 = vector.broadcast %370 : vector<1x128xf32> to vector<16x128xf32>
    %372 = arith.addf %369, %371 : vector<16x128xf32>
    %cst_102 = arith.constant 0.000000e+00 : f32
    %373 = vector.broadcast %cst_102 : f32 to vector<16x128xf32>
    %374 = arith.maximumf %372, %373 : vector<16x128xf32>
    %c448 = arith.constant 448 : index
    %c0_103 = arith.constant 0 : index
    %375 = vector.load %arg4[%c448, %c0_103] : memref<704x128xbf16, #tpu.memory_space<vmem>>, vector<128x128xbf16>
    %376 = arith.truncf %374 : vector<16x128xf32> to vector<16x128xbf16>
    %cst_104 = arith.constant dense<0.000000e+00> : vector<16x128xf32>
    %377 = tpu.matmul %376, %375, %cst_104 {dimension_numbers = #tpu.dot_dimension_numbers<[1], [0], [0], [1], [0, 0, 1, 1], [], []>} : vector<16x128xbf16>, vector<128x128xbf16>, vector<16x128xf32> -> vector<16x128xf32>
    %c35 = arith.constant 35 : index
    %c0_105 = arith.constant 0 : index
    %378 = vector.load %arg5[%c35, %c0_105] : memref<42x128xf32, #tpu.memory_space<vmem>>, vector<1x128xf32>
    %379 = vector.broadcast %378 : vector<1x128xf32> to vector<16x128xf32>
    %380 = arith.addf %377, %379 : vector<16x128xf32>
    %381 = vector.extract_strided_slice %380 {offsets = [0, 0], sizes = [16, 32], strides = [1, 1]} : vector<16x128xf32> to vector<16x32xf32>
    %382 = arith.addf %366, %381 : vector<16x32xf32>
    %c40 = arith.constant 40 : index
    %c0_106 = arith.constant 0 : index
    %383 = vector.load %arg5[%c40, %c0_106] : memref<42x128xf32, #tpu.memory_space<vmem>>, vector<1x32xf32>
    %c41 = arith.constant 41 : index
    %c0_107 = arith.constant 0 : index
    %384 = vector.load %arg5[%c41, %c0_107] : memref<42x128xf32, #tpu.memory_space<vmem>>, vector<1x32xf32>
    %cst_108 = arith.constant dense<0.000000e+00> : vector<16xf32>
    %385 = vector.multi_reduction <add>, %382, %cst_108 [1] : vector<16x32xf32> to vector<16xf32>
    %386 = vector.shape_cast %385 : vector<16xf32> to vector<16x1xf32>
    %cst_109 = arith.constant 3.200000e+01 : f32
    %387 = vector.broadcast %cst_109 : f32 to vector<16x1xf32>
    %388 = arith.divf %386, %387 : vector<16x1xf32>
    %389 = vector.broadcast %388 : vector<16x1xf32> to vector<16x32xf32>
    %390 = arith.subf %382, %389 : vector<16x32xf32>
    %391 = arith.mulf %390, %390 : vector<16x32xf32>
    %cst_110 = arith.constant dense<0.000000e+00> : vector<16xf32>
    %392 = vector.multi_reduction <add>, %391, %cst_110 [1] : vector<16x32xf32> to vector<16xf32>
    %393 = vector.shape_cast %392 : vector<16xf32> to vector<16x1xf32>
    %cst_111 = arith.constant 3.200000e+01 : f32
    %394 = vector.broadcast %cst_111 : f32 to vector<16x1xf32>
    %395 = arith.divf %393, %394 : vector<16x1xf32>
    %396 = vector.broadcast %388 : vector<16x1xf32> to vector<16x32xf32>
    %397 = arith.subf %382, %396 : vector<16x32xf32>
    %cst_112 = arith.constant 9.99999974E-6 : f32
    %398 = vector.broadcast %cst_112 : f32 to vector<16x1xf32>
    %399 = arith.addf %395, %398 : vector<16x1xf32>
    %400 = math.rsqrt %399 : vector<16x1xf32>
    %401 = vector.broadcast %400 : vector<16x1xf32> to vector<16x32xf32>
    %402 = arith.mulf %397, %401 : vector<16x32xf32>
    %403 = vector.broadcast %383 : vector<1x32xf32> to vector<16x32xf32>
    %404 = arith.mulf %402, %403 : vector<16x32xf32>
    %405 = vector.broadcast %384 : vector<1x32xf32> to vector<16x32xf32>
    %406 = arith.addf %404, %405 : vector<16x32xf32>
    %c672 = arith.constant 672 : index
    %c0_113 = arith.constant 0 : index
    %407 = vector.load %arg4[%c672, %c0_113] : memref<704x128xbf16, #tpu.memory_space<vmem>>, vector<32x128xbf16>
    %408 = arith.truncf %406 : vector<16x32xf32> to vector<16x32xbf16>
    %cst_114 = arith.constant dense<0.000000e+00> : vector<16x128xf32>
    %409 = tpu.matmul %408, %407, %cst_114 {dimension_numbers = #tpu.dot_dimension_numbers<[1], [0], [0], [1], [0, 0, 1, 1], [], []>} : vector<16x32xbf16>, vector<32x128xbf16>, vector<16x128xf32> -> vector<16x128xf32>
    %c0_115 = arith.constant 0 : index
    %c0_116 = arith.constant 0 : index
    %410 = vector.load %arg5[%c0_115, %c0_116] : memref<42x128xf32, #tpu.memory_space<vmem>>, vector<1x128xf32>
    %411 = vector.broadcast %410 : vector<1x128xf32> to vector<16x128xf32>
    %412 = arith.addf %409, %411 : vector<16x128xf32>
    %c0_117 = arith.constant 0 : index
    %c0_118 = arith.constant 0 : index
    %413 = vector.load %arg6[%c0_117, %c0_118] : memref<16x128xf32, #tpu.memory_space<vmem>>, vector<16x128xf32>
    tpu.vector_store %arg6[%c0_117, %c0_118], %412 {strides = array<i32>} : memref<16x128xf32, #tpu.memory_space<vmem>>, vector<16x128xf32>,
    return
  }
}

</mosaic_0001>

<llo_original>
// kernel: transformer_decoder_forward.1
$region0: #{transformer_decoder_forward.1}
  #allocation0 [shape = 'u32[]', space=smem, size = 0x4, offset = 0x4, fixed_abs, tag = 'smem constant byte address 0x4 - core index']
  #allocation1 [shape = 'u32[144,128]{1,0:T(1,128)}', space=vmem, size = 0x12000, scoped, tag = 'internal scratch']
  %s0 = inlined_call_operand.vmem [shape: s32[16,1], index: 0, kind: input, shape index: {}]
  %s1 = inlined_call_operand.vmem [shape: f32[2,8,32], index: 1, kind: input, shape index: {}]
  %s2 = inlined_call_operand.vmem [shape: f32[64,64], index: 2, kind: input, shape index: {}]
  %s3 = inlined_call_operand.vmem [shape: f32[64,64], index: 3, kind: input, shape index: {}]
  %s4 = inlined_call_operand.hbm [shape: bf16[704,128], index: 4, kind: input, shape index: {}]
  %s5 = inlined_call_operand.vmem [shape: f32[42,128], index: 5, kind: input, shape index: {}]
  %s6 = inlined_call_operand.hbm [shape: f32[16,128], index: 6, kind: output, shape index: {}]
  %s7 = sld [smem:[#allocation0]]
  $region38: #{transformer_decoder_forward.1} parent=0
    _
  %s9 = ssub.s32 1, %s7
  %s10 = scalar_select 0, %s9, %s7
  $region1: #{transformer_decoder_forward.1} parent=0
    #allocation2 [shape = 'u8[180224]{0}', space=vmem, size = 0x2c000, scoped, tag = 'input window, operand 4, single buffered']
    #allocation3 [shape = 's32[1]{0}', space=sflag, size = 0x4, scoped, tag = 'scoped memory for transformer_decoder_forward.1']
    #allocation4 [shape = 's32[1]{0}', space=sflag, size = 0x4, scoped, tag = 'scoped memory for transformer_decoder_forward.1']
    #allocation5 [shape = 'u8[8192]{0}', space=vmem, size = 0x2000, scoped, tag = 'output window, operand 0, single buffered']
    %11 = vsyncpa [#allocation3], 0
    %12 = vsyncpa [#allocation4], 0
    // Predicated region
    $region2: #{transformer_decoder_forward.1} parent=1 // pred_check
      _
    $region3: #{transformer_decoder_forward.1} parent=1 // pred_check_branch
      %14 = sbr.rel (0) target = $region5
    $region4: #{transformer_decoder_forward.1} parent=1 // pred_region
      _
    $region5: #{transformer_decoder_forward.1} parent=1 // pred_fallthru
      _
    // Predicated region
    $region6: #{transformer_decoder_forward.1} parent=1 // pred_check
      _
    $region7: #{transformer_decoder_forward.1} parent=1 // pred_check_branch
      %16 = sbr.rel (0) target = $region9
    $region8: #{transformer_decoder_forward.1} parent=1 // pred_region
      _
    $region9: #{transformer_decoder_forward.1} parent=1 // pred_fallthru
      _
    // Predicated region
    $region10: #{transformer_decoder_forward.1} parent=1 // pred_check
      _
    $region11: #{transformer_decoder_forward.1} parent=1 // pred_check_branch
      %18 = sbr.rel (0) target = $region13
    $region12: #{transformer_decoder_forward.1} parent=1 // pred_region
      _
    $region13: #{transformer_decoder_forward.1} parent=1 // pred_fallthru
      _
    // Predicated region
    $region14: #{transformer_decoder_forward.1} parent=1 // pred_check
      _
    $region15: #{transformer_decoder_forward.1} parent=1 // pred_check_branch
      %20 = sbr.rel (0) target = $region17
    $region16: #{transformer_decoder_forward.1} parent=1 // pred_region
      _
    $region17: #{transformer_decoder_forward.1} parent=1 // pred_fallthru
      _
    // Predicated region
    $region18: #{transformer_decoder_forward.1} parent=1 // pred_check
      _
    $region19: #{transformer_decoder_forward.1} parent=1 // pred_check_branch
      %22 = sbr.rel (0) target = $region21
    $region20: #{transformer_decoder_forward.1} parent=1 // pred_region
      %s24 = ssub.s32 5632, 5632
      %25 = vsyncadd [#allocation3], %s24
      %s26 = sshll.u32 [#allocation2], 4
      %s27 = int_to_ptr.vmem [resolvable:$true] %s26
      %32 = dma.hbm_to_vmem [thread:$0]  %s4, 5632, %s27, [#allocation3], 64, 64, 4
    $region21: #{transformer_decoder_forward.1} parent=1 // pred_fallthru
      _
    // Predicated region
    $region22: #{transformer_decoder_forward.1} parent=1 // pred_check
      _
    $region23: #{transformer_decoder_forward.1} parent=1 // pred_check_branch
      %34 = sbr.rel (0) target = $region25
    $region24: #{transformer_decoder_forward.1} parent=1 // pred_region
      _
    $region25: #{transformer_decoder_forward.1} parent=1 // pred_fallthru
      _
    // Predicated region
    $region26: #{transformer_decoder_forward.1} parent=1 // pred_check
      _
    $region27: #{transformer_decoder_forward.1} parent=1 // pred_check_branch
      %36 = sbr.rel (0) target = $region29
    $region28: #{transformer_decoder_forward.1} parent=1 // pred_region
      %37 = dma.done [#allocation3], 5632
    $region29: #{transformer_decoder_forward.1} parent=1 // pred_fallthru
      _
    %v39 = vld [vmem:[%s0] sm:$0xff]
    %v40 = vld [vmem:[%s0 + $0x8] sm:$0xff]
    %v41 = vlaneseq
    %v42 = vand.u32 %v41, 127
    %43 = vset.pattern.permute.xlu0 0
    %44 = vperm.xlu0 %43, %v39
    %v45 = vpop.permute.xlu0 %44
    %46 = vset.pattern.permute.xlu0 0
    %47 = vperm.xlu0 %46, %v40
    %v48 = vpop.permute.xlu0 %47
    %vm49 = vcmp.eq.s32.totalorder %v45, %v42
    %vm50 = vcmp.eq.s32.totalorder %v48, %v42
    %v51 = vsel %vm49, 1.0, 0.0
    %v52 = vsel %vm50, 1.0, 0.0
    %v53 = vpack.c.bf16 %v52, %v51
    %v54 = vld [vmem:[#allocation2 + $0x130] sm:$0xf]
    %v55 = vld [vmem:[#allocation2 + $0x134] sm:$0xf]
    %v56 = vld [vmem:[#allocation2 + $0x138] sm:$0xf]
    %v57 = vld [vmem:[#allocation2 + $0x13c] sm:$0xf]
    %v58 = vld [vmem:[#allocation2 + $0x140] sm:$0xf]
    %v59 = vld [vmem:[#allocation2 + $0x144] sm:$0xf]
    %v60 = vld [vmem:[#allocation2 + $0x148] sm:$0xf]
    %v61 = vld [vmem:[#allocation2 + $0x14c] sm:$0xf]
    %v70 = vunpack.c.l.b16 %v54
    %v71 = vunpack.c.l.b16 %v55
    %v72 = vunpack.c.l.b16 %v56
    %v73 = vunpack.c.l.b16 %v57
    %v74 = vunpack.c.l.b16 %v58
    %v75 = vunpack.c.l.b16 %v59
    %v76 = vunpack.c.l.b16 %v60
    %v77 = vunpack.c.l.b16 %v61
    %v78 = vpack.c.b16 %v71, %v70
    %v79 = vpack.c.b16 %v73, %v72
    %v80 = vpack.c.b16 %v75, %v74
    %v81 = vpack.c.b16 %v77, %v76
    %vm86 = vcmask 523264
    %v88 = vsel %vm86, %v53, 0
    %90 = vmatprep.subr.bf16.mxu0 0
    %91 = vmatpush1.bf16.msra.mxu0 %v78
    %92 = vmatprep.subr.bf16.mxu0 0
    %93 = vmatpush1.bf16.msra.mxu0 %v79
    %94 = vmatprep.subr.bf16.mxu0 0
    %95 = vmatpush1.bf16.msra.mxu0 %v80
    %96 = vmatprep.subr.bf16.mxu0 0
    %97 = vmatpush1.bf16.msra.mxu0 %v81
    %98 = vmatprep.subr.bf16.mxu0 0
    %99 = vmatpush1.bf16.msra.mxu0 0
    %100 = vmatprep.subr.bf16.mxu0 0
    %101 = vmatpush1.bf16.msra.mxu0 0
    %102 = vmatprep.subr.bf16.mxu0 0
    %103 = vmatpush1.bf16.msra.mxu0 0
    %104 = vmatprep.subr.bf16.mxu0 0
    %105 = vmatpush1.bf16.msra.mxu0 0
    %106 = vmatprep.subr.bf16.mxu0 0
    %107 = vmatpush1.bf16.msra.mxu0 0
    %108 = vmatprep.subr.bf16.mxu0 0
    %109 = vmatpush1.bf16.msra.mxu0 0
    %110 = vmatprep.subr.bf16.mxu0 0
    %111 = vmatpush1.bf16.msra.mxu0 0
    %112 = vmatprep.subr.bf16.mxu0 0
    %113 = vmatpush1.bf16.msra.mxu0 0
    %114 = vmatprep.subr.bf16.mxu0 0
    %115 = vmatpush1.bf16.msra.mxu0 0
    %116 = vmatprep.subr.bf16.mxu0 0
    %117 = vmatpush1.bf16.msra.mxu0 0
    %118 = vmatprep.subr.bf16.mxu0 0
    %119 = vmatpush1.bf16.msra.mxu0 0
    %120 = vmatprep.subr.bf16.mxu0 0
    %121 = vmatpush1.bf16.msra.mxu0 0
    %122 = vmatprep.mubr.bf16.mxu0 0
    %123 = vmatmul.mubr.bf16.gmra.mrb[0].mxu0 %v88
    %v124 = vpop.f32.mrb[0].mxu0
    %v125 = vadd.f32 0.0, %v124
    %v126 = vpop.f32.mrb[0].mxu0
    %v127 = vpop.f32.mrb[0].mxu0
    %v128 = vadd.f32 0.0, %v127
    %v129 = vpop.f32.mrb[0].mxu0
    %130 = vdwg.mxu0
    %v131 = vld [vmem:[%s5 + $0x2] sm:$0xff]
    %v132 = vadd.f32 %v125, %v131
    %v133 = vadd.f32 %v128, %v131
    %v134 = vld [vmem:[%s1] sm:$0xff]
    %v135 = vld [vmem:[%s1 + $0x8] sm:$0xff]
    %v136 = vld [vmem:[#allocation2 + $0x120] sm:$0xf]
    %v137 = vld [vmem:[#allocation2 + $0x124] sm:$0xf]
    %v138 = vld [vmem:[#allocation2 + $0x128] sm:$0xf]
    %v139 = vld [vmem:[#allocation2 + $0x12c] sm:$0xf]
    %v140 = vpack.c.bf16 %v135, %v134
    %v141 = vld [vmem:[%s5 + $0x1] sm:$0x1]
    %v142 = vlaneseq
    %v143 = vshrl.u32 %v142, 7
    %v144 = vsub.s32 0, %v143
    %v145 = vrot.slane %v141, %v144
    %v150 = vunpack.c.l.b16 %v136
    %v151 = vunpack.c.l.b16 %v137
    %v152 = vunpack.c.l.b16 %v138
    %v153 = vunpack.c.l.b16 %v139
    %v154 = vpack.c.b16 %v151, %v150
    %v155 = vpack.c.b16 %v153, %v152
    %vm158 = vcmask 261120
    %v160 = vsel %vm158, %v140, 0
    %162 = vmatprep.subr.bf16.mxu0 0
    %163 = vmatpush1.bf16.msra.mxu0 %v154
    %164 = vmatprep.subr.bf16.mxu0 0
    %165 = vmatpush1.bf16.msra.mxu0 %v155
    %166 = vmatprep.subr.bf16.mxu0 0
    %167 = vmatpush1.bf16.msra.mxu0 0
    %168 = vmatprep.subr.bf16.mxu0 0
    %169 = vmatpush1.bf16.msra.mxu0 0
    %170 = vmatprep.subr.bf16.mxu0 0
    %171 = vmatpush1.bf16.msra.mxu0 0
    %172 = vmatprep.subr.bf16.mxu0 0
    %173 = vmatpush1.bf16.msra.mxu0 0
    %174 = vmatprep.subr.bf16.mxu0 0
    %175 = vmatpush1.bf16.msra.mxu0 0
    %176 = vmatprep.subr.bf16.mxu0 0
    %177 = vmatpush1.bf16.msra.mxu0 0
    %178 = vmatprep.subr.bf16.mxu0 0
    %179 = vmatpush1.bf16.msra.mxu0 0
    %180 = vmatprep.subr.bf16.mxu0 0
    %181 = vmatpush1.bf16.msra.mxu0 0
    %182 = vmatprep.subr.bf16.mxu0 0
    %183 = vmatpush1.bf16.msra.mxu0 0
    %184 = vmatprep.subr.bf16.mxu0 0
    %185 = vmatpush1.bf16.msra.mxu0 0
    %186 = vmatprep.subr.bf16.mxu0 0
    %187 = vmatpush1.bf16.msra.mxu0 0
    %188 = vmatprep.subr.bf16.mxu0 0
    %189 = vmatpush1.bf16.msra.mxu0 0
    %190 = vmatprep.subr.bf16.mxu0 0
    %191 = vmatpush1.bf16.msra.mxu0 0
    %192 = vmatprep.subr.bf16.mxu0 0
    %193 = vmatpush1.bf16.msra.mxu0 0
    %194 = vmatprep.mubr.bf16.mxu0 0
    %195 = vmatmul.mubr.bf16.gmra.mrb[0].mxu0 %v160
    %v196 = vpop.f32.mrb[0].mxu0
    %v197 = vadd.f32 %v145, %v196
    %v198 = vpop.f32.mrb[0].mxu0
    %v199 = vpop.f32.mrb[0].mxu0
    %v200 = vadd.f32 %v145, %v199
    %v201 = vpop.f32.mrb[0].mxu0
    %202 = vdwg.mxu0
    %205 = vrot.lane.b32.xlu0 %v197, 120
    %v206 = vpop.permute.xlu0 %205
    %207 = vrot.lane.b32.xlu0 %v200, 120
    %v208 = vpop.permute.xlu0 %207
    %211 = vrot.lane.b32.xlu0 %v197, 112
    %v212 = vpop.permute.xlu0 %211
    %213 = vrot.lane.b32.xlu0 %v200, 112
    %v214 = vpop.permute.xlu0 %213
    %217 = vrot.lane.b32.xlu0 %v197, 104
    %v218 = vpop.permute.xlu0 %217
    %219 = vrot.lane.b32.xlu0 %v200, 104
    %v220 = vpop.permute.xlu0 %219
    %v223 = vpack.c.bf16 %v200, %v197
    %v224 = vpack.c.bf16 %v208, %v206
    %v225 = vpack.c.bf16 %v214, %v212
    %v226 = vpack.c.bf16 %v220, %v218
    %v227 = vld [vmem:[%s2] sm:$0xff]
    %v228 = vld [vmem:[%s2 + $0x8] sm:$0xff]
    %v229 = vld [vmem:[%s2 + $0x10] sm:$0xff]
    %v230 = vld [vmem:[%s2 + $0x18] sm:$0xff]
    %v231 = vld [vmem:[%s2 + $0x20] sm:$0xff]
    %v232 = vld [vmem:[%s2 + $0x28] sm:$0xff]
    %v233 = vld [vmem:[%s2 + $0x30] sm:$0xff]
    %v234 = vld [vmem:[%s2 + $0x38] sm:$0xff]
    %v235 = vld [vmem:[%s3] sm:$0xff]
    %v236 = vld [vmem:[%s3 + $0x8] sm:$0xff]
    %v237 = vld [vmem:[%s3 + $0x10] sm:$0xff]
    %v238 = vld [vmem:[%s3 + $0x18] sm:$0xff]
    %v239 = vld [vmem:[%s3 + $0x20] sm:$0xff]
    %v240 = vld [vmem:[%s3 + $0x28] sm:$0xff]
    %v241 = vld [vmem:[%s3 + $0x30] sm:$0xff]
    %v242 = vld [vmem:[%s3 + $0x38] sm:$0xff]
    %v243 = vld [vmem:[#allocation2] sm:$0xf]
    %v244 = vld [vmem:[#allocation2 + $0x4] sm:$0xf]
    %v245 = vld [vmem:[#allocation2 + $0x8] sm:$0xf]
    %v246 = vld [vmem:[#allocation2 + $0xc] sm:$0xf]
    %v247 = vpack.c.bf16 %v133, %v132
    %v248 = vld [vmem:[%s5 + $0x12] sm:$0x1]
    %v249 = vlaneseq
    %v250 = vshrl.u32 %v249, 7
    %v251 = vsub.s32 0, %v250
    %v252 = vrot.slane %v248, %v251
    %v257 = vunpack.c.l.b16 %v243
    %v258 = vunpack.c.l.b16 %v244
    %v259 = vunpack.c.l.b16 %v245
    %v260 = vunpack.c.l.b16 %v246
    %v261 = vpack.c.b16 %v258, %v257
    %v262 = vpack.c.b16 %v260, %v259
    %v266 = vsel %vm158, %v247, 0
    %268 = vmatprep.subr.bf16.mxu0 0
    %269 = vmatpush1.bf16.msra.mxu0 %v261
    %270 = vmatprep.subr.bf16.mxu0 0
    %271 = vmatpush1.bf16.msra.mxu0 %v262
    %272 = vmatprep.subr.bf16.mxu0 0
    %273 = vmatpush1.bf16.msra.mxu0 0
    %274 = vmatprep.subr.bf16.mxu0 0
    %275 = vmatpush1.bf16.msra.mxu0 0
    %276 = vmatprep.subr.bf16.mxu0 0
    %277 = vmatpush1.bf16.msra.mxu0 0
    %278 = vmatprep.subr.bf16.mxu0 0
    %279 = vmatpush1.bf16.msra.mxu0 0
    %280 = vmatprep.subr.bf16.mxu0 0
    %281 = vmatpush1.bf16.msra.mxu0 0
    %282 = vmatprep.subr.bf16.mxu0 0
    %283 = vmatpush1.bf16.msra.mxu0 0
    %284 = vmatprep.subr.bf16.mxu0 0
    %285 = vmatpush1.bf16.msra.mxu0 0
    %286 = vmatprep.subr.bf16.mxu0 0
    %287 = vmatpush1.bf16.msra.mxu0 0
    %288 = vmatprep.subr.bf16.mxu0 0
    %289 = vmatpush1.bf16.msra.mxu0 0
    %290 = vmatprep.subr.bf16.mxu0 0
    %291 = vmatpush1.bf16.msra.mxu0 0
    %292 = vmatprep.subr.bf16.mxu0 0
    %293 = vmatpush1.bf16.msra.mxu0 0
    %294 = vmatprep.subr.bf16.mxu0 0
    %295 = vmatpush1.bf16.msra.mxu0 0
    %296 = vmatprep.subr.bf16.mxu0 0
    %297 = vmatpush1.bf16.msra.mxu0 0
    %298 = vmatprep.subr.bf16.mxu0 0
    %299 = vmatpush1.bf16.msra.mxu0 0
    %300 = vmatprep.mubr.bf16.mxu0 0
    %301 = vmatmul.mubr.bf16.gmra.mrb[0].mxu0 %v266
    %v302 = vpop.f32.mrb[0].mxu0
    %v303 = vadd.f32 %v252, %v302
    %v304 = vpop.f32.mrb[0].mxu0
    %v305 = vpop.f32.mrb[0].mxu0
    %v306 = vadd.f32 %v252, %v305
    %v307 = vpop.f32.mrb[0].mxu0
    %308 = vdwg.mxu0
    %311 = vrot.lane.b32.xlu0 %v303, 120
    %v312 = vpop.permute.xlu0 %311
    %313 = vrot.lane.b32.xlu0 %v306, 120
    %v314 = vpop.permute.xlu0 %313
    %317 = vrot.lane.b32.xlu0 %v303, 112
    %v318 = vpop.permute.xlu0 %317
    %319 = vrot.lane.b32.xlu0 %v306, 112
    %v320 = vpop.permute.xlu0 %319
    %323 = vrot.lane.b32.xlu0 %v303, 104
    %v324 = vpop.permute.xlu0 %323
    %325 = vrot.lane.b32.xlu0 %v306, 104
    %v326 = vpop.permute.xlu0 %325
    %v329 = vpack.c.bf16 %v306, %v303
    %v330 = vpack.c.bf16 %v314, %v312
    %v331 = vpack.c.bf16 %v320, %v318
    %v332 = vpack.c.bf16 %v326, %v324
    %v333 = vld [vmem:[#allocation2 + $0x10] sm:$0xf]
    %v334 = vld [vmem:[#allocation2 + $0x14] sm:$0xf]
    %v335 = vld [vmem:[#allocation2 + $0x18] sm:$0xf]
    %v336 = vld [vmem:[#allocation2 + $0x1c] sm:$0xf]
    %v337 = vld [vmem:[%s5 + $0x13] sm:$0x1]
    %342 = vrot.lane.b32.xlu0 %v329, 96
    %v343 = vpop.permute.xlu0 %342
    %344 = vrot.lane.b32.xlu0 %v330, 96
    %v345 = vpop.permute.xlu0 %344
    %346 = vrot.lane.b32.xlu0 %v331, 96
    %v347 = vpop.permute.xlu0 %346
    %348 = vrot.lane.b32.xlu0 %v332, 96
    %v349 = vpop.permute.xlu0 %348
    %vm350 = vcmask 64512
    %v352 = vsel %vm350, %v329, 0
    %v355 = vsel %vm350, %v330, 0
    %v358 = vsel %vm350, %v331, 0
    %v361 = vsel %vm350, %v332, 0
    %v364 = vsel %vm350, %v343, 0
    %v367 = vsel %vm350, %v345, 0
    %v370 = vsel %vm350, %v347, 0
    %v373 = vsel %vm350, %v349, 0
    %375 = vmatprep.subr.bf16.mxu0 0
    %376 = vmatpush1.bf16.xpose.msra.mxu0 %v364
    %377 = vmatprep.subr.bf16.mxu0 0
    %378 = vmatpush1.bf16.xpose.msra.mxu0 %v367
    %379 = vmatprep.subr.bf16.mxu0 0
    %380 = vmatpush1.bf16.xpose.msra.mxu0 %v370
    %381 = vmatprep.subr.bf16.mxu0 0
    %382 = vmatpush1.bf16.xpose.msra.mxu0 %v373
    %383 = vmatprep.subr.bf16.mxu0 0
    %384 = vmatpush1.bf16.xpose.msra.mxu0 0
    %385 = vmatprep.subr.bf16.mxu0 0
    %386 = vmatpush1.bf16.xpose.msra.mxu0 0
    %387 = vmatprep.subr.bf16.mxu0 0
    %388 = vmatpush1.bf16.xpose.msra.mxu0 0
    %389 = vmatprep.subr.bf16.mxu0 0
    %390 = vmatpush1.bf16.xpose.msra.mxu0 0
    %391 = vmatprep.subr.bf16.mxu0 0
    %392 = vmatpush1.bf16.xpose.msra.mxu0 0
    %393 = vmatprep.subr.bf16.mxu0 0
    %394 = vmatpush1.bf16.xpose.msra.mxu0 0
    %395 = vmatprep.subr.bf16.mxu0 0
    %396 = vmatpush1.bf16.xpose.msra.mxu0 0
    %397 = vmatprep.subr.bf16.mxu0 0
    %398 = vmatpush1.bf16.xpose.msra.mxu0 0
    %399 = vmatprep.subr.bf16.mxu0 0
    %400 = vmatpush1.bf16.xpose.msra.mxu0 0
    %401 = vmatprep.subr.bf16.mxu0 0
    %402 = vmatpush1.bf16.xpose.msra.mxu0 0
    %403 = vmatprep.subr.bf16.mxu0 0
    %404 = vmatpush1.bf16.xpose.msra.mxu0 0
    %405 = vmatprep.subr.bf16.mxu0 0
    %406 = vmatpush1.bf16.xpose.msra.mxu0 0
    %407 = vmatprep.mubr.bf16.mxu0 0
    %408 = vmatmul.mubr.bf16.gmra.mrb[0].mxu0 %v352
    %v409 = vpop.f32.mrb[0].mxu0
    %v410 = vadd.f32 %v227, %v409
    %v411 = vpop.f32.mrb[0].mxu0
    %v412 = vpop.f32.mrb[0].mxu0
    %v413 = vadd.f32 %v228, %v412
    %v414 = vpop.f32.mrb[0].mxu0
    %415 = vmatprep.mubr.bf16.mxu0 0
    %416 = vmatmul.mubr.bf16.gmra.mrb[0].mxu0 %v355
    %v417 = vpop.f32.mrb[0].mxu0
    %v418 = vadd.f32 %v229, %v417
    %v419 = vpop.f32.mrb[0].mxu0
    %v420 = vpop.f32.mrb[0].mxu0
    %v421 = vadd.f32 %v230, %v420
    %v422 = vpop.f32.mrb[0].mxu0
    %423 = vmatprep.mubr.bf16.mxu0 0
    %424 = vmatmul.mubr.bf16.gmra.mrb[0].mxu0 %v358
    %v425 = vpop.f32.mrb[0].mxu0
    %v426 = vadd.f32 %v231, %v425
    %v427 = vpop.f32.mrb[0].mxu0
    %v428 = vpop.f32.mrb[0].mxu0
    %v429 = vadd.f32 %v232, %v428
    %v430 = vpop.f32.mrb[0].mxu0
    %431 = vmatprep.mubr.bf16.mxu0 0
    %432 = vmatmul.mubr.bf16.gmra.mrb[0].mxu0 %v361
    %v433 = vpop.f32.mrb[0].mxu0
    %v434 = vadd.f32 %v233, %v433
    %v435 = vpop.f32.mrb[0].mxu0
    %v436 = vpop.f32.mrb[0].mxu0
    %v437 = vadd.f32 %v234, %v436
    %v438 = vpop.f32.mrb[0].mxu0
    %439 = vdwg.mxu0
    %v440 = vsel %vm86, %v410, -inf
    %441 = vmax.xlane.f32.xlu0 %v440
    %v442 = vpop.xlane.xlu0 %441
    %v443 = vsel %vm86, %v413, -inf
    %444 = vmax.xlane.f32.xlu0 %v443
    %v445 = vpop.xlane.xlu0 %444
    %v446 = vsel %vm86, %v418, -inf
    %447 = vmax.xlane.f32.xlu0 %v446
    %v448 = vpop.xlane.xlu0 %447
    %v449 = vsel %vm86, %v421, -inf
    %450 = vmax.xlane.f32.xlu0 %v449
    %v451 = vpop.xlane.xlu0 %450
    %v452 = vsel %vm86, %v426, -inf
    %453 = vmax.xlane.f32.xlu0 %v452
    %v454 = vpop.xlane.xlu0 %453
    %v455 = vsel %vm86, %v429, -inf
    %456 = vmax.xlane.f32.xlu0 %v455
    %v457 = vpop.xlane.xlu0 %456
    %v458 = vsel %vm86, %v434, -inf
    %459 = vmax.xlane.f32.xlu0 %v458
    %v460 = vpop.xlane.xlu0 %459
    %v461 = vsel %vm86, %v437, -inf
    %462 = vmax.xlane.f32.xlu0 %v461
    %v463 = vpop.xlane.xlu0 %462
    %v464 = vsub.f32 %v410, %v442
    %v465 = vsub.f32 %v413, %v445
    %v466 = vsub.f32 %v418, %v448
    %v467 = vsub.f32 %v421, %v451
    %v468 = vsub.f32 %v426, %v454
    %v469 = vsub.f32 %v429, %v457
    %v470 = vsub.f32 %v434, %v460
    %v471 = vsub.f32 %v437, %v463
    %v472 = vmul.f32 %v464, 1.442695
    %v473 = vpow.pop %v472
    %v474 = vmul.f32 %v465, 1.442695
    %v475 = vpow.pop %v474
    %v476 = vmul.f32 %v466, 1.442695
    %v477 = vpow.pop %v476
    %v478 = vmul.f32 %v467, 1.442695
    %v479 = vpow.pop %v478
    %v480 = vmul.f32 %v468, 1.442695
    %v481 = vpow.pop %v480
    %v482 = vmul.f32 %v469, 1.442695
    %v483 = vpow.pop %v482
    %v484 = vmul.f32 %v470, 1.442695
    %v485 = vpow.pop %v484
    %v486 = vmul.f32 %v471, 1.442695
    %v487 = vpow.pop %v486
    %v488 = vsel %vm86, %v473, 0.0
    %489 = vadd.xlane.f32.xlu0 %v488
    %v490 = vpop.xlane.xlu0 %489
    %v491 = vsel %vm86, %v475, 0.0
    %492 = vadd.xlane.f32.xlu0 %v491
    %v493 = vpop.xlane.xlu0 %492
    %v494 = vsel %vm86, %v477, 0.0
    %495 = vadd.xlane.f32.xlu0 %v494
    %v496 = vpop.xlane.xlu0 %495
    %v497 = vsel %vm86, %v479, 0.0
    %498 = vadd.xlane.f32.xlu0 %v497
    %v499 = vpop.xlane.xlu0 %498
    %v500 = vsel %vm86, %v481, 0.0
    %501 = vadd.xlane.f32.xlu0 %v500
    %v502 = vpop.xlane.xlu0 %501
    %v503 = vsel %vm86, %v483, 0.0
    %504 = vadd.xlane.f32.xlu0 %v503
    %v505 = vpop.xlane.xlu0 %504
    %v506 = vsel %vm86, %v485, 0.0
    %507 = vadd.xlane.f32.xlu0 %v506
    %v508 = vpop.xlane.xlu0 %507
    %v509 = vsel %vm86, %v487, 0.0
    %510 = vadd.xlane.f32.xlu0 %v509
    %v511 = vpop.xlane.xlu0 %510
    %v512 = vrcp.pop %v490
    %v513 = vrcp.pop %v493
    %v514 = vrcp.pop %v496
    %v515 = vrcp.pop %v499
    %v516 = vrcp.pop %v502
    %v517 = vrcp.pop %v505
    %v518 = vrcp.pop %v508
    %v519 = vrcp.pop %v511
    %v520 = vmul.f32 %v473, %v512
    %v521 = vmul.f32 %v475, %v513
    %v522 = vmul.f32 %v477, %v514
    %v523 = vmul.f32 %v479, %v515
    %v524 = vmul.f32 %v481, %v516
    %v525 = vmul.f32 %v483, %v517
    %v526 = vmul.f32 %v485, %v518
    %v527 = vmul.f32 %v487, %v519
    %v528 = vpack.c.bf16 %v521, %v520
    %v529 = vpack.c.bf16 %v523, %v522
    %v530 = vpack.c.bf16 %v525, %v524
    %v531 = vpack.c.bf16 %v527, %v526
    %532 = vrot.lane.b32.xlu0 %v329, 64
    %v533 = vpop.permute.xlu0 %532
    %534 = vrot.lane.b32.xlu0 %v330, 64
    %v535 = vpop.permute.xlu0 %534
    %536 = vrot.lane.b32.xlu0 %v331, 64
    %v537 = vpop.permute.xlu0 %536
    %538 = vrot.lane.b32.xlu0 %v332, 64
    %v539 = vpop.permute.xlu0 %538
    %v545 = vsel %vm86, %v528, 0
    %v548 = vsel %vm86, %v529, 0
    %v551 = vsel %vm86, %v530, 0
    %v554 = vsel %vm86, %v531, 0
    %556 = vmatprep.subr.bf16.mxu0 0
    %557 = vmatpush1.bf16.msra.mxu0 %v533
    %558 = vmatprep.subr.bf16.mxu0 0
    %559 = vmatpush1.bf16.msra.mxu0 %v535
    %560 = vmatprep.subr.bf16.mxu0 0
    %561 = vmatpush1.bf16.msra.mxu0 %v537
    %562 = vmatprep.subr.bf16.mxu0 0
    %563 = vmatpush1.bf16.msra.mxu0 %v539
    %564 = vmatprep.subr.bf16.mxu0 0
    %565 = vmatpush1.bf16.msra.mxu0 0
    %566 = vmatprep.subr.bf16.mxu0 0
    %567 = vmatpush1.bf16.msra.mxu0 0
    %568 = vmatprep.subr.bf16.mxu0 0
    %569 = vmatpush1.bf16.msra.mxu0 0
    %570 = vmatprep.subr.bf16.mxu0 0
    %571 = vmatpush1.bf16.msra.mxu0 0
    %572 = vmatprep.subr.bf16.mxu0 0
    %573 = vmatpush1.bf16.msra.mxu0 0
    %574 = vmatprep.subr.bf16.mxu0 0
    %575 = vmatpush1.bf16.msra.mxu0 0
    %576 = vmatprep.subr.bf16.mxu0 0
    %577 = vmatpush1.bf16.msra.mxu0 0
    %578 = vmatprep.subr.bf16.mxu0 0
    %579 = vmatpush1.bf16.msra.mxu0 0
    %580 = vmatprep.subr.bf16.mxu0 0
    %581 = vmatpush1.bf16.msra.mxu0 0
    %582 = vmatprep.subr.bf16.mxu0 0
    %583 = vmatpush1.bf16.msra.mxu0 0
    %584 = vmatprep.subr.bf16.mxu0 0
    %585 = vmatpush1.bf16.msra.mxu0 0
    %586 = vmatprep.subr.bf16.mxu0 0
    %587 = vmatpush1.bf16.msra.mxu0 0
    %588 = vmatprep.mubr.bf16.mxu0 0
    %589 = vmatmul.mubr.bf16.gmra.mrb[0].mxu0 %v545
    %v590 = vpop.f32.mrb[0].mxu0
    %v591 = vadd.f32 0.0, %v590
    %v592 = vpop.f32.mrb[0].mxu0
    %v593 = vpop.f32.mrb[0].mxu0
    %v594 = vadd.f32 0.0, %v593
    %v595 = vpop.f32.mrb[0].mxu0
    %596 = vmatprep.mubr.bf16.mxu0 0
    %597 = vmatmul.mubr.bf16.gmra.mrb[0].mxu0 %v548
    %v598 = vpop.f32.mrb[0].mxu0
    %v599 = vadd.f32 0.0, %v598
    %v600 = vpop.f32.mrb[0].mxu0
    %v601 = vpop.f32.mrb[0].mxu0
    %v602 = vadd.f32 0.0, %v601
    %v603 = vpop.f32.mrb[0].mxu0
    %604 = vmatprep.mubr.bf16.mxu0 0
    %605 = vmatmul.mubr.bf16.gmra.mrb[0].mxu0 %v551
    %v606 = vpop.f32.mrb[0].mxu0
    %v607 = vadd.f32 0.0, %v606
    %v608 = vpop.f32.mrb[0].mxu0
    %v609 = vpop.f32.mrb[0].mxu0
    %v610 = vadd.f32 0.0, %v609
    %v611 = vpop.f32.mrb[0].mxu0
    %612 = vmatprep.mubr.bf16.mxu0 0
    %613 = vmatmul.mubr.bf16.gmra.mrb[0].mxu0 %v554
    %v614 = vpop.f32.mrb[0].mxu0
    %v615 = vadd.f32 0.0, %v614
    %v616 = vpop.f32.mrb[0].mxu0
    %v617 = vpop.f32.mrb[0].mxu0
    %v618 = vadd.f32 0.0, %v617
    %v619 = vpop.f32.mrb[0].mxu0
    %620 = vdwg.mxu0
    %623 = vrot.lane.b32.xlu0 %v599, 8
    %v624 = vpop.permute.xlu0 %623
    %625 = vrot.lane.b32.xlu0 %v602, 8
    %v626 = vpop.permute.xlu0 %625
    %631 = vrot.lane.b32.xlu0 %v607, 16
    %v632 = vpop.permute.xlu0 %631
    %633 = vrot.lane.b32.xlu0 %v610, 16
    %v634 = vpop.permute.xlu0 %633
    %639 = vrot.lane.b32.xlu0 %v615, 24
    %v640 = vpop.permute.xlu0 %639
    %641 = vrot.lane.b32.xlu0 %v618, 24
    %v642 = vpop.permute.xlu0 %641
    %v645 = vsel %vm350, %v591, %v624
    %v646 = vsel %vm350, %v594, %v626
    %vm647 = vcmask 130048
    %v648 = vsel %vm647, %v645, %v632
    %v649 = vsel %vm647, %v646, %v634
    %vm650 = vcmask 195584
    %v651 = vsel %vm650, %v648, %v640
    %v652 = vsel %vm650, %v649, %v642
    %v653 = vpack.c.bf16 %v652, %v651
    %v654 = vlaneseq
    %v655 = vshrl.u32 %v654, 7
    %v656 = vsub.s32 0, %v655
    %v657 = vrot.slane %v337, %v656
    %v662 = vunpack.c.l.b16 %v333
    %v663 = vunpack.c.l.b16 %v334
    %v664 = vunpack.c.l.b16 %v335
    %v665 = vunpack.c.l.b16 %v336
    %v666 = vpack.c.b16 %v663, %v662
    %v667 = vpack.c.b16 %v665, %v664
    %v671 = vsel %vm158, %v653, 0
    %673 = vmatprep.subr.bf16.mxu0 0
    %674 = vmatpush1.bf16.msra.mxu0 %v666
    %675 = vmatprep.subr.bf16.mxu0 0
    %676 = vmatpush1.bf16.msra.mxu0 %v667
    %677 = vmatprep.subr.bf16.mxu0 0
    %678 = vmatpush1.bf16.msra.mxu0 0
    %679 = vmatprep.subr.bf16.mxu0 0
    %680 = vmatpush1.bf16.msra.mxu0 0
    %681 = vmatprep.subr.bf16.mxu0 0
    %682 = vmatpush1.bf16.msra.mxu0 0
    %683 = vmatprep.subr.bf16.mxu0 0
    %684 = vmatpush1.bf16.msra.mxu0 0
    %685 = vmatprep.subr.bf16.mxu0 0
    %686 = vmatpush1.bf16.msra.mxu0 0
    %687 = vmatprep.subr.bf16.mxu0 0
    %688 = vmatpush1.bf16.msra.mxu0 0
    %689 = vmatprep.subr.bf16.mxu0 0
    %690 = vmatpush1.bf16.msra.mxu0 0
    %691 = vmatprep.subr.bf16.mxu0 0
    %692 = vmatpush1.bf16.msra.mxu0 0
    %693 = vmatprep.subr.bf16.mxu0 0
    %694 = vmatpush1.bf16.msra.mxu0 0
    %695 = vmatprep.subr.bf16.mxu0 0
    %696 = vmatpush1.bf16.msra.mxu0 0
    %697 = vmatprep.subr.bf16.mxu0 0
    %698 = vmatpush1.bf16.msra.mxu0 0
    %699 = vmatprep.subr.bf16.mxu0 0
    %700 = vmatpush1.bf16.msra.mxu0 0
    %701 = vmatprep.subr.bf16.mxu0 0
    %702 = vmatpush1.bf16.msra.mxu0 0
    %703 = vmatprep.subr.bf16.mxu0 0
    %704 = vmatpush1.bf16.msra.mxu0 0
    %705 = vmatprep.mubr.bf16.mxu0 0
    %706 = vmatmul.mubr.bf16.gmra.mrb[0].mxu0 %v671
    %v707 = vpop.f32.mrb[0].mxu0
    %v708 = vadd.f32 %v657, %v707
    %v709 = vpop.f32.mrb[0].mxu0
    %v710 = vpop.f32.mrb[0].mxu0
    %v711 = vadd.f32 %v657, %v710
    %v712 = vpop.f32.mrb[0].mxu0
    %713 = vdwg.mxu0
    %v714 = vadd.f32 %v132, %v708
    %v715 = vadd.f32 %v133, %v711
    %v716 = vld [vmem:[%s5 + $0x18] sm:$0x1]
    %v717 = vld [vmem:[%s5 + $0x19] sm:$0x1]
    %v718 = vsel %vm158, %v714, 0.0
    %719 = vadd.xlane.f32.xlu0 %v718
    %v720 = vpop.xlane.xlu0 %719
    %v721 = vsel %vm158, %v715, 0.0
    %722 = vadd.xlane.f32.xlu0 %v721
    %v723 = vpop.xlane.xlu0 %722
    %v724 = vrcp.pop 32.0
    %v725 = vmul.f32 %v720, %v724
    %v726 = vmul.f32 %v723, %v724
    %v727 = vsub.f32 %v714, %v725
    %v728 = vsub.f32 %v715, %v726
    %v729 = vmul.f32 %v727, %v727
    %v730 = vmul.f32 %v728, %v728
    %v731 = vsel %vm158, %v729, 0.0
    %732 = vadd.xlane.f32.xlu0 %v731
    %v733 = vpop.xlane.xlu0 %732
    %v734 = vsel %vm158, %v730, 0.0
    %735 = vadd.xlane.f32.xlu0 %v734
    %v736 = vpop.xlane.xlu0 %735
    %v737 = vmul.f32 %v733, %v724
    %v738 = vmul.f32 %v736, %v724
    %v739 = vadd.f32 %v737, 1e-05
    %v740 = vadd.f32 %v738, 1e-05
    %v741 = vrsqrt.pop %v739
    %v742 = vrsqrt.pop %v740
    %v743 = vmul.f32 %v727, %v741
    %v744 = vmul.f32 %v728, %v742
    %v745 = vlaneseq
    %v746 = vshrl.u32 %v745, 7
    %v747 = vsub.s32 0, %v746
    %v748 = vrot.slane %v716, %v747
    %v749 = vmul.f32 %v743, %v748
    %v750 = vmul.f32 %v744, %v748
    %v751 = vlaneseq
    %v752 = vshrl.u32 %v751, 7
    %v753 = vsub.s32 0, %v752
    %v754 = vrot.slane %v717, %v753
    %v755 = vadd.f32 %v749, %v754
    %v756 = vadd.f32 %v750, %v754
    %v757 = vld [vmem:[#allocation2 + $0x20] sm:$0xf]
    %v758 = vld [vmem:[#allocation2 + $0x24] sm:$0xf]
    %v759 = vld [vmem:[#allocation2 + $0x28] sm:$0xf]
    %v760 = vld [vmem:[#allocation2 + $0x2c] sm:$0xf]
    %v761 = vpack.c.bf16 %v756, %v755
    %v762 = vld [vmem:[%s5 + $0x14] sm:$0x1]
    %v763 = vlaneseq
    %v764 = vshrl.u32 %v763, 7
    %v765 = vsub.s32 0, %v764
    %v766 = vrot.slane %v762, %v765
    %v771 = vunpack.c.l.b16 %v757
    %v772 = vunpack.c.l.b16 %v758
    %v773 = vunpack.c.l.b16 %v759
    %v774 = vunpack.c.l.b16 %v760
    %v775 = vpack.c.b16 %v772, %v771
    %v776 = vpack.c.b16 %v774, %v773
    %v780 = vsel %vm158, %v761, 0
    %782 = vmatprep.subr.bf16.mxu0 0
    %783 = vmatpush1.bf16.msra.mxu0 %v775
    %784 = vmatprep.subr.bf16.mxu0 0
    %785 = vmatpush1.bf16.msra.mxu0 %v776
    %786 = vmatprep.subr.bf16.mxu0 0
    %787 = vmatpush1.bf16.msra.mxu0 0
    %788 = vmatprep.subr.bf16.mxu0 0
    %789 = vmatpush1.bf16.msra.mxu0 0
    %790 = vmatprep.subr.bf16.mxu0 0
    %791 = vmatpush1.bf16.msra.mxu0 0
    %792 = vmatprep.subr.bf16.mxu0 0
    %793 = vmatpush1.bf16.msra.mxu0 0
    %794 = vmatprep.subr.bf16.mxu0 0
    %795 = vmatpush1.bf16.msra.mxu0 0
    %796 = vmatprep.subr.bf16.mxu0 0
    %797 = vmatpush1.bf16.msra.mxu0 0
    %798 = vmatprep.subr.bf16.mxu0 0
    %799 = vmatpush1.bf16.msra.mxu0 0
    %800 = vmatprep.subr.bf16.mxu0 0
    %801 = vmatpush1.bf16.msra.mxu0 0
    %802 = vmatprep.subr.bf16.mxu0 0
    %803 = vmatpush1.bf16.msra.mxu0 0
    %804 = vmatprep.subr.bf16.mxu0 0
    %805 = vmatpush1.bf16.msra.mxu0 0
    %806 = vmatprep.subr.bf16.mxu0 0
    %807 = vmatpush1.bf16.msra.mxu0 0
    %808 = vmatprep.subr.bf16.mxu0 0
    %809 = vmatpush1.bf16.msra.mxu0 0
    %810 = vmatprep.subr.bf16.mxu0 0
    %811 = vmatpush1.bf16.msra.mxu0 0
    %812 = vmatprep.subr.bf16.mxu0 0
    %813 = vmatpush1.bf16.msra.mxu0 0
    %814 = vmatprep.mubr.bf16.mxu0 0
    %815 = vmatmul.mubr.bf16.gmra.mrb[0].mxu0 %v780
    %v816 = vpop.f32.mrb[0].mxu0
    %v817 = vadd.f32 %v766, %v816
    %v818 = vpop.f32.mrb[0].mxu0
    %v819 = vpop.f32.mrb[0].mxu0
    %v820 = vadd.f32 %v766, %v819
    %v821 = vpop.f32.mrb[0].mxu0
    %822 = vdwg.mxu0
    %825 = vrot.lane.b32.xlu0 %v817, 120
    %v826 = vpop.permute.xlu0 %825
    %827 = vrot.lane.b32.xlu0 %v820, 120
    %v828 = vpop.permute.xlu0 %827
    %831 = vrot.lane.b32.xlu0 %v817, 112
    %v832 = vpop.permute.xlu0 %831
    %833 = vrot.lane.b32.xlu0 %v820, 112
    %v834 = vpop.permute.xlu0 %833
    %837 = vrot.lane.b32.xlu0 %v817, 104
    %v838 = vpop.permute.xlu0 %837
    %839 = vrot.lane.b32.xlu0 %v820, 104
    %v840 = vpop.permute.xlu0 %839
    %v843 = vpack.c.bf16 %v820, %v817
    %v844 = vpack.c.bf16 %v828, %v826
    %v845 = vpack.c.bf16 %v834, %v832
    %v846 = vpack.c.bf16 %v840, %v838
    %v847 = vld [vmem:[#allocation2 + $0x30] sm:$0xf]
    %v848 = vld [vmem:[#allocation2 + $0x34] sm:$0xf]
    %v849 = vld [vmem:[#allocation2 + $0x38] sm:$0xf]
    %v850 = vld [vmem:[#allocation2 + $0x3c] sm:$0xf]
    %v851 = vld [vmem:[%s5 + $0x15] sm:$0x1]
    %v853 = vsel %vm350, %v843, 0
    %v856 = vsel %vm350, %v844, 0
    %v859 = vsel %vm350, %v845, 0
    %v862 = vsel %vm350, %v846, 0
    %v865 = vsel %vm350, %v223, 0
    %v868 = vsel %vm350, %v224, 0
    %v871 = vsel %vm350, %v225, 0
    %v874 = vsel %vm350, %v226, 0
    %876 = vmatprep.subr.bf16.mxu0 0
    %877 = vmatpush1.bf16.xpose.msra.mxu0 %v865
    %878 = vmatprep.subr.bf16.mxu0 0
    %879 = vmatpush1.bf16.xpose.msra.mxu0 %v868
    %880 = vmatprep.subr.bf16.mxu0 0
    %881 = vmatpush1.bf16.xpose.msra.mxu0 %v871
    %882 = vmatprep.subr.bf16.mxu0 0
    %883 = vmatpush1.bf16.xpose.msra.mxu0 %v874
    %884 = vmatprep.subr.bf16.mxu0 0
    %885 = vmatpush1.bf16.xpose.msra.mxu0 0
    %886 = vmatprep.subr.bf16.mxu0 0
    %887 = vmatpush1.bf16.xpose.msra.mxu0 0
    %888 = vmatprep.subr.bf16.mxu0 0
    %889 = vmatpush1.bf16.xpose.msra.mxu0 0
    %890 = vmatprep.subr.bf16.mxu0 0
    %891 = vmatpush1.bf16.xpose.msra.mxu0 0
    %892 = vmatprep.subr.bf16.mxu0 0
    %893 = vmatpush1.bf16.xpose.msra.mxu0 0
    %894 = vmatprep.subr.bf16.mxu0 0
    %895 = vmatpush1.bf16.xpose.msra.mxu0 0
    %896 = vmatprep.subr.bf16.mxu0 0
    %897 = vmatpush1.bf16.xpose.msra.mxu0 0
    %898 = vmatprep.subr.bf16.mxu0 0
    %899 = vmatpush1.bf16.xpose.msra.mxu0 0
    %900 = vmatprep.subr.bf16.mxu0 0
    %901 = vmatpush1.bf16.xpose.msra.mxu0 0
    %902 = vmatprep.subr.bf16.mxu0 0
    %903 = vmatpush1.bf16.xpose.msra.mxu0 0
    %904 = vmatprep.subr.bf16.mxu0 0
    %905 = vmatpush1.bf16.xpose.msra.mxu0 0
    %906 = vmatprep.subr.bf16.mxu0 0
    %907 = vmatpush1.bf16.xpose.msra.mxu0 0
    %908 = vmatprep.mubr.bf16.mxu0 0
    %909 = vmatmul.mubr.bf16.gmra.mrb[0].mxu0 %v853
    %v910 = vpop.f32.mrb[0].mxu0
    %v911 = vadd.f32 %v235, %v910
    %v912 = vpop.f32.mrb[0].mxu0
    %v913 = vpop.f32.mrb[0].mxu0
    %v914 = vadd.f32 %v236, %v913
    %v915 = vpop.f32.mrb[0].mxu0
    %916 = vmatprep.mubr.bf16.mxu0 0
    %917 = vmatmul.mubr.bf16.gmra.mrb[0].mxu0 %v856
    %v918 = vpop.f32.mrb[0].mxu0
    %v919 = vadd.f32 %v237, %v918
    %v920 = vpop.f32.mrb[0].mxu0
    %v921 = vpop.f32.mrb[0].mxu0
    %v922 = vadd.f32 %v238, %v921
    %v923 = vpop.f32.mrb[0].mxu0
    %924 = vmatprep.mubr.bf16.mxu0 0
    %925 = vmatmul.mubr.bf16.gmra.mrb[0].mxu0 %v859
    %v926 = vpop.f32.mrb[0].mxu0
    %v927 = vadd.f32 %v239, %v926
    %v928 = vpop.f32.mrb[0].mxu0
    %v929 = vpop.f32.mrb[0].mxu0
    %v930 = vadd.f32 %v240, %v929
    %v931 = vpop.f32.mrb[0].mxu0
    %932 = vmatprep.mubr.bf16.mxu0 0
    %933 = vmatmul.mubr.bf16.gmra.mrb[0].mxu0 %v862
    %v934 = vpop.f32.mrb[0].mxu0
    %v935 = vadd.f32 %v241, %v934
    %v936 = vpop.f32.mrb[0].mxu0
    %v937 = vpop.f32.mrb[0].mxu0
    %v938 = vadd.f32 %v242, %v937
    %v939 = vpop.f32.mrb[0].mxu0
    %940 = vdwg.mxu0
    %v941 = vsel %vm86, %v911, -inf
    %942 = vmax.xlane.f32.xlu0 %v941
    %v943 = vpop.xlane.xlu0 %942
    %v944 = vsel %vm86, %v914, -inf
    %945 = vmax.xlane.f32.xlu0 %v944
    %v946 = vpop.xlane.xlu0 %945
    %v947 = vsel %vm86, %v919, -inf
    %948 = vmax.xlane.f32.xlu0 %v947
    %v949 = vpop.xlane.xlu0 %948
    %v950 = vsel %vm86, %v922, -inf
    %951 = vmax.xlane.f32.xlu0 %v950
    %v952 = vpop.xlane.xlu0 %951
    %v953 = vsel %vm86, %v927, -inf
    %954 = vmax.xlane.f32.xlu0 %v953
    %v955 = vpop.xlane.xlu0 %954
    %v956 = vsel %vm86, %v930, -inf
    %957 = vmax.xlane.f32.xlu0 %v956
    %v958 = vpop.xlane.xlu0 %957
    %v959 = vsel %vm86, %v935, -inf
    %960 = vmax.xlane.f32.xlu0 %v959
    %v961 = vpop.xlane.xlu0 %960
    %v962 = vsel %vm86, %v938, -inf
    %963 = vmax.xlane.f32.xlu0 %v962
    %v964 = vpop.xlane.xlu0 %963
    %v965 = vsub.f32 %v911, %v943
    %v966 = vsub.f32 %v914, %v946
    %v967 = vsub.f32 %v919, %v949
    %v968 = vsub.f32 %v922, %v952
    %v969 = vsub.f32 %v927, %v955
    %v970 = vsub.f32 %v930, %v958
    %v971 = vsub.f32 %v935, %v961
    %v972 = vsub.f32 %v938, %v964
    %v973 = vmul.f32 %v965, 1.442695
    %v974 = vpow.pop %v973
    %v975 = vmul.f32 %v966, 1.442695
    %v976 = vpow.pop %v975
    %v977 = vmul.f32 %v967, 1.442695
    %v978 = vpow.pop %v977
    %v979 = vmul.f32 %v968, 1.442695
    %v980 = vpow.pop %v979
    %v981 = vmul.f32 %v969, 1.442695
    %v982 = vpow.pop %v981
    %v983 = vmul.f32 %v970, 1.442695
    %v984 = vpow.pop %v983
    %v985 = vmul.f32 %v971, 1.442695
    %v986 = vpow.pop %v985
    %v987 = vmul.f32 %v972, 1.442695
    %v988 = vpow.pop %v987
    %v989 = vsel %vm86, %v974, 0.0
    %990 = vadd.xlane.f32.xlu0 %v989
    %v991 = vpop.xlane.xlu0 %990
    %v992 = vsel %vm86, %v976, 0.0
    %993 = vadd.xlane.f32.xlu0 %v992
    %v994 = vpop.xlane.xlu0 %993
    %v995 = vsel %vm86, %v978, 0.0
    %996 = vadd.xlane.f32.xlu0 %v995
    %v997 = vpop.xlane.xlu0 %996
    %v998 = vsel %vm86, %v980, 0.0
    %999 = vadd.xlane.f32.xlu0 %v998
    %v1000 = vpop.xlane.xlu0 %999
    %v1001 = vsel %vm86, %v982, 0.0
    %1002 = vadd.xlane.f32.xlu0 %v1001
    %v1003 = vpop.xlane.xlu0 %1002
    %v1004 = vsel %vm86, %v984, 0.0
    %1005 = vadd.xlane.f32.xlu0 %v1004
    %v1006 = vpop.xlane.xlu0 %1005
    %v1007 = vsel %vm86, %v986, 0.0
    %1008 = vadd.xlane.f32.xlu0 %v1007
    %v1009 = vpop.xlane.xlu0 %1008
    %v1010 = vsel %vm86, %v988, 0.0
    %1011 = vadd.xlane.f32.xlu0 %v1010
    %v1012 = vpop.xlane.xlu0 %1011
    %v1013 = vrcp.pop %v991
    %v1014 = vrcp.pop %v994
    %v1015 = vrcp.pop %v997
    %v1016 = vrcp.pop %v1000
    %v1017 = vrcp.pop %v1003
    %v1018 = vrcp.pop %v1006
    %v1019 = vrcp.pop %v1009
    %v1020 = vrcp.pop %v1012
    %v1021 = vmul.f32 %v974, %v1013
    %v1022 = vmul.f32 %v976, %v1014
    %v1023 = vmul.f32 %v978, %v1015
    %v1024 = vmul.f32 %v980, %v1016
    %v1025 = vmul.f32 %v982, %v1017
    %v1026 = vmul.f32 %v984, %v1018
    %v1027 = vmul.f32 %v986, %v1019
    %v1028 = vmul.f32 %v988, %v1020
    %v1029 = vpack.c.bf16 %v1022, %v1021
    %v1030 = vpack.c.bf16 %v1024, %v1023
    %v1031 = vpack.c.bf16 %v1026, %v1025
    %v1032 = vpack.c.bf16 %v1028, %v1027
    %1037 = vrot.lane.b32.xlu0 %v223, 96
    %v1038 = vpop.permute.xlu0 %1037
    %1039 = vrot.lane.b32.xlu0 %v224, 96
    %v1040 = vpop.permute.xlu0 %1039
    %1041 = vrot.lane.b32.xlu0 %v225, 96
    %v1042 = vpop.permute.xlu0 %1041
    %1043 = vrot.lane.b32.xlu0 %v226, 96
    %v1044 = vpop.permute.xlu0 %1043
    %v1050 = vsel %vm86, %v1029, 0
    %v1053 = vsel %vm86, %v1030, 0
    %v1056 = vsel %vm86, %v1031, 0
    %v1059 = vsel %vm86, %v1032, 0
    %1061 = vmatprep.subr.bf16.mxu0 0
    %1062 = vmatpush1.bf16.msra.mxu0 %v1038
    %1063 = vmatprep.subr.bf16.mxu0 0
    %1064 = vmatpush1.bf16.msra.mxu0 %v1040
    %1065 = vmatprep.subr.bf16.mxu0 0
    %1066 = vmatpush1.bf16.msra.mxu0 %v1042
    %1067 = vmatprep.subr.bf16.mxu0 0
    %1068 = vmatpush1.bf16.msra.mxu0 %v1044
    %1069 = vmatprep.subr.bf16.mxu0 0
    %1070 = vmatpush1.bf16.msra.mxu0 0
    %1071 = vmatprep.subr.bf16.mxu0 0
    %1072 = vmatpush1.bf16.msra.mxu0 0
    %1073 = vmatprep.subr.bf16.mxu0 0
    %1074 = vmatpush1.bf16.msra.mxu0 0
    %1075 = vmatprep.subr.bf16.mxu0 0
    %1076 = vmatpush1.bf16.msra.mxu0 0
    %1077 = vmatprep.subr.bf16.mxu0 0
    %1078 = vmatpush1.bf16.msra.mxu0 0
    %1079 = vmatprep.subr.bf16.mxu0 0
    %1080 = vmatpush1.bf16.msra.mxu0 0
    %1081 = vmatprep.subr.bf16.mxu0 0
    %1082 = vmatpush1.bf16.msra.mxu0 0
    %1083 = vmatprep.subr.bf16.mxu0 0
    %1084 = vmatpush1.bf16.msra.mxu0 0
    %1085 = vmatprep.subr.bf16.mxu0 0
    %1086 = vmatpush1.bf16.msra.mxu0 0
    %1087 = vmatprep.subr.bf16.mxu0 0
    %1088 = vmatpush1.bf16.msra.mxu0 0
    %1089 = vmatprep.subr.bf16.mxu0 0
    %1090 = vmatpush1.bf16.msra.mxu0 0
    %1091 = vmatprep.subr.bf16.mxu0 0
    %1092 = vmatpush1.bf16.msra.mxu0 0
    %1093 = vmatprep.mubr.bf16.mxu0 0
    %1094 = vmatmul.mubr.bf16.gmra.mrb[0].mxu0 %v1050
    %v1095 = vpop.f32.mrb[0].mxu0
    %v1096 = vadd.f32 0.0, %v1095
    %v1097 = vpop.f32.mrb[0].mxu0
    %v1098 = vpop.f32.mrb[0].mxu0
    %v1099 = vadd.f32 0.0, %v1098
    %v1100 = vpop.f32.mrb[0].mxu0
    %1101 = vmatprep.mubr.bf16.mxu0 0
    %1102 = vmatmul.mubr.bf16.gmra.mrb[0].mxu0 %v1053
    %v1103 = vpop.f32.mrb[0].mxu0
    %v1104 = vadd.f32 0.0, %v1103
    %v1105 = vpop.f32.mrb[0].mxu0
    %v1106 = vpop.f32.mrb[0].mxu0
    %v1107 = vadd.f32 0.0, %v1106
    %v1108 = vpop.f32.mrb[0].mxu0
    %1109 = vmatprep.mubr.bf16.mxu0 0
    %1110 = vmatmul.mubr.bf16.gmra.mrb[0].mxu0 %v1056
    %v1111 = vpop.f32.mrb[0].mxu0
    %v1112 = vadd.f32 0.0, %v1111
    %v1113 = vpop.f32.mrb[0].mxu0
    %v1114 = vpop.f32.mrb[0].mxu0
    %v1115 = vadd.f32 0.0, %v1114
    %v1116 = vpop.f32.mrb[0].mxu0
    %1117 = vmatprep.mubr.bf16.mxu0 0
    %1118 = vmatmul.mubr.bf16.gmra.mrb[0].mxu0 %v1059
    %v1119 = vpop.f32.mrb[0].mxu0
    %v1120 = vadd.f32 0.0, %v1119
    %v1121 = vpop.f32.mrb[0].mxu0
    %v1122 = vpop.f32.mrb[0].mxu0
    %v1123 = vadd.f32 0.0, %v1122
    %v1124 = vpop.f32.mrb[0].mxu0
    %1125 = vdwg.mxu0
    %1128 = vrot.lane.b32.xlu0 %v1104, 8
    %v1129 = vpop.permute.xlu0 %1128
    %1130 = vrot.lane.b32.xlu0 %v1107, 8
    %v1131 = vpop.permute.xlu0 %1130
    %1136 = vrot.lane.b32.xlu0 %v1112, 16
    %v1137 = vpop.permute.xlu0 %1136
    %1138 = vrot.lane.b32.xlu0 %v1115, 16
    %v1139 = vpop.permute.xlu0 %1138
    %1144 = vrot.lane.b32.xlu0 %v1120, 24
    %v1145 = vpop.permute.xlu0 %1144
    %1146 = vrot.lane.b32.xlu0 %v1123, 24
    %v1147 = vpop.permute.xlu0 %1146
    %v1150 = vsel %vm350, %v1096, %v1129
    %v1151 = vsel %vm350, %v1099, %v1131
    %v1152 = vsel %vm647, %v1150, %v1137
    %v1153 = vsel %vm647, %v1151, %v1139
    %v1154 = vsel %vm650, %v1152, %v1145
    %v1155 = vsel %vm650, %v1153, %v1147
    %v1156 = vpack.c.bf16 %v1155, %v1154
    %v1157 = vlaneseq
    %v1158 = vshrl.u32 %v1157, 7
    %v1159 = vsub.s32 0, %v1158
    %v1160 = vrot.slane %v851, %v1159
    %v1165 = vunpack.c.l.b16 %v847
    %v1166 = vunpack.c.l.b16 %v848
    %v1167 = vunpack.c.l.b16 %v849
    %v1168 = vunpack.c.l.b16 %v850
    %v1169 = vpack.c.b16 %v1166, %v1165
    %v1170 = vpack.c.b16 %v1168, %v1167
    %v1174 = vsel %vm158, %v1156, 0
    %1176 = vmatprep.subr.bf16.mxu0 0
    %1177 = vmatpush1.bf16.msra.mxu0 %v1169
    %1178 = vmatprep.subr.bf16.mxu0 0
    %1179 = vmatpush1.bf16.msra.mxu0 %v1170
    %1180 = vmatprep.subr.bf16.mxu0 0
    %1181 = vmatpush1.bf16.msra.mxu0 0
    %1182 = vmatprep.subr.bf16.mxu0 0
    %1183 = vmatpush1.bf16.msra.mxu0 0
    %1184 = vmatprep.subr.bf16.mxu0 0
    %1185 = vmatpush1.bf16.msra.mxu0 0
    %1186 = vmatprep.subr.bf16.mxu0 0
    %1187 = vmatpush1.bf16.msra.mxu0 0
    %1188 = vmatprep.subr.bf16.mxu0 0
    %1189 = vmatpush1.bf16.msra.mxu0 0
    %1190 = vmatprep.subr.bf16.mxu0 0
    %1191 = vmatpush1.bf16.msra.mxu0 0
    %1192 = vmatprep.subr.bf16.mxu0 0
    %1193 = vmatpush1.bf16.msra.mxu0 0
    %1194 = vmatprep.subr.bf16.mxu0 0
    %1195 = vmatpush1.bf16.msra.mxu0 0
    %1196 = vmatprep.subr.bf16.mxu0 0
    %1197 = vmatpush1.bf16.msra.mxu0 0
    %1198 = vmatprep.subr.bf16.mxu0 0
    %1199 = vmatpush1.bf16.msra.mxu0 0
    %1200 = vmatprep.subr.bf16.mxu0 0
    %1201 = vmatpush1.bf16.msra.mxu0 0
    %1202 = vmatprep.subr.bf16.mxu0 0
    %1203 = vmatpush1.bf16.msra.mxu0 0
    %1204 = vmatprep.subr.bf16.mxu0 0
    %1205 = vmatpush1.bf16.msra.mxu0 0
    %1206 = vmatprep.subr.bf16.mxu0 0
    %1207 = vmatpush1.bf16.msra.mxu0 0
    %1208 = vmatprep.mubr.bf16.mxu0 0
    %1209 = vmatmul.mubr.bf16.gmra.mrb[0].mxu0 %v1174
    %v1210 = vpop.f32.mrb[0].mxu0
    %v1211 = vadd.f32 %v1160, %v1210
    %v1212 = vpop.f32.mrb[0].mxu0
    %v1213 = vpop.f32.mrb[0].mxu0
    %v1214 = vadd.f32 %v1160, %v1213
    %v1215 = vpop.f32.mrb[0].mxu0
    %1216 = vdwg.mxu0
    %v1217 = vadd.f32 %v755, %v1211
    %v1218 = vadd.f32 %v756, %v1214
    %v1219 = vld [vmem:[%s5 + $0x1a] sm:$0x1]
    %v1220 = vld [vmem:[%s5 + $0x1b] sm:$0x1]
    %v1221 = vsel %vm158, %v1217, 0.0
    %1222 = vadd.xlane.f32.xlu0 %v1221
    %v1223 = vpop.xlane.xlu0 %1222
    %v1224 = vsel %vm158, %v1218, 0.0
    %1225 = vadd.xlane.f32.xlu0 %v1224
    %v1226 = vpop.xlane.xlu0 %1225
    %v1227 = vmul.f32 %v1223, %v724
    %v1228 = vmul.f32 %v1226, %v724
    %v1229 = vsub.f32 %v1217, %v1227
    %v1230 = vsub.f32 %v1218, %v1228
    %v1231 = vmul.f32 %v1229, %v1229
    %v1232 = vmul.f32 %v1230, %v1230
    %v1233 = vsel %vm158, %v1231, 0.0
    %1234 = vadd.xlane.f32.xlu0 %v1233
    %v1235 = vpop.xlane.xlu0 %1234
    %v1236 = vsel %vm158, %v1232, 0.0
    %1237 = vadd.xlane.f32.xlu0 %v1236
    %v1238 = vpop.xlane.xlu0 %1237
    %v1239 = vmul.f32 %v1235, %v724
    %v1240 = vmul.f32 %v1238, %v724
    %v1241 = vadd.f32 %v1239, 1e-05
    %v1242 = vadd.f32 %v1240, 1e-05
    %v1243 = vrsqrt.pop %v1241
    %v1244 = vrsqrt.pop %v1242
    %v1245 = vmul.f32 %v1229, %v1243
    %v1246 = vmul.f32 %v1230, %v1244
    %v1247 = vlaneseq
    %v1248 = vshrl.u32 %v1247, 7
    %v1249 = vsub.s32 0, %v1248
    %v1250 = vrot.slane %v1219, %v1249
    %v1251 = vmul.f32 %v1245, %v1250
    %v1252 = vmul.f32 %v1246, %v1250
    %v1253 = vlaneseq
    %v1254 = vshrl.u32 %v1253, 7
    %v1255 = vsub.s32 0, %v1254
    %v1256 = vrot.slane %v1220, %v1255
    %v1257 = vadd.f32 %v1251, %v1256
    %v1258 = vadd.f32 %v1252, %v1256
    %v1259 = vld [vmem:[#allocation2 + $0x40] sm:$0xf]
    %v1260 = vld [vmem:[#allocation2 + $0x44] sm:$0xf]
    %v1261 = vld [vmem:[#allocation2 + $0x48] sm:$0xf]
    %v1262 = vld [vmem:[#allocation2 + $0x4c] sm:$0xf]
    %v1263 = vpack.c.bf16 %v1258, %v1257
    %v1264 = vld [vmem:[%s5 + $0x16] sm:$0x1]
    %v1265 = vlaneseq
    %v1266 = vshrl.u32 %v1265, 7
    %v1267 = vsub.s32 0, %v1266
    %v1268 = vrot.slane %v1264, %v1267
    %v1273 = vunpack.c.l.b16 %v1259
    %v1274 = vunpack.c.l.b16 %v1260
    %v1275 = vunpack.c.l.b16 %v1261
    %v1276 = vunpack.c.l.b16 %v1262
    %v1277 = vpack.c.b16 %v1274, %v1273
    %v1278 = vpack.c.b16 %v1276, %v1275
    %v1282 = vsel %vm158, %v1263, 0
    %1284 = vmatprep.subr.bf16.mxu0 0
    %1285 = vmatpush1.bf16.msra.mxu0 %v1277
    %1286 = vmatprep.subr.bf16.mxu0 0
    %1287 = vmatpush1.bf16.msra.mxu0 %v1278
    %1288 = vmatprep.subr.bf16.mxu0 0
    %1289 = vmatpush1.bf16.msra.mxu0 0
    %1290 = vmatprep.subr.bf16.mxu0 0
    %1291 = vmatpush1.bf16.msra.mxu0 0
    %1292 = vmatprep.subr.bf16.mxu0 0
    %1293 = vmatpush1.bf16.msra.mxu0 0
    %1294 = vmatprep.subr.bf16.mxu0 0
    %1295 = vmatpush1.bf16.msra.mxu0 0
    %1296 = vmatprep.subr.bf16.mxu0 0
    %1297 = vmatpush1.bf16.msra.mxu0 0
    %1298 = vmatprep.subr.bf16.mxu0 0
    %1299 = vmatpush1.bf16.msra.mxu0 0
    %1300 = vmatprep.subr.bf16.mxu0 0
    %1301 = vmatpush1.bf16.msra.mxu0 0
    %1302 = vmatprep.subr.bf16.mxu0 0
    %1303 = vmatpush1.bf16.msra.mxu0 0
    %1304 = vmatprep.subr.bf16.mxu0 0
    %1305 = vmatpush1.bf16.msra.mxu0 0
    %1306 = vmatprep.subr.bf16.mxu0 0
    %1307 = vmatpush1.bf16.msra.mxu0 0
    %1308 = vmatprep.subr.bf16.mxu0 0
    %1309 = vmatpush1.bf16.msra.mxu0 0
    %1310 = vmatprep.subr.bf16.mxu0 0
    %1311 = vmatpush1.bf16.msra.mxu0 0
    %1312 = vmatprep.subr.bf16.mxu0 0
    %1313 = vmatpush1.bf16.msra.mxu0 0
    %1314 = vmatprep.subr.bf16.mxu0 0
    %1315 = vmatpush1.bf16.msra.mxu0 0
    %1316 = vmatprep.mubr.bf16.mxu0 0
    %1317 = vmatmul.mubr.bf16.gmra.mrb[0].mxu0 %v1282
    %v1318 = vpop.f32.mrb[0].mxu0
    %v1319 = vadd.f32 %v1268, %v1318
    %v1320 = vpop.f32.mrb[0].mxu0
    %v1321 = vpop.f32.mrb[0].mxu0
    %v1322 = vadd.f32 %v1268, %v1321
    %v1323 = vpop.f32.mrb[0].mxu0
    %1324 = vdwg.mxu0
    %v1325 = vmax.f32 %v1319, 0.0
    %v1326 = vmax.f32 %v1322, 0.0
    %v1327 = vld [vmem:[#allocation2 + $0x50] sm:$0xf]
    %v1328 = vld [vmem:[#allocation2 + $0x54] sm:$0xf]
    %v1329 = vld [vmem:[#allocation2 + $0x58] sm:$0xf]
    %v1330 = vld [vmem:[#allocation2 + $0x5c] sm:$0xf]
    %v1331 = vld [vmem:[#allocation2 + $0x60] sm:$0xf]
    %v1332 = vld [vmem:[#allocation2 + $0x64] sm:$0xf]
    %v1333 = vld [vmem:[#allocation2 + $0x68] sm:$0xf]
    %v1334 = vld [vmem:[#allocation2 + $0x6c] sm:$0xf]
    %v1335 = vld [vmem:[#allocation2 + $0x70] sm:$0xf]
    %v1336 = vld [vmem:[#allocation2 + $0x74] sm:$0xf]
    %v1337 = vld [vmem:[#allocation2 + $0x78] sm:$0xf]
    %v1338 = vld [vmem:[#allocation2 + $0x7c] sm:$0xf]
    %v1339 = vld [vmem:[#allocation2 + $0x80] sm:$0xf]
    %v1340 = vld [vmem:[#allocation2 + $0x84] sm:$0xf]
    %v1341 = vld [vmem:[#allocation2 + $0x88] sm:$0xf]
    %v1342 = vld [vmem:[#allocation2 + $0x8c] sm:$0xf]
    %v1343 = vpack.c.bf16 %v1326, %v1325
    %v1344 = vld [vmem:[%s5 + $0x17] sm:$0x1]
    %v1345 = vlaneseq
    %v1346 = vshrl.u32 %v1345, 7
    %v1347 = vsub.s32 0, %v1346
    %v1348 = vrot.slane %v1344, %v1347
    %v1365 = vunpack.c.l.b16 %v1327
    %v1366 = vunpack.c.l.b16 %v1328
    %v1367 = vunpack.c.l.b16 %v1329
    %v1368 = vunpack.c.l.b16 %v1330
    %v1369 = vunpack.c.l.b16 %v1331
    %v1370 = vunpack.c.l.b16 %v1332
    %v1371 = vunpack.c.l.b16 %v1333
    %v1372 = vunpack.c.l.b16 %v1334
    %v1373 = vunpack.c.l.b16 %v1335
    %v1374 = vunpack.c.l.b16 %v1336
    %v1375 = vunpack.c.l.b16 %v1337
    %v1376 = vunpack.c.l.b16 %v1338
    %v1377 = vunpack.c.l.b16 %v1339
    %v1378 = vunpack.c.l.b16 %v1340
    %v1379 = vunpack.c.l.b16 %v1341
    %v1380 = vunpack.c.l.b16 %v1342
    %v1381 = vpack.c.b16 %v1366, %v1365
    %v1382 = vpack.c.b16 %v1368, %v1367
    %v1383 = vpack.c.b16 %v1370, %v1369
    %v1384 = vpack.c.b16 %v1372, %v1371
    %v1385 = vpack.c.b16 %v1374, %v1373
    %v1386 = vpack.c.b16 %v1376, %v1375
    %v1387 = vpack.c.b16 %v1378, %v1377
    %v1388 = vpack.c.b16 %v1380, %v1379
    %1397 = vmatprep.subr.bf16.mxu0 0
    %1398 = vmatpush1.bf16.msra.mxu0 %v1381
    %1399 = vmatprep.subr.bf16.mxu0 0
    %1400 = vmatpush1.bf16.msra.mxu0 %v1382
    %1401 = vmatprep.subr.bf16.mxu0 0
    %1402 = vmatpush1.bf16.msra.mxu0 %v1383
    %1403 = vmatprep.subr.bf16.mxu0 0
    %1404 = vmatpush1.bf16.msra.mxu0 %v1384
    %1405 = vmatprep.subr.bf16.mxu0 0
    %1406 = vmatpush1.bf16.msra.mxu0 %v1385
    %1407 = vmatprep.subr.bf16.mxu0 0
    %1408 = vmatpush1.bf16.msra.mxu0 %v1386
    %1409 = vmatprep.subr.bf16.mxu0 0
    %1410 = vmatpush1.bf16.msra.mxu0 %v1387
    %1411 = vmatprep.subr.bf16.mxu0 0
    %1412 = vmatpush1.bf16.msra.mxu0 %v1388
    %1413 = vmatprep.subr.bf16.mxu0 0
    %1414 = vmatpush1.bf16.msra.mxu0 0
    %1415 = vmatprep.subr.bf16.mxu0 0
    %1416 = vmatpush1.bf16.msra.mxu0 0
    %1417 = vmatprep.subr.bf16.mxu0 0
    %1418 = vmatpush1.bf16.msra.mxu0 0
    %1419 = vmatprep.subr.bf16.mxu0 0
    %1420 = vmatpush1.bf16.msra.mxu0 0
    %1421 = vmatprep.subr.bf16.mxu0 0
    %1422 = vmatpush1.bf16.msra.mxu0 0
    %1423 = vmatprep.subr.bf16.mxu0 0
    %1424 = vmatpush1.bf16.msra.mxu0 0
    %1425 = vmatprep.subr.bf16.mxu0 0
    %1426 = vmatpush1.bf16.msra.mxu0 0
    %1427 = vmatprep.subr.bf16.mxu0 0
    %1428 = vmatpush1.bf16.msra.mxu0 0
    %1429 = vmatprep.mubr.bf16.mxu0 0
    %1430 = vmatmul.mubr.bf16.gmra.mrb[0].mxu0 %v1343
    %v1431 = vpop.f32.mrb[0].mxu0
    %v1432 = vadd.f32 %v1348, %v1431
    %v1433 = vpop.f32.mrb[0].mxu0
    %v1434 = vpop.f32.mrb[0].mxu0
    %v1435 = vadd.f32 %v1348, %v1434
    %v1436 = vpop.f32.mrb[0].mxu0
    %1437 = vdwg.mxu0
    %v1438 = vadd.f32 %v1257, %v1432
    %v1439 = vadd.f32 %v1258, %v1435
    %v1440 = vld [vmem:[%s5 + $0x1c] sm:$0x1]
    %v1441 = vld [vmem:[%s5 + $0x1d] sm:$0x1]
    %v1442 = vsel %vm158, %v1438, 0.0
    %1443 = vadd.xlane.f32.xlu0 %v1442
    %v1444 = vpop.xlane.xlu0 %1443
    %v1445 = vsel %vm158, %v1439, 0.0
    %1446 = vadd.xlane.f32.xlu0 %v1445
    %v1447 = vpop.xlane.xlu0 %1446
    %v1448 = vmul.f32 %v1444, %v724
    %v1449 = vmul.f32 %v1447, %v724
    %v1450 = vsub.f32 %v1438, %v1448
    %v1451 = vsub.f32 %v1439, %v1449
    %v1452 = vmul.f32 %v1450, %v1450
    %v1453 = vmul.f32 %v1451, %v1451
    %v1454 = vsel %vm158, %v1452, 0.0
    %1455 = vadd.xlane.f32.xlu0 %v1454
    %v1456 = vpop.xlane.xlu0 %1455
    %v1457 = vsel %vm158, %v1453, 0.0
    %1458 = vadd.xlane.f32.xlu0 %v1457
    %v1459 = vpop.xlane.xlu0 %1458
    %v1460 = vmul.f32 %v1456, %v724
    %v1461 = vmul.f32 %v1459, %v724
    %v1462 = vadd.f32 %v1460, 1e-05
    %v1463 = vadd.f32 %v1461, 1e-05
    %v1464 = vrsqrt.pop %v1462
    %v1465 = vrsqrt.pop %v1463
    %v1466 = vmul.f32 %v1450, %v1464
    %v1467 = vmul.f32 %v1451, %v1465
    %v1468 = vlaneseq
    %v1469 = vshrl.u32 %v1468, 7
    %v1470 = vsub.s32 0, %v1469
    %v1471 = vrot.slane %v1440, %v1470
    %v1472 = vmul.f32 %v1466, %v1471
    %v1473 = vmul.f32 %v1467, %v1471
    %v1474 = vlaneseq
    %v1475 = vshrl.u32 %v1474, 7
    %v1476 = vsub.s32 0, %v1475
    %v1477 = vrot.slane %v1441, %v1476
    %v1478 = vadd.f32 %v1472, %v1477
    %v1479 = vadd.f32 %v1473, %v1477
    %v1480 = vld [vmem:[#allocation2 + $0x90] sm:$0xf]
    %v1481 = vld [vmem:[#allocation2 + $0x94] sm:$0xf]
    %v1482 = vld [vmem:[#allocation2 + $0x98] sm:$0xf]
    %v1483 = vld [vmem:[#allocation2 + $0x9c] sm:$0xf]
    %v1484 = vpack.c.bf16 %v1479, %v1478
    %v1485 = vld [vmem:[%s5 + $0x1e] sm:$0x1]
    %v1486 = vlaneseq
    %v1487 = vshrl.u32 %v1486, 7
    %v1488 = vsub.s32 0, %v1487
    %v1489 = vrot.slane %v1485, %v1488
    %v1494 = vunpack.c.l.b16 %v1480
    %v1495 = vunpack.c.l.b16 %v1481
    %v1496 = vunpack.c.l.b16 %v1482
    %v1497 = vunpack.c.l.b16 %v1483
    %v1498 = vpack.c.b16 %v1495, %v1494
    %v1499 = vpack.c.b16 %v1497, %v1496
    %v1503 = vsel %vm158, %v1484, 0
    %1505 = vmatprep.subr.bf16.mxu0 0
    %1506 = vmatpush1.bf16.msra.mxu0 %v1498
    %1507 = vmatprep.subr.bf16.mxu0 0
    %1508 = vmatpush1.bf16.msra.mxu0 %v1499
    %1509 = vmatprep.subr.bf16.mxu0 0
    %1510 = vmatpush1.bf16.msra.mxu0 0
    %1511 = vmatprep.subr.bf16.mxu0 0
    %1512 = vmatpush1.bf16.msra.mxu0 0
    %1513 = vmatprep.subr.bf16.mxu0 0
    %1514 = vmatpush1.bf16.msra.mxu0 0
    %1515 = vmatprep.subr.bf16.mxu0 0
    %1516 = vmatpush1.bf16.msra.mxu0 0
    %1517 = vmatprep.subr.bf16.mxu0 0
    %1518 = vmatpush1.bf16.msra.mxu0 0
    %1519 = vmatprep.subr.bf16.mxu0 0
    %1520 = vmatpush1.bf16.msra.mxu0 0
    %1521 = vmatprep.subr.bf16.mxu0 0
    %1522 = vmatpush1.bf16.msra.mxu0 0
    %1523 = vmatprep.subr.bf16.mxu0 0
    %1524 = vmatpush1.bf16.msra.mxu0 0
    %1525 = vmatprep.subr.bf16.mxu0 0
    %1526 = vmatpush1.bf16.msra.mxu0 0
    %1527 = vmatprep.subr.bf16.mxu0 0
    %1528 = vmatpush1.bf16.msra.mxu0 0
    %1529 = vmatprep.subr.bf16.mxu0 0
    %1530 = vmatpush1.bf16.msra.mxu0 0
    %1531 = vmatprep.subr.bf16.mxu0 0
    %1532 = vmatpush1.bf16.msra.mxu0 0
    %1533 = vmatprep.subr.bf16.mxu0 0
    %1534 = vmatpush1.bf16.msra.mxu0 0
    %1535 = vmatprep.subr.bf16.mxu0 0
    %1536 = vmatpush1.bf16.msra.mxu0 0
    %1537 = vmatprep.mubr.bf16.mxu0 0
    %1538 = vmatmul.mubr.bf16.gmra.mrb[0].mxu0 %v1503
    %v1539 = vpop.f32.mrb[0].mxu0
    %v1540 = vadd.f32 %v1489, %v1539
    %v1541 = vpop.f32.mrb[0].mxu0
    %v1542 = vpop.f32.mrb[0].mxu0
    %v1543 = vadd.f32 %v1489, %v1542
    %v1544 = vpop.f32.mrb[0].mxu0
    %1545 = vdwg.mxu0
    %1548 = vrot.lane.b32.xlu0 %v1540, 120
    %v1549 = vpop.permute.xlu0 %1548
    %1550 = vrot.lane.b32.xlu0 %v1543, 120
    %v1551 = vpop.permute.xlu0 %1550
    %1554 = vrot.lane.b32.xlu0 %v1540, 112
    %v1555 = vpop.permute.xlu0 %1554
    %1556 = vrot.lane.b32.xlu0 %v1543, 112
    %v1557 = vpop.permute.xlu0 %1556
    %1560 = vrot.lane.b32.xlu0 %v1540, 104
    %v1561 = vpop.permute.xlu0 %1560
    %1562 = vrot.lane.b32.xlu0 %v1543, 104
    %v1563 = vpop.permute.xlu0 %1562
    %v1566 = vpack.c.bf16 %v1543, %v1540
    %v1567 = vpack.c.bf16 %v1551, %v1549
    %v1568 = vpack.c.bf16 %v1557, %v1555
    %v1569 = vpack.c.bf16 %v1563, %v1561
    %v1570 = vld [vmem:[#allocation2 + $0xa0] sm:$0xf]
    %v1571 = vld [vmem:[#allocation2 + $0xa4] sm:$0xf]
    %v1572 = vld [vmem:[#allocation2 + $0xa8] sm:$0xf]
    %v1573 = vld [vmem:[#allocation2 + $0xac] sm:$0xf]
    %v1574 = vld [vmem:[%s5 + $0x1f] sm:$0x1]
    %1579 = vrot.lane.b32.xlu0 %v1566, 96
    %v1580 = vpop.permute.xlu0 %1579
    %1581 = vrot.lane.b32.xlu0 %v1567, 96
    %v1582 = vpop.permute.xlu0 %1581
    %1583 = vrot.lane.b32.xlu0 %v1568, 96
    %v1584 = vpop.permute.xlu0 %1583
    %1585 = vrot.lane.b32.xlu0 %v1569, 96
    %v1586 = vpop.permute.xlu0 %1585
    %v1588 = vsel %vm350, %v1566, 0
    %v1591 = vsel %vm350, %v1567, 0
    %v1594 = vsel %vm350, %v1568, 0
    %v1597 = vsel %vm350, %v1569, 0
    %v1600 = vsel %vm350, %v1580, 0
    %v1603 = vsel %vm350, %v1582, 0
    %v1606 = vsel %vm350, %v1584, 0
    %v1609 = vsel %vm350, %v1586, 0
    %1611 = vmatprep.subr.bf16.mxu0 0
    %1612 = vmatpush1.bf16.xpose.msra.mxu0 %v1600
    %1613 = vmatprep.subr.bf16.mxu0 0
    %1614 = vmatpush1.bf16.xpose.msra.mxu0 %v1603
    %1615 = vmatprep.subr.bf16.mxu0 0
    %1616 = vmatpush1.bf16.xpose.msra.mxu0 %v1606
    %1617 = vmatprep.subr.bf16.mxu0 0
    %1618 = vmatpush1.bf16.xpose.msra.mxu0 %v1609
    %1619 = vmatprep.subr.bf16.mxu0 0
    %1620 = vmatpush1.bf16.xpose.msra.mxu0 0
    %1621 = vmatprep.subr.bf16.mxu0 0
    %1622 = vmatpush1.bf16.xpose.msra.mxu0 0
    %1623 = vmatprep.subr.bf16.mxu0 0
    %1624 = vmatpush1.bf16.xpose.msra.mxu0 0
    %1625 = vmatprep.subr.bf16.mxu0 0
    %1626 = vmatpush1.bf16.xpose.msra.mxu0 0
    %1627 = vmatprep.subr.bf16.mxu0 0
    %1628 = vmatpush1.bf16.xpose.msra.mxu0 0
    %1629 = vmatprep.subr.bf16.mxu0 0
    %1630 = vmatpush1.bf16.xpose.msra.mxu0 0
    %1631 = vmatprep.subr.bf16.mxu0 0
    %1632 = vmatpush1.bf16.xpose.msra.mxu0 0
    %1633 = vmatprep.subr.bf16.mxu0 0
    %1634 = vmatpush1.bf16.xpose.msra.mxu0 0
    %1635 = vmatprep.subr.bf16.mxu0 0
    %1636 = vmatpush1.bf16.xpose.msra.mxu0 0
    %1637 = vmatprep.subr.bf16.mxu0 0
    %1638 = vmatpush1.bf16.xpose.msra.mxu0 0
    %1639 = vmatprep.subr.bf16.mxu0 0
    %1640 = vmatpush1.bf16.xpose.msra.mxu0 0
    %1641 = vmatprep.subr.bf16.mxu0 0
    %1642 = vmatpush1.bf16.xpose.msra.mxu0 0
    %1643 = vmatprep.mubr.bf16.mxu0 0
    %1644 = vmatmul.mubr.bf16.gmra.mrb[0].mxu0 %v1588
    %v1645 = vpop.f32.mrb[0].mxu0
    %v1646 = vadd.f32 %v227, %v1645
    %v1647 = vpop.f32.mrb[0].mxu0
    %v1648 = vpop.f32.mrb[0].mxu0
    %v1649 = vadd.f32 %v228, %v1648
    %v1650 = vpop.f32.mrb[0].mxu0
    %1651 = vmatprep.mubr.bf16.mxu0 0
    %1652 = vmatmul.mubr.bf16.gmra.mrb[0].mxu0 %v1591
    %v1653 = vpop.f32.mrb[0].mxu0
    %v1654 = vadd.f32 %v229, %v1653
    %v1655 = vpop.f32.mrb[0].mxu0
    %v1656 = vpop.f32.mrb[0].mxu0
    %v1657 = vadd.f32 %v230, %v1656
    %v1658 = vpop.f32.mrb[0].mxu0
    %1659 = vmatprep.mubr.bf16.mxu0 0
    %1660 = vmatmul.mubr.bf16.gmra.mrb[0].mxu0 %v1594
    %v1661 = vpop.f32.mrb[0].mxu0
    %v1662 = vadd.f32 %v231, %v1661
    %v1663 = vpop.f32.mrb[0].mxu0
    %v1664 = vpop.f32.mrb[0].mxu0
    %v1665 = vadd.f32 %v232, %v1664
    %v1666 = vpop.f32.mrb[0].mxu0
    %1667 = vmatprep.mubr.bf16.mxu0 0
    %1668 = vmatmul.mubr.bf16.gmra.mrb[0].mxu0 %v1597
    %v1669 = vpop.f32.mrb[0].mxu0
    %v1670 = vadd.f32 %v233, %v1669
    %v1671 = vpop.f32.mrb[0].mxu0
    %v1672 = vpop.f32.mrb[0].mxu0
    %v1673 = vadd.f32 %v234, %v1672
    %v1674 = vpop.f32.mrb[0].mxu0
    %1675 = vdwg.mxu0
    %v1676 = vsel %vm86, %v1646, -inf
    %1677 = vmax.xlane.f32.xlu0 %v1676
    %v1678 = vpop.xlane.xlu0 %1677
    %v1679 = vsel %vm86, %v1649, -inf
    %1680 = vmax.xlane.f32.xlu0 %v1679
    %v1681 = vpop.xlane.xlu0 %1680
    %v1682 = vsel %vm86, %v1654, -inf
    %1683 = vmax.xlane.f32.xlu0 %v1682
    %v1684 = vpop.xlane.xlu0 %1683
    %v1685 = vsel %vm86, %v1657, -inf
    %1686 = vmax.xlane.f32.xlu0 %v1685
    %v1687 = vpop.xlane.xlu0 %1686
    %v1688 = vsel %vm86, %v1662, -inf
    %1689 = vmax.xlane.f32.xlu0 %v1688
    %v1690 = vpop.xlane.xlu0 %1689
    %v1691 = vsel %vm86, %v1665, -inf
    %1692 = vmax.xlane.f32.xlu0 %v1691
    %v1693 = vpop.xlane.xlu0 %1692
    %v1694 = vsel %vm86, %v1670, -inf
    %1695 = vmax.xlane.f32.xlu0 %v1694
    %v1696 = vpop.xlane.xlu0 %1695
    %v1697 = vsel %vm86, %v1673, -inf
    %1698 = vmax.xlane.f32.xlu0 %v1697
    %v1699 = vpop.xlane.xlu0 %1698
    %v1700 = vsub.f32 %v1646, %v1678
    %v1701 = vsub.f32 %v1649, %v1681
    %v1702 = vsub.f32 %v1654, %v1684
    %v1703 = vsub.f32 %v1657, %v1687
    %v1704 = vsub.f32 %v1662, %v1690
    %v1705 = vsub.f32 %v1665, %v1693
    %v1706 = vsub.f32 %v1670, %v1696
    %v1707 = vsub.f32 %v1673, %v1699
    %v1708 = vmul.f32 %v1700, 1.442695
    %v1709 = vpow.pop %v1708
    %v1710 = vmul.f32 %v1701, 1.442695
    %v1711 = vpow.pop %v1710
    %v1712 = vmul.f32 %v1702, 1.442695
    %v1713 = vpow.pop %v1712
    %v1714 = vmul.f32 %v1703, 1.442695
    %v1715 = vpow.pop %v1714
    %v1716 = vmul.f32 %v1704, 1.442695
    %v1717 = vpow.pop %v1716
    %v1718 = vmul.f32 %v1705, 1.442695
    %v1719 = vpow.pop %v1718
    %v1720 = vmul.f32 %v1706, 1.442695
    %v1721 = vpow.pop %v1720
    %v1722 = vmul.f32 %v1707, 1.442695
    %v1723 = vpow.pop %v1722
    %v1724 = vsel %vm86, %v1709, 0.0
    %1725 = vadd.xlane.f32.xlu0 %v1724
    %v1726 = vpop.xlane.xlu0 %1725
    %v1727 = vsel %vm86, %v1711, 0.0
    %1728 = vadd.xlane.f32.xlu0 %v1727
    %v1729 = vpop.xlane.xlu0 %1728
    %v1730 = vsel %vm86, %v1713, 0.0
    %1731 = vadd.xlane.f32.xlu0 %v1730
    %v1732 = vpop.xlane.xlu0 %1731
    %v1733 = vsel %vm86, %v1715, 0.0
    %1734 = vadd.xlane.f32.xlu0 %v1733
    %v1735 = vpop.xlane.xlu0 %1734
    %v1736 = vsel %vm86, %v1717, 0.0
    %1737 = vadd.xlane.f32.xlu0 %v1736
    %v1738 = vpop.xlane.xlu0 %1737
    %v1739 = vsel %vm86, %v1719, 0.0
    %1740 = vadd.xlane.f32.xlu0 %v1739
    %v1741 = vpop.xlane.xlu0 %1740
    %v1742 = vsel %vm86, %v1721, 0.0
    %1743 = vadd.xlane.f32.xlu0 %v1742
    %v1744 = vpop.xlane.xlu0 %1743
    %v1745 = vsel %vm86, %v1723, 0.0
    %1746 = vadd.xlane.f32.xlu0 %v1745
    %v1747 = vpop.xlane.xlu0 %1746
    %v1748 = vrcp.pop %v1726
    %v1749 = vrcp.pop %v1729
    %v1750 = vrcp.pop %v1732
    %v1751 = vrcp.pop %v1735
    %v1752 = vrcp.pop %v1738
    %v1753 = vrcp.pop %v1741
    %v1754 = vrcp.pop %v1744
    %v1755 = vrcp.pop %v1747
    %v1756 = vmul.f32 %v1709, %v1748
    %v1757 = vmul.f32 %v1711, %v1749
    %v1758 = vmul.f32 %v1713, %v1750
    %v1759 = vmul.f32 %v1715, %v1751
    %v1760 = vmul.f32 %v1717, %v1752
    %v1761 = vmul.f32 %v1719, %v1753
    %v1762 = vmul.f32 %v1721, %v1754
    %v1763 = vmul.f32 %v1723, %v1755
    %v1764 = vpack.c.bf16 %v1757, %v1756
    %v1765 = vpack.c.bf16 %v1759, %v1758
    %v1766 = vpack.c.bf16 %v1761, %v1760
    %v1767 = vpack.c.bf16 %v1763, %v1762
    %1768 = vrot.lane.b32.xlu0 %v1566, 64
    %v1769 = vpop.permute.xlu0 %1768
    %1770 = vrot.lane.b32.xlu0 %v1567, 64
    %v1771 = vpop.permute.xlu0 %1770
    %1772 = vrot.lane.b32.xlu0 %v1568, 64
    %v1773 = vpop.permute.xlu0 %1772
    %1774 = vrot.lane.b32.xlu0 %v1569, 64
    %v1775 = vpop.permute.xlu0 %1774
    %v1781 = vsel %vm86, %v1764, 0
    %v1784 = vsel %vm86, %v1765, 0
    %v1787 = vsel %vm86, %v1766, 0
    %v1790 = vsel %vm86, %v1767, 0
    %1792 = vmatprep.subr.bf16.mxu0 0
    %1793 = vmatpush1.bf16.msra.mxu0 %v1769
    %1794 = vmatprep.subr.bf16.mxu0 0
    %1795 = vmatpush1.bf16.msra.mxu0 %v1771
    %1796 = vmatprep.subr.bf16.mxu0 0
    %1797 = vmatpush1.bf16.msra.mxu0 %v1773
    %1798 = vmatprep.subr.bf16.mxu0 0
    %1799 = vmatpush1.bf16.msra.mxu0 %v1775
    %1800 = vmatprep.subr.bf16.mxu0 0
    %1801 = vmatpush1.bf16.msra.mxu0 0
    %1802 = vmatprep.subr.bf16.mxu0 0
    %1803 = vmatpush1.bf16.msra.mxu0 0
    %1804 = vmatprep.subr.bf16.mxu0 0
    %1805 = vmatpush1.bf16.msra.mxu0 0
    %1806 = vmatprep.subr.bf16.mxu0 0
    %1807 = vmatpush1.bf16.msra.mxu0 0
    %1808 = vmatprep.subr.bf16.mxu0 0
    %1809 = vmatpush1.bf16.msra.mxu0 0
    %1810 = vmatprep.subr.bf16.mxu0 0
    %1811 = vmatpush1.bf16.msra.mxu0 0
    %1812 = vmatprep.subr.bf16.mxu0 0
    %1813 = vmatpush1.bf16.msra.mxu0 0
    %1814 = vmatprep.subr.bf16.mxu0 0
    %1815 = vmatpush1.bf16.msra.mxu0 0
    %1816 = vmatprep.subr.bf16.mxu0 0
    %1817 = vmatpush1.bf16.msra.mxu0 0
    %1818 = vmatprep.subr.bf16.mxu0 0
    %1819 = vmatpush1.bf16.msra.mxu0 0
    %1820 = vmatprep.subr.bf16.mxu0 0
    %1821 = vmatpush1.bf16.msra.mxu0 0
    %1822 = vmatprep.subr.bf16.mxu0 0
    %1823 = vmatpush1.bf16.msra.mxu0 0
    %1824 = vmatprep.mubr.bf16.mxu0 0
    %1825 = vmatmul.mubr.bf16.gmra.mrb[0].mxu0 %v1781
    %v1826 = vpop.f32.mrb[0].mxu0
    %v1827 = vadd.f32 0.0, %v1826
    %v1828 = vpop.f32.mrb[0].mxu0
    %v1829 = vpop.f32.mrb[0].mxu0
    %v1830 = vadd.f32 0.0, %v1829
    %v1831 = vpop.f32.mrb[0].mxu0
    %1832 = vmatprep.mubr.bf16.mxu0 0
    %1833 = vmatmul.mubr.bf16.gmra.mrb[0].mxu0 %v1784
    %v1834 = vpop.f32.mrb[0].mxu0
    %v1835 = vadd.f32 0.0, %v1834
    %v1836 = vpop.f32.mrb[0].mxu0
    %v1837 = vpop.f32.mrb[0].mxu0
    %v1838 = vadd.f32 0.0, %v1837
    %v1839 = vpop.f32.mrb[0].mxu0
    %1840 = vmatprep.mubr.bf16.mxu0 0
    %1841 = vmatmul.mubr.bf16.gmra.mrb[0].mxu0 %v1787
    %v1842 = vpop.f32.mrb[0].mxu0
    %v1843 = vadd.f32 0.0, %v1842
    %v1844 = vpop.f32.mrb[0].mxu0
    %v1845 = vpop.f32.mrb[0].mxu0
    %v1846 = vadd.f32 0.0, %v1845
    %v1847 = vpop.f32.mrb[0].mxu0
    %1848 = vmatprep.mubr.bf16.mxu0 0
    %1849 = vmatmul.mubr.bf16.gmra.mrb[0].mxu0 %v1790
    %v1850 = vpop.f32.mrb[0].mxu0
    %v1851 = vadd.f32 0.0, %v1850
    %v1852 = vpop.f32.mrb[0].mxu0
    %v1853 = vpop.f32.mrb[0].mxu0
    %v1854 = vadd.f32 0.0, %v1853
    %v1855 = vpop.f32.mrb[0].mxu0
    %1856 = vdwg.mxu0
    %1859 = vrot.lane.b32.xlu0 %v1835, 8
    %v1860 = vpop.permute.xlu0 %1859
    %1861 = vrot.lane.b32.xlu0 %v1838, 8
    %v1862 = vpop.permute.xlu0 %1861
    %1867 = vrot.lane.b32.xlu0 %v1843, 16
    %v1868 = vpop.permute.xlu0 %1867
    %1869 = vrot.lane.b32.xlu0 %v1846, 16
    %v1870 = vpop.permute.xlu0 %1869
    %1875 = vrot.lane.b32.xlu0 %v1851, 24
    %v1876 = vpop.permute.xlu0 %1875
    %1877 = vrot.lane.b32.xlu0 %v1854, 24
    %v1878 = vpop.permute.xlu0 %1877
    %v1881 = vsel %vm350, %v1827, %v1860
    %v1882 = vsel %vm350, %v1830, %v1862
    %v1883 = vsel %vm647, %v1881, %v1868
    %v1884 = vsel %vm647, %v1882, %v1870
    %v1885 = vsel %vm650, %v1883, %v1876
    %v1886 = vsel %vm650, %v1884, %v1878
    %v1887 = vpack.c.bf16 %v1886, %v1885
    %v1888 = vlaneseq
    %v1889 = vshrl.u32 %v1888, 7
    %v1890 = vsub.s32 0, %v1889
    %v1891 = vrot.slane %v1574, %v1890
    %v1896 = vunpack.c.l.b16 %v1570
    %v1897 = vunpack.c.l.b16 %v1571
    %v1898 = vunpack.c.l.b16 %v1572
    %v1899 = vunpack.c.l.b16 %v1573
    %v1900 = vpack.c.b16 %v1897, %v1896
    %v1901 = vpack.c.b16 %v1899, %v1898
    %v1905 = vsel %vm158, %v1887, 0
    %1907 = vmatprep.subr.bf16.mxu0 0
    %1908 = vmatpush1.bf16.msra.mxu0 %v1900
    %1909 = vmatprep.subr.bf16.mxu0 0
    %1910 = vmatpush1.bf16.msra.mxu0 %v1901
    %1911 = vmatprep.subr.bf16.mxu0 0
    %1912 = vmatpush1.bf16.msra.mxu0 0
    %1913 = vmatprep.subr.bf16.mxu0 0
    %1914 = vmatpush1.bf16.msra.mxu0 0
    %1915 = vmatprep.subr.bf16.mxu0 0
    %1916 = vmatpush1.bf16.msra.mxu0 0
    %1917 = vmatprep.subr.bf16.mxu0 0
    %1918 = vmatpush1.bf16.msra.mxu0 0
    %1919 = vmatprep.subr.bf16.mxu0 0
    %1920 = vmatpush1.bf16.msra.mxu0 0
    %1921 = vmatprep.subr.bf16.mxu0 0
    %1922 = vmatpush1.bf16.msra.mxu0 0
    %1923 = vmatprep.subr.bf16.mxu0 0
    %1924 = vmatpush1.bf16.msra.mxu0 0
    %1925 = vmatprep.subr.bf16.mxu0 0
    %1926 = vmatpush1.bf16.msra.mxu0 0
    %1927 = vmatprep.subr.bf16.mxu0 0
    %1928 = vmatpush1.bf16.msra.mxu0 0
    %1929 = vmatprep.subr.bf16.mxu0 0
    %1930 = vmatpush1.bf16.msra.mxu0 0
    %1931 = vmatprep.subr.bf16.mxu0 0
    %1932 = vmatpush1.bf16.msra.mxu0 0
    %1933 = vmatprep.subr.bf16.mxu0 0
    %1934 = vmatpush1.bf16.msra.mxu0 0
    %1935 = vmatprep.subr.bf16.mxu0 0
    %1936 = vmatpush1.bf16.msra.mxu0 0
    %1937 = vmatprep.subr.bf16.mxu0 0
    %1938 = vmatpush1.bf16.msra.mxu0 0
    %1939 = vmatprep.mubr.bf16.mxu0 0
    %1940 = vmatmul.mubr.bf16.gmra.mrb[0].mxu0 %v1905
    %v1941 = vpop.f32.mrb[0].mxu0
    %v1942 = vadd.f32 %v1891, %v1941
    %v1943 = vpop.f32.mrb[0].mxu0
    %v1944 = vpop.f32.mrb[0].mxu0
    %v1945 = vadd.f32 %v1891, %v1944
    %v1946 = vpop.f32.mrb[0].mxu0
    %1947 = vdwg.mxu0
    %v1948 = vadd.f32 %v1478, %v1942
    %v1949 = vadd.f32 %v1479, %v1945
    %v1950 = vld [vmem:[%s5 + $0x24] sm:$0x1]
    %v1951 = vld [vmem:[%s5 + $0x25] sm:$0x1]
    %v1952 = vsel %vm158, %v1948, 0.0
    %1953 = vadd.xlane.f32.xlu0 %v1952
    %v1954 = vpop.xlane.xlu0 %1953
    %v1955 = vsel %vm158, %v1949, 0.0
    %1956 = vadd.xlane.f32.xlu0 %v1955
    %v1957 = vpop.xlane.xlu0 %1956
    %v1958 = vmul.f32 %v1954, %v724
    %v1959 = vmul.f32 %v1957, %v724
    %v1960 = vsub.f32 %v1948, %v1958
    %v1961 = vsub.f32 %v1949, %v1959
    %v1962 = vmul.f32 %v1960, %v1960
    %v1963 = vmul.f32 %v1961, %v1961
    %v1964 = vsel %vm158, %v1962, 0.0
    %1965 = vadd.xlane.f32.xlu0 %v1964
    %v1966 = vpop.xlane.xlu0 %1965
    %v1967 = vsel %vm158, %v1963, 0.0
    %1968 = vadd.xlane.f32.xlu0 %v1967
    %v1969 = vpop.xlane.xlu0 %1968
    %v1970 = vmul.f32 %v1966, %v724
    %v1971 = vmul.f32 %v1969, %v724
    %v1972 = vadd.f32 %v1970, 1e-05
    %v1973 = vadd.f32 %v1971, 1e-05
    %v1974 = vrsqrt.pop %v1972
    %v1975 = vrsqrt.pop %v1973
    %v1976 = vmul.f32 %v1960, %v1974
    %v1977 = vmul.f32 %v1961, %v1975
    %v1978 = vlaneseq
    %v1979 = vshrl.u32 %v1978, 7
    %v1980 = vsub.s32 0, %v1979
    %v1981 = vrot.slane %v1950, %v1980
    %v1982 = vmul.f32 %v1976, %v1981
    %v1983 = vmul.f32 %v1977, %v1981
    %v1984 = vlaneseq
    %v1985 = vshrl.u32 %v1984, 7
    %v1986 = vsub.s32 0, %v1985
    %v1987 = vrot.slane %v1951, %v1986
    %v1988 = vadd.f32 %v1982, %v1987
    %v1989 = vadd.f32 %v1983, %v1987
    %v1990 = vld [vmem:[#allocation2 + $0xb0] sm:$0xf]
    %v1991 = vld [vmem:[#allocation2 + $0xb4] sm:$0xf]
    %v1992 = vld [vmem:[#allocation2 + $0xb8] sm:$0xf]
    %v1993 = vld [vmem:[#allocation2 + $0xbc] sm:$0xf]
    %v1994 = vpack.c.bf16 %v1989, %v1988
    %v1995 = vld [vmem:[%s5 + $0x20] sm:$0x1]
    %v1996 = vlaneseq
    %v1997 = vshrl.u32 %v1996, 7
    %v1998 = vsub.s32 0, %v1997
    %v1999 = vrot.slane %v1995, %v1998
    %v2004 = vunpack.c.l.b16 %v1990
    %v2005 = vunpack.c.l.b16 %v1991
    %v2006 = vunpack.c.l.b16 %v1992
    %v2007 = vunpack.c.l.b16 %v1993
    %v2008 = vpack.c.b16 %v2005, %v2004
    %v2009 = vpack.c.b16 %v2007, %v2006
    %v2013 = vsel %vm158, %v1994, 0
    %2015 = vmatprep.subr.bf16.mxu0 0
    %2016 = vmatpush1.bf16.msra.mxu0 %v2008
    %2017 = vmatprep.subr.bf16.mxu0 0
    %2018 = vmatpush1.bf16.msra.mxu0 %v2009
    %2019 = vmatprep.subr.bf16.mxu0 0
    %2020 = vmatpush1.bf16.msra.mxu0 0
    %2021 = vmatprep.subr.bf16.mxu0 0
    %2022 = vmatpush1.bf16.msra.mxu0 0
    %2023 = vmatprep.subr.bf16.mxu0 0
    %2024 = vmatpush1.bf16.msra.mxu0 0
    %2025 = vmatprep.subr.bf16.mxu0 0
    %2026 = vmatpush1.bf16.msra.mxu0 0
    %2027 = vmatprep.subr.bf16.mxu0 0
    %2028 = vmatpush1.bf16.msra.mxu0 0
    %2029 = vmatprep.subr.bf16.mxu0 0
    %2030 = vmatpush1.bf16.msra.mxu0 0
    %2031 = vmatprep.subr.bf16.mxu0 0
    %2032 = vmatpush1.bf16.msra.mxu0 0
    %2033 = vmatprep.subr.bf16.mxu0 0
    %2034 = vmatpush1.bf16.msra.mxu0 0
    %2035 = vmatprep.subr.bf16.mxu0 0
    %2036 = vmatpush1.bf16.msra.mxu0 0
    %2037 = vmatprep.subr.bf16.mxu0 0
    %2038 = vmatpush1.bf16.msra.mxu0 0
    %2039 = vmatprep.subr.bf16.mxu0 0
    %2040 = vmatpush1.bf16.msra.mxu0 0
    %2041 = vmatprep.subr.bf16.mxu0 0
    %2042 = vmatpush1.bf16.msra.mxu0 0
    %2043 = vmatprep.subr.bf16.mxu0 0
    %2044 = vmatpush1.bf16.msra.mxu0 0
    %2045 = vmatprep.subr.bf16.mxu0 0
    %2046 = vmatpush1.bf16.msra.mxu0 0
    %2047 = vmatprep.mubr.bf16.mxu0 0
    %2048 = vmatmul.mubr.bf16.gmra.mrb[0].mxu0 %v2013
    %v2049 = vpop.f32.mrb[0].mxu0
    %v2050 = vadd.f32 %v1999, %v2049
    %v2051 = vpop.f32.mrb[0].mxu0
    %v2052 = vpop.f32.mrb[0].mxu0
    %v2053 = vadd.f32 %v1999, %v2052
    %v2054 = vpop.f32.mrb[0].mxu0
    %2055 = vdwg.mxu0
    %2058 = vrot.lane.b32.xlu0 %v2050, 120
    %v2059 = vpop.permute.xlu0 %2058
    %2060 = vrot.lane.b32.xlu0 %v2053, 120
    %v2061 = vpop.permute.xlu0 %2060
    %2064 = vrot.lane.b32.xlu0 %v2050, 112
    %v2065 = vpop.permute.xlu0 %2064
    %2066 = vrot.lane.b32.xlu0 %v2053, 112
    %v2067 = vpop.permute.xlu0 %2066
    %2070 = vrot.lane.b32.xlu0 %v2050, 104
    %v2071 = vpop.permute.xlu0 %2070
    %2072 = vrot.lane.b32.xlu0 %v2053, 104
    %v2073 = vpop.permute.xlu0 %2072
    %v2076 = vpack.c.bf16 %v2053, %v2050
    %v2077 = vpack.c.bf16 %v2061, %v2059
    %v2078 = vpack.c.bf16 %v2067, %v2065
    %v2079 = vpack.c.bf16 %v2073, %v2071
    %v2080 = vld [vmem:[#allocation2 + $0xc0] sm:$0xf]
    %v2081 = vld [vmem:[#allocation2 + $0xc4] sm:$0xf]
    %v2082 = vld [vmem:[#allocation2 + $0xc8] sm:$0xf]
    %v2083 = vld [vmem:[#allocation2 + $0xcc] sm:$0xf]
    %v2084 = vld [vmem:[%s5 + $0x21] sm:$0x1]
    %2085 = vrot.lane.b32.xlu0 %v223, 64
    %v2086 = vpop.permute.xlu0 %2085
    %2087 = vrot.lane.b32.xlu0 %v224, 64
    %v2088 = vpop.permute.xlu0 %2087
    %2089 = vrot.lane.b32.xlu0 %v225, 64
    %v2090 = vpop.permute.xlu0 %2089
    %2091 = vrot.lane.b32.xlu0 %v226, 64
    %v2092 = vpop.permute.xlu0 %2091
    %v2094 = vsel %vm350, %v2076, 0
    %v2097 = vsel %vm350, %v2077, 0
    %v2100 = vsel %vm350, %v2078, 0
    %v2103 = vsel %vm350, %v2079, 0
    %v2106 = vsel %vm350, %v2086, 0
    %v2109 = vsel %vm350, %v2088, 0
    %v2112 = vsel %vm350, %v2090, 0
    %v2115 = vsel %vm350, %v2092, 0
    %2117 = vmatprep.subr.bf16.mxu0 0
    %2118 = vmatpush1.bf16.xpose.msra.mxu0 %v2106
    %2119 = vmatprep.subr.bf16.mxu0 0
    %2120 = vmatpush1.bf16.xpose.msra.mxu0 %v2109
    %2121 = vmatprep.subr.bf16.mxu0 0
    %2122 = vmatpush1.bf16.xpose.msra.mxu0 %v2112
    %2123 = vmatprep.subr.bf16.mxu0 0
    %2124 = vmatpush1.bf16.xpose.msra.mxu0 %v2115
    %2125 = vmatprep.subr.bf16.mxu0 0
    %2126 = vmatpush1.bf16.xpose.msra.mxu0 0
    %2127 = vmatprep.subr.bf16.mxu0 0
    %2128 = vmatpush1.bf16.xpose.msra.mxu0 0
    %2129 = vmatprep.subr.bf16.mxu0 0
    %2130 = vmatpush1.bf16.xpose.msra.mxu0 0
    %2131 = vmatprep.subr.bf16.mxu0 0
    %2132 = vmatpush1.bf16.xpose.msra.mxu0 0
    %2133 = vmatprep.subr.bf16.mxu0 0
    %2134 = vmatpush1.bf16.xpose.msra.mxu0 0
    %2135 = vmatprep.subr.bf16.mxu0 0
    %2136 = vmatpush1.bf16.xpose.msra.mxu0 0
    %2137 = vmatprep.subr.bf16.mxu0 0
    %2138 = vmatpush1.bf16.xpose.msra.mxu0 0
    %2139 = vmatprep.subr.bf16.mxu0 0
    %2140 = vmatpush1.bf16.xpose.msra.mxu0 0
    %2141 = vmatprep.subr.bf16.mxu0 0
    %2142 = vmatpush1.bf16.xpose.msra.mxu0 0
    %2143 = vmatprep.subr.bf16.mxu0 0
    %2144 = vmatpush1.bf16.xpose.msra.mxu0 0
    %2145 = vmatprep.subr.bf16.mxu0 0
    %2146 = vmatpush1.bf16.xpose.msra.mxu0 0
    %2147 = vmatprep.subr.bf16.mxu0 0
    %2148 = vmatpush1.bf16.xpose.msra.mxu0 0
    %2149 = vmatprep.mubr.bf16.mxu0 0
    %2150 = vmatmul.mubr.bf16.gmra.mrb[0].mxu0 %v2094
    %v2151 = vpop.f32.mrb[0].mxu0
    %v2152 = vadd.f32 %v235, %v2151
    %v2153 = vpop.f32.mrb[0].mxu0
    %v2154 = vpop.f32.mrb[0].mxu0
    %v2155 = vadd.f32 %v236, %v2154
    %v2156 = vpop.f32.mrb[0].mxu0
    %2157 = vmatprep.mubr.bf16.mxu0 0
    %2158 = vmatmul.mubr.bf16.gmra.mrb[0].mxu0 %v2097
    %v2159 = vpop.f32.mrb[0].mxu0
    %v2160 = vadd.f32 %v237, %v2159
    %v2161 = vpop.f32.mrb[0].mxu0
    %v2162 = vpop.f32.mrb[0].mxu0
    %v2163 = vadd.f32 %v238, %v2162
    %v2164 = vpop.f32.mrb[0].mxu0
    %2165 = vmatprep.mubr.bf16.mxu0 0
    %2166 = vmatmul.mubr.bf16.gmra.mrb[0].mxu0 %v2100
    %v2167 = vpop.f32.mrb[0].mxu0
    %v2168 = vadd.f32 %v239, %v2167
    %v2169 = vpop.f32.mrb[0].mxu0
    %v2170 = vpop.f32.mrb[0].mxu0
    %v2171 = vadd.f32 %v240, %v2170
    %v2172 = vpop.f32.mrb[0].mxu0
    %2173 = vmatprep.mubr.bf16.mxu0 0
    %2174 = vmatmul.mubr.bf16.gmra.mrb[0].mxu0 %v2103
    %v2175 = vpop.f32.mrb[0].mxu0
    %v2176 = vadd.f32 %v241, %v2175
    %v2177 = vpop.f32.mrb[0].mxu0
    %v2178 = vpop.f32.mrb[0].mxu0
    %v2179 = vadd.f32 %v242, %v2178
    %v2180 = vpop.f32.mrb[0].mxu0
    %2181 = vdwg.mxu0
    %v2182 = vsel %vm86, %v2152, -inf
    %2183 = vmax.xlane.f32.xlu0 %v2182
    %v2184 = vpop.xlane.xlu0 %2183
    %v2185 = vsel %vm86, %v2155, -inf
    %2186 = vmax.xlane.f32.xlu0 %v2185
    %v2187 = vpop.xlane.xlu0 %2186
    %v2188 = vsel %vm86, %v2160, -inf
    %2189 = vmax.xlane.f32.xlu0 %v2188
    %v2190 = vpop.xlane.xlu0 %2189
    %v2191 = vsel %vm86, %v2163, -inf
    %2192 = vmax.xlane.f32.xlu0 %v2191
    %v2193 = vpop.xlane.xlu0 %2192
    %v2194 = vsel %vm86, %v2168, -inf
    %2195 = vmax.xlane.f32.xlu0 %v2194
    %v2196 = vpop.xlane.xlu0 %2195
    %v2197 = vsel %vm86, %v2171, -inf
    %2198 = vmax.xlane.f32.xlu0 %v2197
    %v2199 = vpop.xlane.xlu0 %2198
    %v2200 = vsel %vm86, %v2176, -inf
    %2201 = vmax.xlane.f32.xlu0 %v2200
    %v2202 = vpop.xlane.xlu0 %2201
    %v2203 = vsel %vm86, %v2179, -inf
    %2204 = vmax.xlane.f32.xlu0 %v2203
    %v2205 = vpop.xlane.xlu0 %2204
    %v2206 = vsub.f32 %v2152, %v2184
    %v2207 = vsub.f32 %v2155, %v2187
    %v2208 = vsub.f32 %v2160, %v2190
    %v2209 = vsub.f32 %v2163, %v2193
    %v2210 = vsub.f32 %v2168, %v2196
    %v2211 = vsub.f32 %v2171, %v2199
    %v2212 = vsub.f32 %v2176, %v2202
    %v2213 = vsub.f32 %v2179, %v2205
    %v2214 = vmul.f32 %v2206, 1.442695
    %v2215 = vpow.pop %v2214
    %v2216 = vmul.f32 %v2207, 1.442695
    %v2217 = vpow.pop %v2216
    %v2218 = vmul.f32 %v2208, 1.442695
    %v2219 = vpow.pop %v2218
    %v2220 = vmul.f32 %v2209, 1.442695
    %v2221 = vpow.pop %v2220
    %v2222 = vmul.f32 %v2210, 1.442695
    %v2223 = vpow.pop %v2222
    %v2224 = vmul.f32 %v2211, 1.442695
    %v2225 = vpow.pop %v2224
    %v2226 = vmul.f32 %v2212, 1.442695
    %v2227 = vpow.pop %v2226
    %v2228 = vmul.f32 %v2213, 1.442695
    %v2229 = vpow.pop %v2228
    %v2230 = vsel %vm86, %v2215, 0.0
    %2231 = vadd.xlane.f32.xlu0 %v2230
    %v2232 = vpop.xlane.xlu0 %2231
    %v2233 = vsel %vm86, %v2217, 0.0
    %2234 = vadd.xlane.f32.xlu0 %v2233
    %v2235 = vpop.xlane.xlu0 %2234
    %v2236 = vsel %vm86, %v2219, 0.0
    %2237 = vadd.xlane.f32.xlu0 %v2236
    %v2238 = vpop.xlane.xlu0 %2237
    %v2239 = vsel %vm86, %v2221, 0.0
    %2240 = vadd.xlane.f32.xlu0 %v2239
    %v2241 = vpop.xlane.xlu0 %2240
    %v2242 = vsel %vm86, %v2223, 0.0
    %2243 = vadd.xlane.f32.xlu0 %v2242
    %v2244 = vpop.xlane.xlu0 %2243
    %v2245 = vsel %vm86, %v2225, 0.0
    %2246 = vadd.xlane.f32.xlu0 %v2245
    %v2247 = vpop.xlane.xlu0 %2246
    %v2248 = vsel %vm86, %v2227, 0.0
    %2249 = vadd.xlane.f32.xlu0 %v2248
    %v2250 = vpop.xlane.xlu0 %2249
    %v2251 = vsel %vm86, %v2229, 0.0
    %2252 = vadd.xlane.f32.xlu0 %v2251
    %v2253 = vpop.xlane.xlu0 %2252
    %v2254 = vrcp.pop %v2232
    %v2255 = vrcp.pop %v2235
    %v2256 = vrcp.pop %v2238
    %v2257 = vrcp.pop %v2241
    %v2258 = vrcp.pop %v2244
    %v2259 = vrcp.pop %v2247
    %v2260 = vrcp.pop %v2250
    %v2261 = vrcp.pop %v2253
    %v2262 = vmul.f32 %v2215, %v2254
    %v2263 = vmul.f32 %v2217, %v2255
    %v2264 = vmul.f32 %v2219, %v2256
    %v2265 = vmul.f32 %v2221, %v2257
    %v2266 = vmul.f32 %v2223, %v2258
    %v2267 = vmul.f32 %v2225, %v2259
    %v2268 = vmul.f32 %v2227, %v2260
    %v2269 = vmul.f32 %v2229, %v2261
    %v2270 = vpack.c.bf16 %v2263, %v2262
    %v2271 = vpack.c.bf16 %v2265, %v2264
    %v2272 = vpack.c.bf16 %v2267, %v2266
    %v2273 = vpack.c.bf16 %v2269, %v2268
    %2274 = vrot.lane.b32.xlu0 %v223, 32
    %v2275 = vpop.permute.xlu0 %2274
    %2276 = vrot.lane.b32.xlu0 %v224, 32
    %v2277 = vpop.permute.xlu0 %2276
    %2278 = vrot.lane.b32.xlu0 %v225, 32
    %v2279 = vpop.permute.xlu0 %2278
    %2280 = vrot.lane.b32.xlu0 %v226, 32
    %v2281 = vpop.permute.xlu0 %2280
    %v2287 = vsel %vm86, %v2270, 0
    %v2290 = vsel %vm86, %v2271, 0
    %v2293 = vsel %vm86, %v2272, 0
    %v2296 = vsel %vm86, %v2273, 0
    %2298 = vmatprep.subr.bf16.mxu0 0
    %2299 = vmatpush1.bf16.msra.mxu0 %v2275
    %2300 = vmatprep.subr.bf16.mxu0 0
    %2301 = vmatpush1.bf16.msra.mxu0 %v2277
    %2302 = vmatprep.subr.bf16.mxu0 0
    %2303 = vmatpush1.bf16.msra.mxu0 %v2279
    %2304 = vmatprep.subr.bf16.mxu0 0
    %2305 = vmatpush1.bf16.msra.mxu0 %v2281
    %2306 = vmatprep.subr.bf16.mxu0 0
    %2307 = vmatpush1.bf16.msra.mxu0 0
    %2308 = vmatprep.subr.bf16.mxu0 0
    %2309 = vmatpush1.bf16.msra.mxu0 0
    %2310 = vmatprep.subr.bf16.mxu0 0
    %2311 = vmatpush1.bf16.msra.mxu0 0
    %2312 = vmatprep.subr.bf16.mxu0 0
    %2313 = vmatpush1.bf16.msra.mxu0 0
    %2314 = vmatprep.subr.bf16.mxu0 0
    %2315 = vmatpush1.bf16.msra.mxu0 0
    %2316 = vmatprep.subr.bf16.mxu0 0
    %2317 = vmatpush1.bf16.msra.mxu0 0
    %2318 = vmatprep.subr.bf16.mxu0 0
    %2319 = vmatpush1.bf16.msra.mxu0 0
    %2320 = vmatprep.subr.bf16.mxu0 0
    %2321 = vmatpush1.bf16.msra.mxu0 0
    %2322 = vmatprep.subr.bf16.mxu0 0
    %2323 = vmatpush1.bf16.msra.mxu0 0
    %2324 = vmatprep.subr.bf16.mxu0 0
    %2325 = vmatpush1.bf16.msra.mxu0 0
    %2326 = vmatprep.subr.bf16.mxu0 0
    %2327 = vmatpush1.bf16.msra.mxu0 0
    %2328 = vmatprep.subr.bf16.mxu0 0
    %2329 = vmatpush1.bf16.msra.mxu0 0
    %2330 = vmatprep.mubr.bf16.mxu0 0
    %2331 = vmatmul.mubr.bf16.gmra.mrb[0].mxu0 %v2287
    %v2332 = vpop.f32.mrb[0].mxu0
    %v2333 = vadd.f32 0.0, %v2332
    %v2334 = vpop.f32.mrb[0].mxu0
    %v2335 = vpop.f32.mrb[0].mxu0
    %v2336 = vadd.f32 0.0, %v2335
    %v2337 = vpop.f32.mrb[0].mxu0
    %2338 = vmatprep.mubr.bf16.mxu0 0
    %2339 = vmatmul.mubr.bf16.gmra.mrb[0].mxu0 %v2290
    %v2340 = vpop.f32.mrb[0].mxu0
    %v2341 = vadd.f32 0.0, %v2340
    %v2342 = vpop.f32.mrb[0].mxu0
    %v2343 = vpop.f32.mrb[0].mxu0
    %v2344 = vadd.f32 0.0, %v2343
    %v2345 = vpop.f32.mrb[0].mxu0
    %2346 = vmatprep.mubr.bf16.mxu0 0
    %2347 = vmatmul.mubr.bf16.gmra.mrb[0].mxu0 %v2293
    %v2348 = vpop.f32.mrb[0].mxu0
    %v2349 = vadd.f32 0.0, %v2348
    %v2350 = vpop.f32.mrb[0].mxu0
    %v2351 = vpop.f32.mrb[0].mxu0
    %v2352 = vadd.f32 0.0, %v2351
    %v2353 = vpop.f32.mrb[0].mxu0
    %2354 = vmatprep.mubr.bf16.mxu0 0
    %2355 = vmatmul.mubr.bf16.gmra.mrb[0].mxu0 %v2296
    %v2356 = vpop.f32.mrb[0].mxu0
    %v2357 = vadd.f32 0.0, %v2356
    %v2358 = vpop.f32.mrb[0].mxu0
    %v2359 = vpop.f32.mrb[0].mxu0
    %v2360 = vadd.f32 0.0, %v2359
    %v2361 = vpop.f32.mrb[0].mxu0
    %2362 = vdwg.mxu0
    %2365 = vrot.lane.b32.xlu0 %v2341, 8
    %v2366 = vpop.permute.xlu0 %2365
    %2367 = vrot.lane.b32.xlu0 %v2344, 8
    %v2368 = vpop.permute.xlu0 %2367
    %2373 = vrot.lane.b32.xlu0 %v2349, 16
    %v2374 = vpop.permute.xlu0 %2373
    %2375 = vrot.lane.b32.xlu0 %v2352, 16
    %v2376 = vpop.permute.xlu0 %2375
    %2381 = vrot.lane.b32.xlu0 %v2357, 24
    %v2382 = vpop.permute.xlu0 %2381
    %2383 = vrot.lane.b32.xlu0 %v2360, 24
    %v2384 = vpop.permute.xlu0 %2383
    %v2387 = vsel %vm350, %v2333, %v2366
    %v2388 = vsel %vm350, %v2336, %v2368
    %v2389 = vsel %vm647, %v2387, %v2374
    %v2390 = vsel %vm647, %v2388, %v2376
    %v2391 = vsel %vm650, %v2389, %v2382
    %v2392 = vsel %vm650, %v2390, %v2384
    %v2393 = vpack.c.bf16 %v2392, %v2391
    %v2394 = vlaneseq
    %v2395 = vshrl.u32 %v2394, 7
    %v2396 = vsub.s32 0, %v2395
    %v2397 = vrot.slane %v2084, %v2396
    %v2402 = vunpack.c.l.b16 %v2080
    %v2403 = vunpack.c.l.b16 %v2081
    %v2404 = vunpack.c.l.b16 %v2082
    %v2405 = vunpack.c.l.b16 %v2083
    %v2406 = vpack.c.b16 %v2403, %v2402
    %v2407 = vpack.c.b16 %v2405, %v2404
    %v2411 = vsel %vm158, %v2393, 0
    %2413 = vmatprep.subr.bf16.mxu0 0
    %2414 = vmatpush1.bf16.msra.mxu0 %v2406
    %2415 = vmatprep.subr.bf16.mxu0 0
    %2416 = vmatpush1.bf16.msra.mxu0 %v2407
    %2417 = vmatprep.subr.bf16.mxu0 0
    %2418 = vmatpush1.bf16.msra.mxu0 0
    %2419 = vmatprep.subr.bf16.mxu0 0
    %2420 = vmatpush1.bf16.msra.mxu0 0
    %2421 = vmatprep.subr.bf16.mxu0 0
    %2422 = vmatpush1.bf16.msra.mxu0 0
    %2423 = vmatprep.subr.bf16.mxu0 0
    %2424 = vmatpush1.bf16.msra.mxu0 0
    %2425 = vmatprep.subr.bf16.mxu0 0
    %2426 = vmatpush1.bf16.msra.mxu0 0
    %2427 = vmatprep.subr.bf16.mxu0 0
    %2428 = vmatpush1.bf16.msra.mxu0 0
    %2429 = vmatprep.subr.bf16.mxu0 0
    %2430 = vmatpush1.bf16.msra.mxu0 0
    %2431 = vmatprep.subr.bf16.mxu0 0
    %2432 = vmatpush1.bf16.msra.mxu0 0
    %2433 = vmatprep.subr.bf16.mxu0 0
    %2434 = vmatpush1.bf16.msra.mxu0 0
    %2435 = vmatprep.subr.bf16.mxu0 0
    %2436 = vmatpush1.bf16.msra.mxu0 0
    %2437 = vmatprep.subr.bf16.mxu0 0
    %2438 = vmatpush1.bf16.msra.mxu0 0
    %2439 = vmatprep.subr.bf16.mxu0 0
    %2440 = vmatpush1.bf16.msra.mxu0 0
    %2441 = vmatprep.subr.bf16.mxu0 0
    %2442 = vmatpush1.bf16.msra.mxu0 0
    %2443 = vmatprep.subr.bf16.mxu0 0
    %2444 = vmatpush1.bf16.msra.mxu0 0
    %2445 = vmatprep.mubr.bf16.mxu0 0
    %2446 = vmatmul.mubr.bf16.gmra.mrb[0].mxu0 %v2411
    %v2447 = vpop.f32.mrb[0].mxu0
    %v2448 = vadd.f32 %v2397, %v2447
    %v2449 = vpop.f32.mrb[0].mxu0
    %v2450 = vpop.f32.mrb[0].mxu0
    %v2451 = vadd.f32 %v2397, %v2450
    %v2452 = vpop.f32.mrb[0].mxu0
    %2453 = vdwg.mxu0
    %v2454 = vadd.f32 %v1988, %v2448
    %v2455 = vadd.f32 %v1989, %v2451
    %v2456 = vld [vmem:[%s5 + $0x26] sm:$0x1]
    %v2457 = vld [vmem:[%s5 + $0x27] sm:$0x1]
    %v2458 = vsel %vm158, %v2454, 0.0
    %2459 = vadd.xlane.f32.xlu0 %v2458
    %v2460 = vpop.xlane.xlu0 %2459
    %v2461 = vsel %vm158, %v2455, 0.0
    %2462 = vadd.xlane.f32.xlu0 %v2461
    %v2463 = vpop.xlane.xlu0 %2462
    %v2464 = vmul.f32 %v2460, %v724
    %v2465 = vmul.f32 %v2463, %v724
    %v2466 = vsub.f32 %v2454, %v2464
    %v2467 = vsub.f32 %v2455, %v2465
    %v2468 = vmul.f32 %v2466, %v2466
    %v2469 = vmul.f32 %v2467, %v2467
    %v2470 = vsel %vm158, %v2468, 0.0
    %2471 = vadd.xlane.f32.xlu0 %v2470
    %v2472 = vpop.xlane.xlu0 %2471
    %v2473 = vsel %vm158, %v2469, 0.0
    %2474 = vadd.xlane.f32.xlu0 %v2473
    %v2475 = vpop.xlane.xlu0 %2474
    %v2476 = vmul.f32 %v2472, %v724
    %v2477 = vmul.f32 %v2475, %v724
    %v2478 = vadd.f32 %v2476, 1e-05
    %v2479 = vadd.f32 %v2477, 1e-05
    %v2480 = vrsqrt.pop %v2478
    %v2481 = vrsqrt.pop %v2479
    %v2482 = vmul.f32 %v2466, %v2480
    %v2483 = vmul.f32 %v2467, %v2481
    %v2484 = vlaneseq
    %v2485 = vshrl.u32 %v2484, 7
    %v2486 = vsub.s32 0, %v2485
    %v2487 = vrot.slane %v2456, %v2486
    %v2488 = vmul.f32 %v2482, %v2487
    %v2489 = vmul.f32 %v2483, %v2487
    %v2490 = vlaneseq
    %v2491 = vshrl.u32 %v2490, 7
    %v2492 = vsub.s32 0, %v2491
    %v2493 = vrot.slane %v2457, %v2492
    %v2494 = vadd.f32 %v2488, %v2493
    %v2495 = vadd.f32 %v2489, %v2493
    %v2496 = vld [vmem:[#allocation2 + $0xd0] sm:$0xf]
    %v2497 = vld [vmem:[#allocation2 + $0xd4] sm:$0xf]
    %v2498 = vld [vmem:[#allocation2 + $0xd8] sm:$0xf]
    %v2499 = vld [vmem:[#allocation2 + $0xdc] sm:$0xf]
    %v2500 = vpack.c.bf16 %v2495, %v2494
    %v2501 = vld [vmem:[%s5 + $0x22] sm:$0x1]
    %v2502 = vlaneseq
    %v2503 = vshrl.u32 %v2502, 7
    %v2504 = vsub.s32 0, %v2503
    %v2505 = vrot.slane %v2501, %v2504
    %v2510 = vunpack.c.l.b16 %v2496
    %v2511 = vunpack.c.l.b16 %v2497
    %v2512 = vunpack.c.l.b16 %v2498
    %v2513 = vunpack.c.l.b16 %v2499
    %v2514 = vpack.c.b16 %v2511, %v2510
    %v2515 = vpack.c.b16 %v2513, %v2512
    %v2519 = vsel %vm158, %v2500, 0
    %2521 = vmatprep.subr.bf16.mxu0 0
    %2522 = vmatpush1.bf16.msra.mxu0 %v2514
    %2523 = vmatprep.subr.bf16.mxu0 0
    %2524 = vmatpush1.bf16.msra.mxu0 %v2515
    %2525 = vmatprep.subr.bf16.mxu0 0
    %2526 = vmatpush1.bf16.msra.mxu0 0
    %2527 = vmatprep.subr.bf16.mxu0 0
    %2528 = vmatpush1.bf16.msra.mxu0 0
    %2529 = vmatprep.subr.bf16.mxu0 0
    %2530 = vmatpush1.bf16.msra.mxu0 0
    %2531 = vmatprep.subr.bf16.mxu0 0
    %2532 = vmatpush1.bf16.msra.mxu0 0
    %2533 = vmatprep.subr.bf16.mxu0 0
    %2534 = vmatpush1.bf16.msra.mxu0 0
    %2535 = vmatprep.subr.bf16.mxu0 0
    %2536 = vmatpush1.bf16.msra.mxu0 0
    %2537 = vmatprep.subr.bf16.mxu0 0
    %2538 = vmatpush1.bf16.msra.mxu0 0
    %2539 = vmatprep.subr.bf16.mxu0 0
    %2540 = vmatpush1.bf16.msra.mxu0 0
    %2541 = vmatprep.subr.bf16.mxu0 0
    %2542 = vmatpush1.bf16.msra.mxu0 0
    %2543 = vmatprep.subr.bf16.mxu0 0
    %2544 = vmatpush1.bf16.msra.mxu0 0
    %2545 = vmatprep.subr.bf16.mxu0 0
    %2546 = vmatpush1.bf16.msra.mxu0 0
    %2547 = vmatprep.subr.bf16.mxu0 0
    %2548 = vmatpush1.bf16.msra.mxu0 0
    %2549 = vmatprep.subr.bf16.mxu0 0
    %2550 = vmatpush1.bf16.msra.mxu0 0
    %2551 = vmatprep.subr.bf16.mxu0 0
    %2552 = vmatpush1.bf16.msra.mxu0 0
    %2553 = vmatprep.mubr.bf16.mxu0 0
    %2554 = vmatmul.mubr.bf16.gmra.mrb[0].mxu0 %v2519
    %v2555 = vpop.f32.mrb[0].mxu0
    %v2556 = vadd.f32 %v2505, %v2555
    %v2557 = vpop.f32.mrb[0].mxu0
    %v2558 = vpop.f32.mrb[0].mxu0
    %v2559 = vadd.f32 %v2505, %v2558
    %v2560 = vpop.f32.mrb[0].mxu0
    %2561 = vdwg.mxu0
    %v2562 = vmax.f32 %v2556, 0.0
    %v2563 = vmax.f32 %v2559, 0.0
    %v2564 = vld [vmem:[#allocation2 + $0xe0] sm:$0xf]
    %v2565 = vld [vmem:[#allocation2 + $0xe4] sm:$0xf]
    %v2566 = vld [vmem:[#allocation2 + $0xe8] sm:$0xf]
    %v2567 = vld [vmem:[#allocation2 + $0xec] sm:$0xf]
    %v2568 = vld [vmem:[#allocation2 + $0xf0] sm:$0xf]
    %v2569 = vld [vmem:[#allocation2 + $0xf4] sm:$0xf]
    %v2570 = vld [vmem:[#allocation2 + $0xf8] sm:$0xf]
    %v2571 = vld [vmem:[#allocation2 + $0xfc] sm:$0xf]
    %v2572 = vld [vmem:[#allocation2 + $0x100] sm:$0xf]
    %v2573 = vld [vmem:[#allocation2 + $0x104] sm:$0xf]
    %v2574 = vld [vmem:[#allocation2 + $0x108] sm:$0xf]
    %v2575 = vld [vmem:[#allocation2 + $0x10c] sm:$0xf]
    %v2576 = vld [vmem:[#allocation2 + $0x110] sm:$0xf]
    %v2577 = vld [vmem:[#allocation2 + $0x114] sm:$0xf]
    %v2578 = vld [vmem:[#allocation2 + $0x118] sm:$0xf]
    %v2579 = vld [vmem:[#allocation2 + $0x11c] sm:$0xf]
    %v2580 = vpack.c.bf16 %v2563, %v2562
    %v2581 = vld [vmem:[%s5 + $0x23] sm:$0x1]
    %v2582 = vlaneseq
    %v2583 = vshrl.u32 %v2582, 7
    %v2584 = vsub.s32 0, %v2583
    %v2585 = vrot.slane %v2581, %v2584
    %v2602 = vunpack.c.l.b16 %v2564
    %v2603 = vunpack.c.l.b16 %v2565
    %v2604 = vunpack.c.l.b16 %v2566
    %v2605 = vunpack.c.l.b16 %v2567
    %v2606 = vunpack.c.l.b16 %v2568
    %v2607 = vunpack.c.l.b16 %v2569
    %v2608 = vunpack.c.l.b16 %v2570
    %v2609 = vunpack.c.l.b16 %v2571
    %v2610 = vunpack.c.l.b16 %v2572
    %v2611 = vunpack.c.l.b16 %v2573
    %v2612 = vunpack.c.l.b16 %v2574
    %v2613 = vunpack.c.l.b16 %v2575
    %v2614 = vunpack.c.l.b16 %v2576
    %v2615 = vunpack.c.l.b16 %v2577
    %v2616 = vunpack.c.l.b16 %v2578
    %v2617 = vunpack.c.l.b16 %v2579
    %v2618 = vpack.c.b16 %v2603, %v2602
    %v2619 = vpack.c.b16 %v2605, %v2604
    %v2620 = vpack.c.b16 %v2607, %v2606
    %v2621 = vpack.c.b16 %v2609, %v2608
    %v2622 = vpack.c.b16 %v2611, %v2610
    %v2623 = vpack.c.b16 %v2613, %v2612
    %v2624 = vpack.c.b16 %v2615, %v2614
    %v2625 = vpack.c.b16 %v2617, %v2616
    %2634 = vmatprep.subr.bf16.mxu0 0
    %2635 = vmatpush1.bf16.msra.mxu0 %v2618
    %2636 = vmatprep.subr.bf16.mxu0 0
    %2637 = vmatpush1.bf16.msra.mxu0 %v2619
    %2638 = vmatprep.subr.bf16.mxu0 0
    %2639 = vmatpush1.bf16.msra.mxu0 %v2620
    %2640 = vmatprep.subr.bf16.mxu0 0
    %2641 = vmatpush1.bf16.msra.mxu0 %v2621
    %2642 = vmatprep.subr.bf16.mxu0 0
    %2643 = vmatpush1.bf16.msra.mxu0 %v2622
    %2644 = vmatprep.subr.bf16.mxu0 0
    %2645 = vmatpush1.bf16.msra.mxu0 %v2623
    %2646 = vmatprep.subr.bf16.mxu0 0
    %2647 = vmatpush1.bf16.msra.mxu0 %v2624
    %2648 = vmatprep.subr.bf16.mxu0 0
    %2649 = vmatpush1.bf16.msra.mxu0 %v2625
    %2650 = vmatprep.subr.bf16.mxu0 0
    %2651 = vmatpush1.bf16.msra.mxu0 0
    %2652 = vmatprep.subr.bf16.mxu0 0
    %2653 = vmatpush1.bf16.msra.mxu0 0
    %2654 = vmatprep.subr.bf16.mxu0 0
    %2655 = vmatpush1.bf16.msra.mxu0 0
    %2656 = vmatprep.subr.bf16.mxu0 0
    %2657 = vmatpush1.bf16.msra.mxu0 0
    %2658 = vmatprep.subr.bf16.mxu0 0
    %2659 = vmatpush1.bf16.msra.mxu0 0
    %2660 = vmatprep.subr.bf16.mxu0 0
    %2661 = vmatpush1.bf16.msra.mxu0 0
    %2662 = vmatprep.subr.bf16.mxu0 0
    %2663 = vmatpush1.bf16.msra.mxu0 0
    %2664 = vmatprep.subr.bf16.mxu0 0
    %2665 = vmatpush1.bf16.msra.mxu0 0
    %2666 = vmatprep.mubr.bf16.mxu0 0
    %2667 = vmatmul.mubr.bf16.gmra.mrb[0].mxu0 %v2580
    %v2668 = vpop.f32.mrb[0].mxu0
    %v2669 = vadd.f32 %v2585, %v2668
    %v2670 = vpop.f32.mrb[0].mxu0
    %v2671 = vpop.f32.mrb[0].mxu0
    %v2672 = vadd.f32 %v2585, %v2671
    %v2673 = vpop.f32.mrb[0].mxu0
    %2674 = vdwg.mxu0
    %v2675 = vadd.f32 %v2494, %v2669
    %v2676 = vadd.f32 %v2495, %v2672
    %v2677 = vld [vmem:[%s5 + $0x28] sm:$0x1]
    %v2678 = vld [vmem:[%s5 + $0x29] sm:$0x1]
    %v2679 = vsel %vm158, %v2675, 0.0
    %2680 = vadd.xlane.f32.xlu0 %v2679
    %v2681 = vpop.xlane.xlu0 %2680
    %v2682 = vsel %vm158, %v2676, 0.0
    %2683 = vadd.xlane.f32.xlu0 %v2682
    %v2684 = vpop.xlane.xlu0 %2683
    %v2685 = vmul.f32 %v2681, %v724
    %v2686 = vmul.f32 %v2684, %v724
    %v2687 = vsub.f32 %v2675, %v2685
    %v2688 = vsub.f32 %v2676, %v2686
    %v2689 = vmul.f32 %v2687, %v2687
    %v2690 = vmul.f32 %v2688, %v2688
    %v2691 = vsel %vm158, %v2689, 0.0
    %2692 = vadd.xlane.f32.xlu0 %v2691
    %v2693 = vpop.xlane.xlu0 %2692
    %v2694 = vsel %vm158, %v2690, 0.0
    %2695 = vadd.xlane.f32.xlu0 %v2694
    %v2696 = vpop.xlane.xlu0 %2695
    %v2697 = vmul.f32 %v2693, %v724
    %v2698 = vmul.f32 %v2696, %v724
    %v2699 = vadd.f32 %v2697, 1e-05
    %v2700 = vadd.f32 %v2698, 1e-05
    %v2701 = vrsqrt.pop %v2699
    %v2702 = vrsqrt.pop %v2700
    %v2703 = vmul.f32 %v2687, %v2701
    %v2704 = vmul.f32 %v2688, %v2702
    %v2705 = vlaneseq
    %v2706 = vshrl.u32 %v2705, 7
    %v2707 = vsub.s32 0, %v2706
    %v2708 = vrot.slane %v2677, %v2707
    %v2709 = vmul.f32 %v2703, %v2708
    %v2710 = vmul.f32 %v2704, %v2708
    %v2711 = vlaneseq
    %v2712 = vshrl.u32 %v2711, 7
    %v2713 = vsub.s32 0, %v2712
    %v2714 = vrot.slane %v2678, %v2713
    %v2715 = vadd.f32 %v2709, %v2714
    %v2716 = vadd.f32 %v2710, %v2714
    %v2717 = vld [vmem:[#allocation2 + $0x150] sm:$0xf]
    %v2718 = vld [vmem:[#allocation2 + $0x154] sm:$0xf]
    %v2719 = vld [vmem:[#allocation2 + $0x158] sm:$0xf]
    %v2720 = vld [vmem:[#allocation2 + $0x15c] sm:$0xf]
    %v2721 = vpack.c.bf16 %v2716, %v2715
    %v2722 = vld [vmem:[%s5] sm:$0x1]
    %v2723 = vlaneseq
    %v2724 = vshrl.u32 %v2723, 7
    %v2725 = vsub.s32 0, %v2724
    %v2726 = vrot.slane %v2722, %v2725
    %v2731 = vunpack.c.l.b16 %v2717
    %v2732 = vunpack.c.l.b16 %v2718
    %v2733 = vunpack.c.l.b16 %v2719
    %v2734 = vunpack.c.l.b16 %v2720
    %v2735 = vpack.c.b16 %v2732, %v2731
    %v2736 = vpack.c.b16 %v2734, %v2733
    %v2740 = vsel %vm158, %v2721, 0
    %2742 = vmatprep.subr.bf16.mxu0 0
    %2743 = vmatpush1.bf16.msra.mxu0 %v2735
    %2744 = vmatprep.subr.bf16.mxu0 0
    %2745 = vmatpush1.bf16.msra.mxu0 %v2736
    %2746 = vmatprep.subr.bf16.mxu0 0
    %2747 = vmatpush1.bf16.msra.mxu0 0
    %2748 = vmatprep.subr.bf16.mxu0 0
    %2749 = vmatpush1.bf16.msra.mxu0 0
    %2750 = vmatprep.subr.bf16.mxu0 0
    %2751 = vmatpush1.bf16.msra.mxu0 0
    %2752 = vmatprep.subr.bf16.mxu0 0
    %2753 = vmatpush1.bf16.msra.mxu0 0
    %2754 = vmatprep.subr.bf16.mxu0 0
    %2755 = vmatpush1.bf16.msra.mxu0 0
    %2756 = vmatprep.subr.bf16.mxu0 0
    %2757 = vmatpush1.bf16.msra.mxu0 0
    %2758 = vmatprep.subr.bf16.mxu0 0
    %2759 = vmatpush1.bf16.msra.mxu0 0
    %2760 = vmatprep.subr.bf16.mxu0 0
    %2761 = vmatpush1.bf16.msra.mxu0 0
    %2762 = vmatprep.subr.bf16.mxu0 0
    %2763 = vmatpush1.bf16.msra.mxu0 0
    %2764 = vmatprep.subr.bf16.mxu0 0
    %2765 = vmatpush1.bf16.msra.mxu0 0
    %2766 = vmatprep.subr.bf16.mxu0 0
    %2767 = vmatpush1.bf16.msra.mxu0 0
    %2768 = vmatprep.subr.bf16.mxu0 0
    %2769 = vmatpush1.bf16.msra.mxu0 0
    %2770 = vmatprep.subr.bf16.mxu0 0
    %2771 = vmatpush1.bf16.msra.mxu0 0
    %2772 = vmatprep.subr.bf16.mxu0 0
    %2773 = vmatpush1.bf16.msra.mxu0 0
    %2774 = vmatprep.mubr.bf16.mxu0 0
    %2775 = vmatmul.mubr.bf16.gmra.mrb[0].mxu0 %v2740
    %v2776 = vpop.f32.mrb[0].mxu0
    %v2777 = vadd.f32 %v2726, %v2776
    %v2778 = vpop.f32.mrb[0].mxu0
    %v2779 = vpop.f32.mrb[0].mxu0
    %v2780 = vadd.f32 %v2726, %v2779
    %v2781 = vpop.f32.mrb[0].mxu0
    %2782 = vdwg.mxu0
    %2783 = vst [vmem:[#allocation5] sm:$0xff] %v2777
    %2784 = vst [vmem:[#allocation5 + $0x8] sm:$0xff] %v2780
    // Predicated region
    $region30: #{transformer_decoder_forward.1} parent=1 // pred_check
      _
    $region31: #{transformer_decoder_forward.1} parent=1 // pred_check_branch
      %2786 = sbr.rel (0) target = $region33
    $region32: #{transformer_decoder_forward.1} parent=1 // pred_region
      %s2788 = ssub.s32 256, 256
      %2789 = vsyncadd [#allocation4], %s2788
      %s2790 = sshll.u32 [#allocation5], 4
      %s2791 = int_to_ptr.vmem [resolvable:$true] %s2790
      %2796 = dma.vmem_to_hbm [thread:$0]  %s2791, 256, %s6, [#allocation4], 128, 128, 8
    $region33: #{transformer_decoder_forward.1} parent=1 // pred_fallthru
      _
    // Predicated region
    $region34: #{transformer_decoder_forward.1} parent=1 // pred_check
      _
    $region35: #{transformer_decoder_forward.1} parent=1 // pred_check_branch
      %2798 = sbr.rel (0) target = $region37
    $region36: #{transformer_decoder_forward.1} parent=1 // pred_region
      %2799 = dma.done [#allocation4], 256
    $region37: #{transformer_decoder_forward.1} parent=1 // pred_fallthru
      _
    %2800 = vsyncpa [#allocation3], 1
    %2801 = vsyncpa [#allocation4], 1

</llo_original>
